<compile_context>
chip_gen: v6e
topology: v6e:2x2x1
jax: 0.10.0
libtpu: 0.0.40
codegen_flags: <defaults>
</compile_context>

<pallas_src>
import functools
import math

import jax
import jax.numpy as jnp
from jax.experimental import pallas as pl
from jax.experimental.pallas import tpu as pltpu

INPUT_DIM = 2
HIDDEN = 128
TIME_DIM = 64

ACT_COLS = 4          # activation stream columns: [x0, x1, t, 0]
N_LAYERS = 5          # matmuls in the weight slab: w1p, w23, w4, w5, w6p
C_ROWS = 16           # f32 constant-slab rows (padded to 2 sublane tiles)

# constant-slab row indices
R_FREQ, R_PHASE, R_B1, R_B23, R_B4, R_B5, R_B6, R_W3X0, R_W3X1 = 0, 1, 2, 3, 4, 5, 6, 8, 9


def _vector_field_kernel(act_ref, w_ref, c_ref, out_ref, *, bf16_act):
    f32, bf16 = jnp.float32, jnp.bfloat16
    sdt = bf16 if bf16_act else f32   # dtype for SiLU / inter-layer activations

    x0 = act_ref[:, 0:1]                                    # (TB, 1) f32
    x1 = act_ref[:, 1:2]
    t = act_ref[:, 2:3]

    # Sinusoidal embedding as one fused 128-lane cos:
    #   lanes 0..63  : cos(t*f) / sin(t*f) via phase shift (cos(a - pi/2)=sin a)
    #   lanes 64..127: cos(0)=1 dummies, killed by zero rows 64..127 of w1p.
    emb = jnp.cos(t * c_ref[R_FREQ:R_FREQ + 1, :] - c_ref[R_PHASE:R_PHASE + 1, :])

    def mm(a, layer):
        # bf16 MXU matmul against slab rows [layer*128, (layer+1)*128), f32 acc.
        w = w_ref[layer * HIDDEN:(layer + 1) * HIDDEN, :]
        return jnp.dot(a.astype(bf16), w, preferred_element_type=f32)

    def nonlin(v):
        return jax.nn.silu(v.astype(sdt))

    # time_embed[0] + SiLU (time_embed[2] is folded into layer 1 below)
    h = nonlin(mm(emb, 0) + c_ref[R_B1:R_B1 + 1, :])

    # net[0]: x-part via two broadcast FMAs + folded (w2 @ w3h) matmul
    xw = x0 * c_ref[R_W3X0:R_W3X0 + 1, :] + x1 * c_ref[R_W3X1:R_W3X1 + 1, :]
    h = nonlin(mm(h, 1) + xw + c_ref[R_B23:R_B23 + 1, :])

    h = nonlin(mm(h, 2) + c_ref[R_B4:R_B4 + 1, :])           # net[2]
    h = nonlin(mm(h, 3) + c_ref[R_B5:R_B5 + 1, :])           # net[4]

    # net[6] padded to 128 output columns -> lane-dense store (cols 2.. are junk)
    out_ref[...] = (mm(h, 4) + c_ref[R_B6:R_B6 + 1, :]).astype(out_ref.dtype)


def _round_up(n, m):
    return pl.cdiv(n, m) * m


@functools.partial(jax.jit, static_argnames=("max_tile", "bf16_act"))
def vector_field_forward(x, t, w_slab, c_slab, *, max_tile=1024, bf16_act=True):
    """x: (B, 2) f32, t: (B,) (or scalar) f32 -> velocity (B, 2) f32."""
    f32 = jnp.float32
    B = x.shape[0]

    t = jnp.asarray(t, f32).reshape(-1)
    if t.shape[0] != B:                       # scalar-t case (torch t.repeat(len(x)))
        t = jnp.broadcast_to(t, (B,))

    # Tiling: even tile count (so a 2-TC chip can split the grid), tile size a
    # multiple of 8 chosen to minimize padded rows.  Whole working set << VMEM.
    n_tiles = max(2, pl.cdiv(B, max_tile))
    if n_tiles % 2:
        n_tiles += 1
    tb = max(8, _round_up(pl.cdiv(B, n_tiles), 8))
    b_pad = n_tiles * tb

    # Activation stream: [x0, x1, t, 0]; padded rows are all-zero (harmless).
    act = jnp.zeros((b_pad, ACT_COLS), f32)
    act = act.at[:B, :INPUT_DIM].set(x.astype(f32))
    act = act.at[:B, 2].set(t)

    flops = 2 * b_pad * (N_LAYERS * HIDDEN * HIDDEN + INPUT_DIM * HIDDEN)
    transcendentals = b_pad * (HIDDEN + 4 * HIDDEN)          # cos + 4 SiLU
    bytes_accessed = (int(act.size) * 4 + b_pad * HIDDEN * 4
                      + int(w_slab.size) * 2 + int(c_slab.size) * 4)

    out = pl.pallas_call(
        functools.partial(_vector_field_kernel, bf16_act=bf16_act),
        out_shape=jax.ShapeDtypeStruct((b_pad, HIDDEN), f32),
        grid=(n_tiles,),
        in_specs=[
            pl.BlockSpec((tb, ACT_COLS), lambda i: (i, 0)),      # activations
            pl.BlockSpec(w_slab.shape, lambda i: (0, 0)),        # bf16 weight slab
            pl.BlockSpec(c_slab.shape, lambda i: (0, 0)),        # f32 consts slab
        ],
        out_specs=pl.BlockSpec((tb, HIDDEN), lambda i: (i, 0)),
        compiler_params=pltpu.CompilerParams(
            dimension_semantics=("parallel",)),
        cost_estimate=pl.CostEstimate(
            flops=flops, transcendentals=transcendentals,
            bytes_accessed=bytes_accessed),
    )(act, w_slab, c_slab)

    return out[:B, :INPUT_DIM]


def pack_params(raw):
    """Pack raw (in, out)-layout weights into the two kernel slabs."""
    (w1, b1, w2, b2, w3, b3, w4, b4, w5, b5, w6, b6) = raw
    f32, bf16 = jnp.float32, jnp.bfloat16

    w3x = w3[:INPUT_DIM, :]                 # (2, 128)   net[0] rows for x features
    w3h = w3[INPUT_DIM:, :]                 # (128, 128) net[0] rows for t_emb

    # Fold time_embed[2] into net[0]'s t_emb part (exact up to rounding).
    # Product / sum taken in f32; only the final result is cast to bf16.
    w23 = w2 @ w3h                          # (128, 128) f32
    b23 = b2 @ w3h + b3                     # (1, 128)   f32

    half = TIME_DIM // 2
    freqs_half = jnp.exp(-jnp.arange(half, dtype=f32) * (math.log(10000.0) / half))
    freqs = jnp.concatenate([freqs_half, freqs_half])                       # (64,)
    phase = jnp.concatenate([jnp.zeros((half,), f32),
                             jnp.full((half,), math.pi / 2.0, f32)])        # (64,)

    w1p = jnp.pad(w1, ((0, HIDDEN - TIME_DIM), (0, 0)))       # (128,128), zero rows 64..127
    w6p = jnp.pad(w6, ((0, 0), (0, HIDDEN - INPUT_DIM)))      # (128,128), zero cols 2..127

    w_slab = jnp.concatenate([w1p, w23, w4, w5, w6p], axis=0).astype(bf16)  # (640,128)

    c = jnp.zeros((C_ROWS, HIDDEN), f32)
    c = c.at[R_FREQ, :TIME_DIM].set(freqs)
    c = c.at[R_PHASE, :TIME_DIM].set(phase)
    c = c.at[R_B1].set(b1[0])
    c = c.at[R_B23].set(b23[0])
    c = c.at[R_B4].set(b4[0])
    c = c.at[R_B5].set(b5[0])
    c = c.at[R_B6, :INPUT_DIM].set(b6[0])
    c = c.at[R_W3X0].set(w3x[0])
    c = c.at[R_W3X1].set(w3x[1])
    return w_slab, c


def make_params(key):
    """Deterministic synthetic parameters (weights stored as (in, out))."""
    ks = jax.random.split(key, 6)
    s = 0.05

    def lin(k, fan_in, fan_out):
        kw, kb = jax.random.split(k)
        return (jax.random.normal(kw, (fan_in, fan_out), jnp.float32) * s,
                jax.random.normal(kb, (1, fan_out), jnp.float32) * s)

    w1, b1 = lin(ks[0], TIME_DIM, HIDDEN)             # time_embed[0]
    w2, b2 = lin(ks[1], HIDDEN, HIDDEN)               # time_embed[2]
    w3, b3 = lin(ks[2], INPUT_DIM + HIDDEN, HIDDEN)   # net[0]  (130 -> 128)
    w4, b4 = lin(ks[3], HIDDEN, HIDDEN)               # net[2]
    w5, b5 = lin(ks[4], HIDDEN, HIDDEN)               # net[4]
    w6, b6 = lin(ks[5], HIDDEN, INPUT_DIM)            # net[6]  (128 -> 2)

    raw = (w1, b1, w2, b2, w3, b3, w4, b4, w5, b5, w6, b6)
    return pack_params(raw), raw


def reference_forward(x, t, raw):
    """Pure-JAX f32 reference mirroring the PyTorch module exactly."""
    (w1, b1, w2, b2, w3, b3, w4, b4, w5, b5, w6, b6) = raw
    half = TIME_DIM // 2
    freqs = jnp.exp(-jnp.arange(half, dtype=jnp.float32) * math.log(10000.0) / half)
    args = t[:, None] * freqs[None]
    emb = jnp.concatenate([jnp.cos(args), jnp.sin(args)], axis=-1)
    h = jax.nn.silu(emb @ w1 + b1)
    t_emb = h @ w2 + b2
    xin = jnp.concatenate([x, t_emb], axis=1)
    h = jax.nn.silu(xin @ w3 + b3)
    h = jax.nn.silu(h @ w4 + b4)
    h = jax.nn.silu(h @ w5 + b5)
    return h @ w6 + b6


def _default_bf16_act():
    # bf16 SiLU only helps on chips with a bf16 VPU/EUP (v6e / v7x); keep f32
    # on v5e and older.  Correctness is identical either way.
    try:
        kind = jax.devices()[0].device_kind.lower()
    except Exception:
        return True
    return not any(s in kind for s in ("v2", "v3", "v4", "v5 lite", "v5e", "v5litepod"))


if __name__ == "__main__":
    key = jax.random.PRNGKey(0)
    kp, kx, kt = jax.random.split(key, 3)

    # B > one tile and not a multiple of 8: exercises the 2-tile grid and the
    # padded-row path while staying tiny in bytes.
    B = 520
    x = jax.random.normal(kx, (B, INPUT_DIM), jnp.float32)
    t = jax.random.uniform(kt, (B,), jnp.float32)

    (w_slab, c_slab), raw_params = make_params(kp)

    v = jax.block_until_ready(
        vector_field_forward(x, t, w_slab, c_slab, bf16_act=_default_bf16_act()))
    v_ref = reference_forward(x, t, raw_params)

    assert v.shape == (B, INPUT_DIM)
    max_err = float(jnp.max(jnp.abs(v - v_ref)))
    # bf16 weights / f32 accumulation: loosened tolerance vs the f32 reference.
    assert jnp.allclose(v, v_ref, atol=1e-2, rtol=1e-2), (
        f"mismatch vs reference (max abs err {max_err:.3e})")

    print("KERNEL_OK")
</pallas_src>

<mosaic_0001>
module attributes {stable_mosaic.version = 11 : i64} {
  func.func @_vector_field_kernel(%arg0: i32, %arg1: memref<264x4xf32, #tpu.memory_space<vmem>>, %arg2: memref<640x128xbf16, #tpu.memory_space<vmem>>, %arg3: memref<16x128xf32, #tpu.memory_space<vmem>>, %arg4: memref<264x128xf32, #tpu.memory_space<vmem>>) attributes {dimension_semantics = [#tpu.dimension_semantics<parallel>], iteration_bounds = array<i64: 2>, scalar_prefetch = 0 : i64, scratch_operands = 0 : i64, tpu.core_type = #tpu.core_type<tc>, window_params = [{transform_indices = @transform_0, window_bounds = array<i64: 264, 4>}, {pipeline_mode = #tpu.pipeline_mode<synchronous>, transform_indices = @transform_1, window_bounds = array<i64: 640, 128>}, {pipeline_mode = #tpu.pipeline_mode<synchronous>, transform_indices = @transform_2, window_bounds = array<i64: 16, 128>}, {transform_indices = @transform_3, window_bounds = array<i64: 264, 128>}]} {
    %c0 = arith.constant 0 : index
    %c0_0 = arith.constant 0 : index
    %0 = vector.load %arg1[%c0, %c0_0] : memref<264x4xf32, #tpu.memory_space<vmem>>, vector<264x1xf32>
    %c0_1 = arith.constant 0 : index
    %c1 = arith.constant 1 : index
    %1 = vector.load %arg1[%c0_1, %c1] : memref<264x4xf32, #tpu.memory_space<vmem>>, vector<264x1xf32>
    %c0_2 = arith.constant 0 : index
    %c2 = arith.constant 2 : index
    %2 = vector.load %arg1[%c0_2, %c2] : memref<264x4xf32, #tpu.memory_space<vmem>>, vector<264x1xf32>
    %c0_3 = arith.constant 0 : index
    %c0_4 = arith.constant 0 : index
    %3 = vector.load %arg3[%c0_3, %c0_4] : memref<16x128xf32, #tpu.memory_space<vmem>>, vector<1x128xf32>
    %4 = vector.broadcast %2 : vector<264x1xf32> to vector<264x128xf32>
    %5 = vector.broadcast %3 : vector<1x128xf32> to vector<264x128xf32>
    %6 = arith.mulf %4, %5 : vector<264x128xf32>
    %c1_5 = arith.constant 1 : index
    %c0_6 = arith.constant 0 : index
    %7 = vector.load %arg3[%c1_5, %c0_6] : memref<16x128xf32, #tpu.memory_space<vmem>>, vector<1x128xf32>
    %8 = vector.broadcast %7 : vector<1x128xf32> to vector<264x128xf32>
    %9 = arith.subf %6, %8 : vector<264x128xf32>
    %10 = math.cos %9 : vector<264x128xf32>
    %c0_7 = arith.constant 0 : index
    %c0_8 = arith.constant 0 : index
    %11 = vector.load %arg2[%c0_7, %c0_8] : memref<640x128xbf16, #tpu.memory_space<vmem>>, vector<128x128xbf16>
    %12 = arith.truncf %10 : vector<264x128xf32> to vector<264x128xbf16>
    %cst = arith.constant dense<0.000000e+00> : vector<264x128xf32>
    %13 = tpu.matmul %12, %11, %cst {dimension_numbers = #tpu.dot_dimension_numbers<[1], [0], [0], [1], [0, 0, 1, 1], [], []>} : vector<264x128xbf16>, vector<128x128xbf16>, vector<264x128xf32> -> vector<264x128xf32>
    %c2_9 = arith.constant 2 : index
    %c0_10 = arith.constant 0 : index
    %14 = vector.load %arg3[%c2_9, %c0_10] : memref<16x128xf32, #tpu.memory_space<vmem>>, vector<1x128xf32>
    %15 = vector.broadcast %14 : vector<1x128xf32> to vector<264x128xf32>
    %16 = arith.addf %13, %15 : vector<264x128xf32>
    %17 = arith.truncf %16 : vector<264x128xf32> to vector<264x128xbf16>
    %18 = arith.negf %17 : vector<264x128xbf16>
    %19 = math.exp %18 : vector<264x128xbf16>
    %cst_11 = arith.constant 1.000000e+00 : bf16
    %20 = vector.broadcast %cst_11 : bf16 to vector<264x128xbf16>
    %21 = arith.addf %20, %19 : vector<264x128xbf16>
    %22 = arith.divf %20, %21 : vector<264x128xbf16>
    %23 = arith.mulf %17, %22 : vector<264x128xbf16>
    %c8 = arith.constant 8 : index
    %c0_12 = arith.constant 0 : index
    %24 = vector.load %arg3[%c8, %c0_12] : memref<16x128xf32, #tpu.memory_space<vmem>>, vector<1x128xf32>
    %25 = vector.broadcast %0 : vector<264x1xf32> to vector<264x128xf32>
    %26 = vector.broadcast %24 : vector<1x128xf32> to vector<264x128xf32>
    %27 = arith.mulf %25, %26 : vector<264x128xf32>
    %c9 = arith.constant 9 : index
    %c0_13 = arith.constant 0 : index
    %28 = vector.load %arg3[%c9, %c0_13] : memref<16x128xf32, #tpu.memory_space<vmem>>, vector<1x128xf32>
    %29 = vector.broadcast %1 : vector<264x1xf32> to vector<264x128xf32>
    %30 = vector.broadcast %28 : vector<1x128xf32> to vector<264x128xf32>
    %31 = arith.mulf %29, %30 : vector<264x128xf32>
    %32 = arith.addf %27, %31 : vector<264x128xf32>
    %c128 = arith.constant 128 : index
    %c0_14 = arith.constant 0 : index
    %33 = vector.load %arg2[%c128, %c0_14] : memref<640x128xbf16, #tpu.memory_space<vmem>>, vector<128x128xbf16>
    %cst_15 = arith.constant dense<0.000000e+00> : vector<264x128xf32>
    %34 = tpu.matmul %23, %33, %cst_15 {dimension_numbers = #tpu.dot_dimension_numbers<[1], [0], [0], [1], [0, 0, 1, 1], [], []>} : vector<264x128xbf16>, vector<128x128xbf16>, vector<264x128xf32> -> vector<264x128xf32>
    %35 = arith.addf %34, %32 : vector<264x128xf32>
    %c3 = arith.constant 3 : index
    %c0_16 = arith.constant 0 : index
    %36 = vector.load %arg3[%c3, %c0_16] : memref<16x128xf32, #tpu.memory_space<vmem>>, vector<1x128xf32>
    %37 = vector.broadcast %36 : vector<1x128xf32> to vector<264x128xf32>
    %38 = arith.addf %35, %37 : vector<264x128xf32>
    %39 = arith.truncf %38 : vector<264x128xf32> to vector<264x128xbf16>
    %40 = arith.negf %39 : vector<264x128xbf16>
    %41 = math.exp %40 : vector<264x128xbf16>
    %cst_17 = arith.constant 1.000000e+00 : bf16
    %42 = vector.broadcast %cst_17 : bf16 to vector<264x128xbf16>
    %43 = arith.addf %42, %41 : vector<264x128xbf16>
    %44 = arith.divf %42, %43 : vector<264x128xbf16>
    %45 = arith.mulf %39, %44 : vector<264x128xbf16>
    %c256 = arith.constant 256 : index
    %c0_18 = arith.constant 0 : index
    %46 = vector.load %arg2[%c256, %c0_18] : memref<640x128xbf16, #tpu.memory_space<vmem>>, vector<128x128xbf16>
    %cst_19 = arith.constant dense<0.000000e+00> : vector<264x128xf32>
    %47 = tpu.matmul %45, %46, %cst_19 {dimension_numbers = #tpu.dot_dimension_numbers<[1], [0], [0], [1], [0, 0, 1, 1], [], []>} : vector<264x128xbf16>, vector<128x128xbf16>, vector<264x128xf32> -> vector<264x128xf32>
    %c4 = arith.constant 4 : index
    %c0_20 = arith.constant 0 : index
    %48 = vector.load %arg3[%c4, %c0_20] : memref<16x128xf32, #tpu.memory_space<vmem>>, vector<1x128xf32>
    %49 = vector.broadcast %48 : vector<1x128xf32> to vector<264x128xf32>
    %50 = arith.addf %47, %49 : vector<264x128xf32>
    %51 = arith.truncf %50 : vector<264x128xf32> to vector<264x128xbf16>
    %52 = arith.negf %51 : vector<264x128xbf16>
    %53 = math.exp %52 : vector<264x128xbf16>
    %cst_21 = arith.constant 1.000000e+00 : bf16
    %54 = vector.broadcast %cst_21 : bf16 to vector<264x128xbf16>
    %55 = arith.addf %54, %53 : vector<264x128xbf16>
    %56 = arith.divf %54, %55 : vector<264x128xbf16>
    %57 = arith.mulf %51, %56 : vector<264x128xbf16>
    %c384 = arith.constant 384 : index
    %c0_22 = arith.constant 0 : index
    %58 = vector.load %arg2[%c384, %c0_22] : memref<640x128xbf16, #tpu.memory_space<vmem>>, vector<128x128xbf16>
    %cst_23 = arith.constant dense<0.000000e+00> : vector<264x128xf32>
    %59 = tpu.matmul %57, %58, %cst_23 {dimension_numbers = #tpu.dot_dimension_numbers<[1], [0], [0], [1], [0, 0, 1, 1], [], []>} : vector<264x128xbf16>, vector<128x128xbf16>, vector<264x128xf32> -> vector<264x128xf32>
    %c5 = arith.constant 5 : index
    %c0_24 = arith.constant 0 : index
    %60 = vector.load %arg3[%c5, %c0_24] : memref<16x128xf32, #tpu.memory_space<vmem>>, vector<1x128xf32>
    %61 = vector.broadcast %60 : vector<1x128xf32> to vector<264x128xf32>
    %62 = arith.addf %59, %61 : vector<264x128xf32>
    %63 = arith.truncf %62 : vector<264x128xf32> to vector<264x128xbf16>
    %64 = arith.negf %63 : vector<264x128xbf16>
    %65 = math.exp %64 : vector<264x128xbf16>
    %cst_25 = arith.constant 1.000000e+00 : bf16
    %66 = vector.broadcast %cst_25 : bf16 to vector<264x128xbf16>
    %67 = arith.addf %66, %65 : vector<264x128xbf16>
    %68 = arith.divf %66, %67 : vector<264x128xbf16>
    %69 = arith.mulf %63, %68 : vector<264x128xbf16>
    %c512 = arith.constant 512 : index
    %c0_26 = arith.constant 0 : index
    %70 = vector.load %arg2[%c512, %c0_26] : memref<640x128xbf16, #tpu.memory_space<vmem>>, vector<128x128xbf16>
    %cst_27 = arith.constant dense<0.000000e+00> : vector<264x128xf32>
    %71 = tpu.matmul %69, %70, %cst_27 {dimension_numbers = #tpu.dot_dimension_numbers<[1], [0], [0], [1], [0, 0, 1, 1], [], []>} : vector<264x128xbf16>, vector<128x128xbf16>, vector<264x128xf32> -> vector<264x128xf32>
    %c6 = arith.constant 6 : index
    %c0_28 = arith.constant 0 : index
    %72 = vector.load %arg3[%c6, %c0_28] : memref<16x128xf32, #tpu.memory_space<vmem>>, vector<1x128xf32>
    %73 = vector.broadcast %72 : vector<1x128xf32> to vector<264x128xf32>
    %74 = arith.addf %71, %73 : vector<264x128xf32>
    %c0_29 = arith.constant 0 : index
    %c0_30 = arith.constant 0 : index
    %75 = vector.load %arg4[%c0_29, %c0_30] : memref<264x128xf32, #tpu.memory_space<vmem>>, vector<264x128xf32>
    tpu.vector_store %arg4[%c0_29, %c0_30], %74 {strides = array<i32>} : memref<264x128xf32, #tpu.memory_space<vmem>>, vector<264x128xf32>,
    return
  }
  func.func @transform_0(%arg0: i32) -> (i32, i32) {
    %c0_i32 = arith.constant 0 : i32
    %c0_i32_0 = arith.constant 0 : i32
    return %arg0, %c0_i32 : i32, i32
  }
  func.func @transform_1(%arg0: i32) -> (i32, i32) {
    %c0_i32 = arith.constant 0 : i32
    %c0_i32_0 = arith.constant 0 : i32
    %c0_i32_1 = arith.constant 0 : i32
    return %c0_i32, %c0_i32_0 : i32, i32
  }
  func.func @transform_2(%arg0: i32) -> (i32, i32) {
    %c0_i32 = arith.constant 0 : i32
    %c0_i32_0 = arith.constant 0 : i32
    %c0_i32_1 = arith.constant 0 : i32
    return %c0_i32, %c0_i32_0 : i32, i32
  }
  func.func @transform_3(%arg0: i32) -> (i32, i32) {
    %c0_i32 = arith.constant 0 : i32
    %c0_i32_0 = arith.constant 0 : i32
    return %arg0, %c0_i32 : i32, i32
  }
}

</mosaic_0001>

<llo_original>
// kernel: vector_field_forward.1
$region0: #{vector_field_forward.1}
  #allocation0 [shape = 'u32[]', space=smem, size = 0x4, offset = 0x4, fixed_abs, tag = 'smem constant byte address 0x4 - core index']
  #allocation1 [shape = 'u32[144,128]{1,0:T(1,128)}', space=vmem, size = 0x12000, scoped, tag = 'internal scratch']
  %s0 = inlined_call_operand.vmem [shape: f32[528,4], index: 0, kind: input, shape index: {}]
  %s1 = inlined_call_operand.vmem [shape: bf16[640,128], index: 1, kind: input, shape index: {}]
  %s2 = inlined_call_operand.vmem [shape: f32[16,128], index: 2, kind: input, shape index: {}]
  %s3 = inlined_call_operand.vmem [shape: f32[528,128], index: 3, kind: output, shape index: {}]
  %s4 = sld [smem:[#allocation0]]
  $region45: #{vector_field_forward.1} parent=0
    _
  %s6 = ssub.s32 1, %s4
  %s7 = scalar_select 0, %s6, %s4
  loop: start=0, step=1, limit=4
  $region2: #{vector_field_forward.1} parent=0 // loop_pre_header
    _
  $region3: #{vector_field_forward.1} parent=0 // loop_header
    %s9 = sphi 0, %s13
    %p10 = scmp.ge.s32.totalorder %s9, 4
    %s19 = sphi 0, %s21
    %s22 = sphi 0, %s19
    %s23 = sphi 0, %s22
    %s39 = sphi 0, %s23
    %s43 = sphi 0, %s43
    %s45 = sphi 0, %s43
    %s46 = sphi 0, %s45
    %s60 = sphi 0, %s46
    %s64 = sphi 0, %s64
    %s66 = sphi 0, %s64
    %s67 = sphi 0, %s66
    %s81 = sphi 0, %s67
    %s87 = sphi 0, %s89
    %s90 = sphi 0, %s87
    %s91 = sphi 0, %s90
    %s107 = sphi 0, %s91
  $region4: #{vector_field_forward.1} parent=0 // loop_header_branch
    %12 = sbr.rel (%p10) target = $region8
  $region5: #{vector_field_forward.1} parent=0 // loop_body
    %s14 = ssub.s32 %s9, 1
    %s15 = ssub.s32 %s9, 2
    %s16 = sadd.s32 %s9, 1
    %s17 = ssub.s32 %s9, %s16
    %p18 = scmp.eq.s32.totalorder %s17, 0
    %s20 = sadd.s32 %s19, 1
    %s21 = scalar_select %p18, %s19, %s20
    %p24 = pneg %p18
    %p25 = scmp.eq.s32.totalorder %s9, 1
    %p26 = por %p24, %p25
    %p27 = scmp.ne.s32.totalorder %s19, %s22
    %p28 = scmp.eq.s32.totalorder %s9, 0
    %p29 = por %p27, %p28
    %p30 = scmp.ne.s32.totalorder %s19, %s22
    %p31 = scmp.eq.s32.totalorder %s14, 1
    %p32 = por %p30, %p31
    %p33 = scmp.ne.s32.totalorder %s22, %s23
    %p34 = scmp.eq.s32.totalorder %s14, 0
    %p35 = por %p33, %p34
    %p36 = scmp.ne.s32.totalorder %s22, %s23
    %p37 = scmp.eq.s32.totalorder %s15, 1
    %p38 = por %p36, %p37
    %p40 = scmp.ne.s32.totalorder %s23, %s39
    %p41 = scmp.eq.s32.totalorder %s15, 0
    %p42 = por %p40, %p41
    %s44 = sadd.s32 %s43, 1
    %p47 = scmp.eq.s32.totalorder %s9, 1
    %p48 = scmp.ne.s32.totalorder %s43, %s45
    %p49 = scmp.eq.s32.totalorder %s9, 0
    %p50 = por %p48, %p49
    %p51 = scmp.ne.s32.totalorder %s43, %s45
    %p52 = scmp.eq.s32.totalorder %s14, 1
    %p53 = por %p51, %p52
    %p54 = scmp.ne.s32.totalorder %s45, %s46
    %p55 = scmp.eq.s32.totalorder %s14, 0
    %p56 = por %p54, %p55
    %p57 = scmp.ne.s32.totalorder %s45, %s46
    %p58 = scmp.eq.s32.totalorder %s15, 1
    %p59 = por %p57, %p58
    %p61 = scmp.ne.s32.totalorder %s46, %s60
    %p62 = scmp.eq.s32.totalorder %s15, 0
    %p63 = por %p61, %p62
    %s65 = sadd.s32 %s64, 1
    %p68 = scmp.eq.s32.totalorder %s9, 1
    %p69 = scmp.ne.s32.totalorder %s64, %s66
    %p70 = scmp.eq.s32.totalorder %s9, 0
    %p71 = por %p69, %p70
    %p72 = scmp.ne.s32.totalorder %s64, %s66
    %p73 = scmp.eq.s32.totalorder %s14, 1
    %p74 = por %p72, %p73
    %p75 = scmp.ne.s32.totalorder %s66, %s67
    %p76 = scmp.eq.s32.totalorder %s14, 0
    %p77 = por %p75, %p76
    %p78 = scmp.ne.s32.totalorder %s66, %s67
    %p79 = scmp.eq.s32.totalorder %s15, 1
    %p80 = por %p78, %p79
    %p82 = scmp.ne.s32.totalorder %s67, %s81
    %p83 = scmp.eq.s32.totalorder %s15, 0
    %p84 = por %p82, %p83
    %s85 = ssub.s32 %s9, %s16
    %p86 = scmp.eq.s32.totalorder %s85, 0
    %s88 = sadd.s32 %s87, 1
    %s89 = scalar_select %p86, %s87, %s88
    %p92 = pneg %p86
    %p93 = scmp.eq.s32.totalorder %s9, 1
    %p94 = por %p92, %p93
    %p95 = scmp.ne.s32.totalorder %s87, %s90
    %p96 = scmp.eq.s32.totalorder %s9, 0
    %p97 = por %p95, %p96
    %p98 = scmp.ne.s32.totalorder %s87, %s90
    %p99 = scmp.eq.s32.totalorder %s14, 1
    %p100 = por %p98, %p99
    %p101 = scmp.ne.s32.totalorder %s90, %s91
    %p102 = scmp.eq.s32.totalorder %s14, 0
    %p103 = por %p101, %p102
    %p104 = scmp.ne.s32.totalorder %s90, %s91
    %p105 = scmp.eq.s32.totalorder %s15, 1
    %p106 = por %p104, %p105
    %p108 = scmp.ne.s32.totalorder %s91, %s107
    %p109 = scmp.eq.s32.totalorder %s15, 0
    %p110 = por %p108, %p109
    %p111 = scmp.le.s32.totalorder 1, %s9
    %p112 = scmp.lt.s32.totalorder %s9, 3
    %p113 = pnand %p111, %p112
    %p114 = pneg %p113
    // Predicated region
    $region9: #{vector_field_forward.1} parent=5 // pred_check
      _
    $region10: #{vector_field_forward.1} parent=5 // pred_check_branch
      %116 = sbr.rel (%p113) target = $region12
    $region11: #{vector_field_forward.1} parent=5 // pred_region
      %s117 = ssub.s32 %s9, 1
      // Predicated region
      $region13: #{vector_field_forward.1} parent=11 // pred_check
        %p118 = pneg %p56
      $region14: #{vector_field_forward.1} parent=11 // pred_check_branch
        %120 = sbr.rel (%p118) target = $region16
      $region15: #{vector_field_forward.1} parent=11 // pred_region
        _
      $region16: #{vector_field_forward.1} parent=11 // pred_fallthru
        _
      // Predicated region
      $region17: #{vector_field_forward.1} parent=11 // pred_check
        %p121 = pneg %p77
      $region18: #{vector_field_forward.1} parent=11 // pred_check_branch
        %123 = sbr.rel (%p121) target = $region20
      $region19: #{vector_field_forward.1} parent=11 // pred_region
        _
      $region20: #{vector_field_forward.1} parent=11 // pred_fallthru
        _
    $region12: #{vector_field_forward.1} parent=5 // pred_fallthru
      _
    %p124 = scmp.lt.s32.totalorder %s9, 2
    // Predicated region
    $region21: #{vector_field_forward.1} parent=5 // pred_check
      %p125 = pneg %p124
    $region22: #{vector_field_forward.1} parent=5 // pred_check_branch
      %127 = sbr.rel (%p125) target = $region24
    $region23: #{vector_field_forward.1} parent=5 // pred_region
      // Predicated region
      $region25: #{vector_field_forward.1} parent=23 // pred_check
        %p128 = pneg %p29
      $region26: #{vector_field_forward.1} parent=23 // pred_check_branch
        %130 = sbr.rel (%p128) target = $region28
      $region27: #{vector_field_forward.1} parent=23 // pred_region
        %s131 = smul.u32 33, %s9
        %p132 = scmp.lt.s32.totalorder %s131, 65
        %s133 = scalar_select %p132, %s131, 65
        %s134 = smul.addr %s133, 8
        %s135 = scalar_lea.vmem %s0, %s134
        %s136 = smul.u32 33, %s9
      $region28: #{vector_field_forward.1} parent=23 // pred_fallthru
        _
    $region24: #{vector_field_forward.1} parent=5 // pred_fallthru
      _
    %p137 = scmp.le.s32.totalorder 1, %s9
    %p138 = scmp.lt.s32.totalorder %s9, 3
    %p139 = pnand %p137, %p138
    %p140 = pneg %p139
    // Predicated region
    $region29: #{vector_field_forward.1} parent=5 // pred_check
      _
    $region30: #{vector_field_forward.1} parent=5 // pred_check_branch
      %142 = sbr.rel (%p139) target = $region32
    $region31: #{vector_field_forward.1} parent=5 // pred_region
      %s143 = ssub.s32 %s9, 1
      %s144 = smul.u32 33, %s14
      %p145 = scmp.lt.s32.totalorder %s144, 65
      %s146 = scalar_select %p145, %s144, 65
      %s147 = smul.addr %s146, 8
      %s148 = scalar_lea.vmem %s0, %s147
      %p149 = pneg %p35
      %p150 = pneg %p32
      %p151 = pneg %p56
      %p152 = pneg %p53
      %p153 = pneg %p77
      %p154 = pneg %p74
      %p155 = pneg %p103
      %p156 = pneg %p100
      %s157 = smul.u32 33, %s14
      %p158 = scmp.lt.s32.totalorder %s157, 65
      %s159 = scalar_select %p158, %s157, 65
      %s160 = smul.addr %s159, 8
      %s161 = scalar_lea.vmem %s3, %s160
      %s162 = smul.u32 33, %s14
      %p163 = scmp.lt.s32.totalorder %s162, 65
      %s164 = scalar_select %p163, %s162, 65
      %s165 = smul.addr %s164, 8
      %s166 = scalar_lea.vmem %s0, %s165
      %s167 = smul.u32 33, %s14
      %s168 = smul.u32 33, %s14
      %p169 = scmp.lt.s32.totalorder %s168, 65
      %s170 = scalar_select %p169, %s168, 65
      %s171 = smul.addr %s170, 8
      %s172 = scalar_lea.vmem %s3, %s171
      %s173 = smul.u32 33, %s14
      %v176 = vld [vmem:[%s166] sm:$0xff]
      %v177 = vld [vmem:[%s166 + $0x8] sm:$0xff]
      %v178 = vld [vmem:[%s166 + $0x10] sm:$0xff]
      %v179 = vld [vmem:[%s166 + $0x18] sm:$0xff]
      %v180 = vld [vmem:[%s166 + $0x20] sm:$0xff]
      %v181 = vld [vmem:[%s166 + $0x28] sm:$0xff]
      %v182 = vld [vmem:[%s166 + $0x30] sm:$0xff]
      %v183 = vld [vmem:[%s166 + $0x38] sm:$0xff]
      %v184 = vld [vmem:[%s166 + $0x40] sm:$0xff]
      %v185 = vld [vmem:[%s166 + $0x48] sm:$0xff]
      %v186 = vld [vmem:[%s166 + $0x50] sm:$0xff]
      %v187 = vld [vmem:[%s166 + $0x58] sm:$0xff]
      %v188 = vld [vmem:[%s166 + $0x60] sm:$0xff]
      %v189 = vld [vmem:[%s166 + $0x68] sm:$0xff]
      %v190 = vld [vmem:[%s166 + $0x70] sm:$0xff]
      %v191 = vld [vmem:[%s166 + $0x78] sm:$0xff]
      %v192 = vld [vmem:[%s166 + $0x80] sm:$0xff]
      %v193 = vld [vmem:[%s166 + $0x88] sm:$0xff]
      %v194 = vld [vmem:[%s166 + $0x90] sm:$0xff]
      %v195 = vld [vmem:[%s166 + $0x98] sm:$0xff]
      %v196 = vld [vmem:[%s166 + $0xa0] sm:$0xff]
      %v197 = vld [vmem:[%s166 + $0xa8] sm:$0xff]
      %v198 = vld [vmem:[%s166 + $0xb0] sm:$0xff]
      %v199 = vld [vmem:[%s166 + $0xb8] sm:$0xff]
      %v200 = vld [vmem:[%s166 + $0xc0] sm:$0xff]
      %v201 = vld [vmem:[%s166 + $0xc8] sm:$0xff]
      %v202 = vld [vmem:[%s166 + $0xd0] sm:$0xff]
      %v203 = vld [vmem:[%s166 + $0xd8] sm:$0xff]
      %v204 = vld [vmem:[%s166 + $0xe0] sm:$0xff]
      %v205 = vld [vmem:[%s166 + $0xe8] sm:$0xff]
      %v206 = vld [vmem:[%s166 + $0xf0] sm:$0xff]
      %v207 = vld [vmem:[%s166 + $0xf8] sm:$0xff]
      %v208 = vld [vmem:[%s166 + $0x100] sm:$0xff]
      %v209 = vld [vmem:[%s2] sm:$0x1]
      %211 = vset.pattern.permute.xlu0 2
      %212 = vperm.xlu0 %211, %v176
      %v213 = vpop.permute.xlu0 %212
      %216 = vset.pattern.permute.xlu0 2
      %217 = vperm.xlu0 %216, %v177
      %v218 = vpop.permute.xlu0 %217
      %221 = vset.pattern.permute.xlu0 2
      %222 = vperm.xlu0 %221, %v178
      %v223 = vpop.permute.xlu0 %222
      %226 = vset.pattern.permute.xlu0 2
      %227 = vperm.xlu0 %226, %v179
      %v228 = vpop.permute.xlu0 %227
      %231 = vset.pattern.permute.xlu0 2
      %232 = vperm.xlu0 %231, %v180
      %v233 = vpop.permute.xlu0 %232
      %236 = vset.pattern.permute.xlu0 2
      %237 = vperm.xlu0 %236, %v181
      %v238 = vpop.permute.xlu0 %237
      %241 = vset.pattern.permute.xlu0 2
      %242 = vperm.xlu0 %241, %v182
      %v243 = vpop.permute.xlu0 %242
      %246 = vset.pattern.permute.xlu0 2
      %247 = vperm.xlu0 %246, %v183
      %v248 = vpop.permute.xlu0 %247
      %251 = vset.pattern.permute.xlu0 2
      %252 = vperm.xlu0 %251, %v184
      %v253 = vpop.permute.xlu0 %252
      %256 = vset.pattern.permute.xlu0 2
      %257 = vperm.xlu0 %256, %v185
      %v258 = vpop.permute.xlu0 %257
      %261 = vset.pattern.permute.xlu0 2
      %262 = vperm.xlu0 %261, %v186
      %v263 = vpop.permute.xlu0 %262
      %266 = vset.pattern.permute.xlu0 2
      %267 = vperm.xlu0 %266, %v187
      %v268 = vpop.permute.xlu0 %267
      %271 = vset.pattern.permute.xlu0 2
      %272 = vperm.xlu0 %271, %v188
      %v273 = vpop.permute.xlu0 %272
      %276 = vset.pattern.permute.xlu0 2
      %277 = vperm.xlu0 %276, %v189
      %v278 = vpop.permute.xlu0 %277
      %281 = vset.pattern.permute.xlu0 2
      %282 = vperm.xlu0 %281, %v190
      %v283 = vpop.permute.xlu0 %282
      %286 = vset.pattern.permute.xlu0 2
      %287 = vperm.xlu0 %286, %v191
      %v288 = vpop.permute.xlu0 %287
      %291 = vset.pattern.permute.xlu0 2
      %292 = vperm.xlu0 %291, %v192
      %v293 = vpop.permute.xlu0 %292
      %296 = vset.pattern.permute.xlu0 2
      %297 = vperm.xlu0 %296, %v193
      %v298 = vpop.permute.xlu0 %297
      %301 = vset.pattern.permute.xlu0 2
      %302 = vperm.xlu0 %301, %v194
      %v303 = vpop.permute.xlu0 %302
      %306 = vset.pattern.permute.xlu0 2
      %307 = vperm.xlu0 %306, %v195
      %v308 = vpop.permute.xlu0 %307
      %311 = vset.pattern.permute.xlu0 2
      %312 = vperm.xlu0 %311, %v196
      %v313 = vpop.permute.xlu0 %312
      %316 = vset.pattern.permute.xlu0 2
      %317 = vperm.xlu0 %316, %v197
      %v318 = vpop.permute.xlu0 %317
      %321 = vset.pattern.permute.xlu0 2
      %322 = vperm.xlu0 %321, %v198
      %v323 = vpop.permute.xlu0 %322
      %326 = vset.pattern.permute.xlu0 2
      %327 = vperm.xlu0 %326, %v199
      %v328 = vpop.permute.xlu0 %327
      %331 = vset.pattern.permute.xlu0 2
      %332 = vperm.xlu0 %331, %v200
      %v333 = vpop.permute.xlu0 %332
      %336 = vset.pattern.permute.xlu0 2
      %337 = vperm.xlu0 %336, %v201
      %v338 = vpop.permute.xlu0 %337
      %341 = vset.pattern.permute.xlu0 2
      %342 = vperm.xlu0 %341, %v202
      %v343 = vpop.permute.xlu0 %342
      %346 = vset.pattern.permute.xlu0 2
      %347 = vperm.xlu0 %346, %v203
      %v348 = vpop.permute.xlu0 %347
      %351 = vset.pattern.permute.xlu0 2
      %352 = vperm.xlu0 %351, %v204
      %v353 = vpop.permute.xlu0 %352
      %356 = vset.pattern.permute.xlu0 2
      %357 = vperm.xlu0 %356, %v205
      %v358 = vpop.permute.xlu0 %357
      %361 = vset.pattern.permute.xlu0 2
      %362 = vperm.xlu0 %361, %v206
      %v363 = vpop.permute.xlu0 %362
      %366 = vset.pattern.permute.xlu0 2
      %367 = vperm.xlu0 %366, %v207
      %v368 = vpop.permute.xlu0 %367
      %371 = vset.pattern.permute.xlu0 2
      %372 = vperm.xlu0 %371, %v208
      %v373 = vpop.permute.xlu0 %372
      %v375 = vlaneseq
      %v376 = vshrl.u32 %v375, 7
      %v377 = vsub.s32 0, %v376
      %v378 = vrot.slane %v209, %v377
      %v379 = vmul.f32 %v213, %v378
      %v380 = vmul.f32 %v218, %v378
      %v381 = vmul.f32 %v223, %v378
      %v382 = vmul.f32 %v228, %v378
      %v383 = vmul.f32 %v233, %v378
      %v384 = vmul.f32 %v238, %v378
      %v385 = vmul.f32 %v243, %v378
      %v386 = vmul.f32 %v248, %v378
      %v387 = vmul.f32 %v253, %v378
      %v388 = vmul.f32 %v258, %v378
      %v389 = vmul.f32 %v263, %v378
      %v390 = vmul.f32 %v268, %v378
      %v391 = vmul.f32 %v273, %v378
      %v392 = vmul.f32 %v278, %v378
      %v393 = vmul.f32 %v283, %v378
      %v394 = vmul.f32 %v288, %v378
      %v395 = vmul.f32 %v293, %v378
      %v396 = vmul.f32 %v298, %v378
      %v397 = vmul.f32 %v303, %v378
      %v398 = vmul.f32 %v308, %v378
      %v399 = vmul.f32 %v313, %v378
      %v400 = vmul.f32 %v318, %v378
      %v401 = vmul.f32 %v323, %v378
      %v402 = vmul.f32 %v328, %v378
      %v403 = vmul.f32 %v333, %v378
      %v404 = vmul.f32 %v338, %v378
      %v405 = vmul.f32 %v343, %v378
      %v406 = vmul.f32 %v348, %v378
      %v407 = vmul.f32 %v353, %v378
      %v408 = vmul.f32 %v358, %v378
      %v409 = vmul.f32 %v363, %v378
      %v410 = vmul.f32 %v368, %v378
      %v411 = vmul.f32 %v373, %v378
      %v412 = vld [vmem:[%s2 + $0x1] sm:$0x1]
      %v413 = vlaneseq
      %v414 = vshrl.u32 %v413, 7
      %v415 = vsub.s32 0, %v414
      %v416 = vrot.slane %v412, %v415
      %v417 = vsub.f32 %v379, %v416
      %v418 = vsub.f32 %v380, %v416
      %v419 = vsub.f32 %v381, %v416
      %v420 = vsub.f32 %v382, %v416
      %v421 = vsub.f32 %v383, %v416
      %v422 = vsub.f32 %v384, %v416
      %v423 = vsub.f32 %v385, %v416
      %v424 = vsub.f32 %v386, %v416
      %v425 = vsub.f32 %v387, %v416
      %v426 = vsub.f32 %v388, %v416
      %v427 = vsub.f32 %v389, %v416
      %v428 = vsub.f32 %v390, %v416
      %v429 = vsub.f32 %v391, %v416
      %v430 = vsub.f32 %v392, %v416
      %v431 = vsub.f32 %v393, %v416
      %v432 = vsub.f32 %v394, %v416
      %v433 = vsub.f32 %v395, %v416
      %v434 = vsub.f32 %v396, %v416
      %v435 = vsub.f32 %v397, %v416
      %v436 = vsub.f32 %v398, %v416
      %v437 = vsub.f32 %v399, %v416
      %v438 = vsub.f32 %v400, %v416
      %v439 = vsub.f32 %v401, %v416
      %v440 = vsub.f32 %v402, %v416
      %v441 = vsub.f32 %v403, %v416
      %v442 = vsub.f32 %v404, %v416
      %v443 = vsub.f32 %v405, %v416
      %v444 = vsub.f32 %v406, %v416
      %v445 = vsub.f32 %v407, %v416
      %v446 = vsub.f32 %v408, %v416
      %v447 = vsub.f32 %v409, %v416
      %v448 = vsub.f32 %v410, %v416
      %v449 = vsub.f32 %v411, %v416
      %v450 = vand.u32 2147483647, %v417
      %vm451 = vcmp.le.f32.partialorder %v450, 0.7853982
      %vm452 = vcmp.lt.s32.totalorder %v417, 0
      %v453 = vand.u32 %v417, 2139095040
      %v454 = vshrl.u32 %v453, 23
      %v455 = vsub.s32 %v454, 127
      %v456 = vand.u32 2147483647, %v417
      %v457 = vand.u32 %v456, 8388607
      %v458 = vor.u32 %v457, 8388608
      %v459 = vsub.s32 0, %v458
      %v460 = vadd.s32 %v455, 1
      %vm461 = vcmp.gt.s32.totalorder %v460, 0
      %v462 = vsel %vm461, %v460, 0
      %v463 = vshrl.u32 %v462, 5
      %v464 = vand.u32 %v462, 31
      %v465 = vsub.s32 32, %v464
      %v466 = vshrl.u32 683565275, %v465
      %v467 = vshll.u32 683565275, %v464
      %v468 = vshrl.u32 2475754826, %v465
      %v469 = vor.u32 %v467, %v468
      %v470 = vshll.u32 2475754826, %v464
      %v471 = vshrl.u32 2131351028, %v465
      %v472 = vor.u32 %v470, %v471
      %v473 = vshll.u32 2131351028, %v464
      %v474 = vshrl.u32 2102212464, %v465
      %v475 = vor.u32 %v473, %v474
      %v476 = vshll.u32 2102212464, %v464
      %v477 = vshrl.u32 920167782, %v465
      %v478 = vor.u32 %v476, %v477
      %v479 = vshll.u32 920167782, %v464
      %v480 = vshrl.u32 1326507024, %v465
      %v481 = vor.u32 %v479, %v480
      %vm482 = vcmp.lt.s32.totalorder %v463, 1
      %vm483 = vcmp.lt.s32.totalorder %v463, 2
      %vm484 = vcmp.lt.s32.totalorder %v463, 3
      %vm485 = vcmp.lt.s32.totalorder %v463, 4
      %v486 = vsel %vm482, %v466, %v469
      %v487 = vsel %vm485, %v475, 2102212464
      %v488 = vsel %vm484, %v472, %v487
      %v489 = vsel %vm483, %v486, %v488
      %v490 = vsel %vm482, %v469, %v472
      %v491 = vsel %vm485, %v478, 920167782
      %v492 = vsel %vm484, %v475, %v491
      %v493 = vsel %vm483, %v490, %v492
      %v494 = vsel %vm482, %v472, %v475
      %v495 = vsel %vm485, %v481, 1326507024
      %v496 = vsel %vm484, %v478, %v495
      %v497 = vsel %vm483, %v494, %v496
      %v498 = vshll.u32 %v458, 8
      %v499 = vmul.u32.u64.compose %v498, %v497
      %v500 = vextract.low.u32 %v499
      %v501 = vextract.high.u32 %v499
      %v502 = vmul.u32.u64.compose %v498, %v493
      %v503 = vextract.low.u32 %v502
      %v504 = vextract.high.u32 %v502
      %v505 = vmul.u32 %v498, %v489
      %v506 = vadd.s32 %v501, %v503
      %vm507 = vc.u32 %v501, %v503
      %v508 = vadd.s32 %v504, 1
      %v509 = vsel %vm507, %v508, %v504
      %v510 = vadd.s32 %v505, %v509
      %v511 = vadd.s32 %v510, 536870912
      %v512 = vshrl.u32 %v511, 30
      %v513 = vshll.u32 %v512, 30
      %v514 = vsub.s32 %v510, %v513
      %vm515 = vcmp.lt.s32.totalorder %v514, 0
      %v516 = vsub.s32 0, %v514
      %v517 = vsel %vm515, %v516, %v514
      %v518 = vclz %v517
      %v519 = vsub.s32 %v518, 2
      %vm520 = vcmp.gt.s32.totalorder 0, %v519
      %v521 = vsel %vm520, 0, %v519
      %v522 = vsub.s32 32, %v521
      %v523 = vshll.u32 %v514, %v521
      %v524 = vshrl.u32 %v506, %v522
      %v525 = vor.u32 %v523, %v524
      %v526 = vsub.s32 4294967266, %v521
      %v527 = vadd.s32 %v526, 127
      %v528 = vshll.u32 %v527, 23
      %v529 = vor.u32 4788187, %v528
      %v530 = vand.u32 2147483647, %v529
      %v532 = vcvt.s32.f32 %v525
      %v533 = vmul.f32 %v532, %v530
      %v534 = vxor.u32 %v533, 2147483648
      %v535 = vsel %vm452, %v534, %v533
      %v536 = vsub.s32 4, %v512
      %v537 = vsel %vm452, %v536, %v512
      %v538 = vsel %vm451, %v417, %v535
      %v539 = vsel %vm451, 0, %v537
      %v540 = vcosq.f32.pop %v538
      %v541 = vsinq.f32.pop %v538
      %vm542 = vweird.f32 %v417
      %v543 = vand.u32 %v539, 3
      %vm544 = vcmp.lt.s32.totalorder %v543, 2
      %vm545 = vcmp.eq.s32.totalorder %v543, 0
      %v546 = vxor.u32 %v541, 2147483648
      %v547 = vsel %vm545, %v540, %v546
      %vm548 = vcmp.eq.s32.totalorder %v543, 2
      %v549 = vxor.u32 %v540, 2147483648
      %v550 = vsel %vm548, %v549, %v541
      %v551 = vsel %vm544, %v547, %v550
      %v552 = vsel %vm542, nan, %v551
      %v553 = vand.u32 2147483647, %v418
      %vm554 = vcmp.le.f32.partialorder %v553, 0.7853982
      %vm555 = vcmp.lt.s32.totalorder %v418, 0
      %v556 = vand.u32 %v418, 2139095040
      %v557 = vshrl.u32 %v556, 23
      %v558 = vsub.s32 %v557, 127
      %v559 = vand.u32 2147483647, %v418
      %v560 = vand.u32 %v559, 8388607
      %v561 = vor.u32 %v560, 8388608
      %v562 = vsub.s32 0, %v561
      %v563 = vadd.s32 %v558, 1
      %vm564 = vcmp.gt.s32.totalorder %v563, 0
      %v565 = vsel %vm564, %v563, 0
      %v566 = vshrl.u32 %v565, 5
      %v567 = vand.u32 %v565, 31
      %v568 = vsub.s32 32, %v567
      %v569 = vshrl.u32 683565275, %v568
      %v570 = vshll.u32 683565275, %v567
      %v571 = vshrl.u32 2475754826, %v568
      %v572 = vor.u32 %v570, %v571
      %v573 = vshll.u32 2475754826, %v567
      %v574 = vshrl.u32 2131351028, %v568
      %v575 = vor.u32 %v573, %v574
      %v576 = vshll.u32 2131351028, %v567
      %v577 = vshrl.u32 2102212464, %v568
      %v578 = vor.u32 %v576, %v577
      %v579 = vshll.u32 2102212464, %v567
      %v580 = vshrl.u32 920167782, %v568
      %v581 = vor.u32 %v579, %v580
      %v582 = vshll.u32 920167782, %v567
      %v583 = vshrl.u32 1326507024, %v568
      %v584 = vor.u32 %v582, %v583
      %vm585 = vcmp.lt.s32.totalorder %v566, 1
      %vm586 = vcmp.lt.s32.totalorder %v566, 2
      %vm587 = vcmp.lt.s32.totalorder %v566, 3
      %vm588 = vcmp.lt.s32.totalorder %v566, 4
      %v589 = vsel %vm585, %v569, %v572
      %v590 = vsel %vm588, %v578, 2102212464
      %v591 = vsel %vm587, %v575, %v590
      %v592 = vsel %vm586, %v589, %v591
      %v593 = vsel %vm585, %v572, %v575
      %v594 = vsel %vm588, %v581, 920167782
      %v595 = vsel %vm587, %v578, %v594
      %v596 = vsel %vm586, %v593, %v595
      %v597 = vsel %vm585, %v575, %v578
      %v598 = vsel %vm588, %v584, 1326507024
      %v599 = vsel %vm587, %v581, %v598
      %v600 = vsel %vm586, %v597, %v599
      %v601 = vshll.u32 %v561, 8
      %v602 = vmul.u32.u64.compose %v601, %v600
      %v603 = vextract.low.u32 %v602
      %v604 = vextract.high.u32 %v602
      %v605 = vmul.u32.u64.compose %v601, %v596
      %v606 = vextract.low.u32 %v605
      %v607 = vextract.high.u32 %v605
      %v608 = vmul.u32 %v601, %v592
      %v609 = vadd.s32 %v604, %v606
      %vm610 = vc.u32 %v604, %v606
      %v611 = vadd.s32 %v607, 1
      %v612 = vsel %vm610, %v611, %v607
      %v613 = vadd.s32 %v608, %v612
      %v614 = vadd.s32 %v613, 536870912
      %v615 = vshrl.u32 %v614, 30
      %v616 = vshll.u32 %v615, 30
      %v617 = vsub.s32 %v613, %v616
      %vm618 = vcmp.lt.s32.totalorder %v617, 0
      %v619 = vsub.s32 0, %v617
      %v620 = vsel %vm618, %v619, %v617
      %v621 = vclz %v620
      %v622 = vsub.s32 %v621, 2
      %vm623 = vcmp.gt.s32.totalorder 0, %v622
      %v624 = vsel %vm623, 0, %v622
      %v625 = vsub.s32 32, %v624
      %v626 = vshll.u32 %v617, %v624
      %v627 = vshrl.u32 %v609, %v625
      %v628 = vor.u32 %v626, %v627
      %v629 = vsub.s32 4294967266, %v624
      %v630 = vadd.s32 %v629, 127
      %v631 = vshll.u32 %v630, 23
      %v632 = vor.u32 4788187, %v631
      %v633 = vand.u32 2147483647, %v632
      %v635 = vcvt.s32.f32 %v628
      %v636 = vmul.f32 %v635, %v633
      %v637 = vxor.u32 %v636, 2147483648
      %v638 = vsel %vm555, %v637, %v636
      %v639 = vsub.s32 4, %v615
      %v640 = vsel %vm555, %v639, %v615
      %v641 = vsel %vm554, %v418, %v638
      %v642 = vsel %vm554, 0, %v640
      %v643 = vcosq.f32.pop %v641
      %v644 = vsinq.f32.pop %v641
      %vm645 = vweird.f32 %v418
      %v646 = vand.u32 %v642, 3
      %vm647 = vcmp.lt.s32.totalorder %v646, 2
      %vm648 = vcmp.eq.s32.totalorder %v646, 0
      %v649 = vxor.u32 %v644, 2147483648
      %v650 = vsel %vm648, %v643, %v649
      %vm651 = vcmp.eq.s32.totalorder %v646, 2
      %v652 = vxor.u32 %v643, 2147483648
      %v653 = vsel %vm651, %v652, %v644
      %v654 = vsel %vm647, %v650, %v653
      %v655 = vsel %vm645, nan, %v654
      %v656 = vand.u32 2147483647, %v419
      %vm657 = vcmp.le.f32.partialorder %v656, 0.7853982
      %vm658 = vcmp.lt.s32.totalorder %v419, 0
      %v659 = vand.u32 %v419, 2139095040
      %v660 = vshrl.u32 %v659, 23
      %v661 = vsub.s32 %v660, 127
      %v662 = vand.u32 2147483647, %v419
      %v663 = vand.u32 %v662, 8388607
      %v664 = vor.u32 %v663, 8388608
      %v665 = vsub.s32 0, %v664
      %v666 = vadd.s32 %v661, 1
      %vm667 = vcmp.gt.s32.totalorder %v666, 0
      %v668 = vsel %vm667, %v666, 0
      %v669 = vshrl.u32 %v668, 5
      %v670 = vand.u32 %v668, 31
      %v671 = vsub.s32 32, %v670
      %v672 = vshrl.u32 683565275, %v671
      %v673 = vshll.u32 683565275, %v670
      %v674 = vshrl.u32 2475754826, %v671
      %v675 = vor.u32 %v673, %v674
      %v676 = vshll.u32 2475754826, %v670
      %v677 = vshrl.u32 2131351028, %v671
      %v678 = vor.u32 %v676, %v677
      %v679 = vshll.u32 2131351028, %v670
      %v680 = vshrl.u32 2102212464, %v671
      %v681 = vor.u32 %v679, %v680
      %v682 = vshll.u32 2102212464, %v670
      %v683 = vshrl.u32 920167782, %v671
      %v684 = vor.u32 %v682, %v683
      %v685 = vshll.u32 920167782, %v670
      %v686 = vshrl.u32 1326507024, %v671
      %v687 = vor.u32 %v685, %v686
      %vm688 = vcmp.lt.s32.totalorder %v669, 1
      %vm689 = vcmp.lt.s32.totalorder %v669, 2
      %vm690 = vcmp.lt.s32.totalorder %v669, 3
      %vm691 = vcmp.lt.s32.totalorder %v669, 4
      %v692 = vsel %vm688, %v672, %v675
      %v693 = vsel %vm691, %v681, 2102212464
      %v694 = vsel %vm690, %v678, %v693
      %v695 = vsel %vm689, %v692, %v694
      %v696 = vsel %vm688, %v675, %v678
      %v697 = vsel %vm691, %v684, 920167782
      %v698 = vsel %vm690, %v681, %v697
      %v699 = vsel %vm689, %v696, %v698
      %v700 = vsel %vm688, %v678, %v681
      %v701 = vsel %vm691, %v687, 1326507024
      %v702 = vsel %vm690, %v684, %v701
      %v703 = vsel %vm689, %v700, %v702
      %v704 = vshll.u32 %v664, 8
      %v705 = vmul.u32.u64.compose %v704, %v703
      %v706 = vextract.low.u32 %v705
      %v707 = vextract.high.u32 %v705
      %v708 = vmul.u32.u64.compose %v704, %v699
      %v709 = vextract.low.u32 %v708
      %v710 = vextract.high.u32 %v708
      %v711 = vmul.u32 %v704, %v695
      %v712 = vadd.s32 %v707, %v709
      %vm713 = vc.u32 %v707, %v709
      %v714 = vadd.s32 %v710, 1
      %v715 = vsel %vm713, %v714, %v710
      %v716 = vadd.s32 %v711, %v715
      %v717 = vadd.s32 %v716, 536870912
      %v718 = vshrl.u32 %v717, 30
      %v719 = vshll.u32 %v718, 30
      %v720 = vsub.s32 %v716, %v719
      %vm721 = vcmp.lt.s32.totalorder %v720, 0
      %v722 = vsub.s32 0, %v720
      %v723 = vsel %vm721, %v722, %v720
      %v724 = vclz %v723
      %v725 = vsub.s32 %v724, 2
      %vm726 = vcmp.gt.s32.totalorder 0, %v725
      %v727 = vsel %vm726, 0, %v725
      %v728 = vsub.s32 32, %v727
      %v729 = vshll.u32 %v720, %v727
      %v730 = vshrl.u32 %v712, %v728
      %v731 = vor.u32 %v729, %v730
      %v732 = vsub.s32 4294967266, %v727
      %v733 = vadd.s32 %v732, 127
      %v734 = vshll.u32 %v733, 23
      %v735 = vor.u32 4788187, %v734
      %v736 = vand.u32 2147483647, %v735
      %v738 = vcvt.s32.f32 %v731
      %v739 = vmul.f32 %v738, %v736
      %v740 = vxor.u32 %v739, 2147483648
      %v741 = vsel %vm658, %v740, %v739
      %v742 = vsub.s32 4, %v718
      %v743 = vsel %vm658, %v742, %v718
      %v744 = vsel %vm657, %v419, %v741
      %v745 = vsel %vm657, 0, %v743
      %v746 = vcosq.f32.pop %v744
      %v747 = vsinq.f32.pop %v744
      %vm748 = vweird.f32 %v419
      %v749 = vand.u32 %v745, 3
      %vm750 = vcmp.lt.s32.totalorder %v749, 2
      %vm751 = vcmp.eq.s32.totalorder %v749, 0
      %v752 = vxor.u32 %v747, 2147483648
      %v753 = vsel %vm751, %v746, %v752
      %vm754 = vcmp.eq.s32.totalorder %v749, 2
      %v755 = vxor.u32 %v746, 2147483648
      %v756 = vsel %vm754, %v755, %v747
      %v757 = vsel %vm750, %v753, %v756
      %v758 = vsel %vm748, nan, %v757
      %v759 = vand.u32 2147483647, %v420
      %vm760 = vcmp.le.f32.partialorder %v759, 0.7853982
      %vm761 = vcmp.lt.s32.totalorder %v420, 0
      %v762 = vand.u32 %v420, 2139095040
      %v763 = vshrl.u32 %v762, 23
      %v764 = vsub.s32 %v763, 127
      %v765 = vand.u32 2147483647, %v420
      %v766 = vand.u32 %v765, 8388607
      %v767 = vor.u32 %v766, 8388608
      %v768 = vsub.s32 0, %v767
      %v769 = vadd.s32 %v764, 1
      %vm770 = vcmp.gt.s32.totalorder %v769, 0
      %v771 = vsel %vm770, %v769, 0
      %v772 = vshrl.u32 %v771, 5
      %v773 = vand.u32 %v771, 31
      %v774 = vsub.s32 32, %v773
      %v775 = vshrl.u32 683565275, %v774
      %v776 = vshll.u32 683565275, %v773
      %v777 = vshrl.u32 2475754826, %v774
      %v778 = vor.u32 %v776, %v777
      %v779 = vshll.u32 2475754826, %v773
      %v780 = vshrl.u32 2131351028, %v774
      %v781 = vor.u32 %v779, %v780
      %v782 = vshll.u32 2131351028, %v773
      %v783 = vshrl.u32 2102212464, %v774
      %v784 = vor.u32 %v782, %v783
      %v785 = vshll.u32 2102212464, %v773
      %v786 = vshrl.u32 920167782, %v774
      %v787 = vor.u32 %v785, %v786
      %v788 = vshll.u32 920167782, %v773
      %v789 = vshrl.u32 1326507024, %v774
      %v790 = vor.u32 %v788, %v789
      %vm791 = vcmp.lt.s32.totalorder %v772, 1
      %vm792 = vcmp.lt.s32.totalorder %v772, 2
      %vm793 = vcmp.lt.s32.totalorder %v772, 3
      %vm794 = vcmp.lt.s32.totalorder %v772, 4
      %v795 = vsel %vm791, %v775, %v778
      %v796 = vsel %vm794, %v784, 2102212464
      %v797 = vsel %vm793, %v781, %v796
      %v798 = vsel %vm792, %v795, %v797
      %v799 = vsel %vm791, %v778, %v781
      %v800 = vsel %vm794, %v787, 920167782
      %v801 = vsel %vm793, %v784, %v800
      %v802 = vsel %vm792, %v799, %v801
      %v803 = vsel %vm791, %v781, %v784
      %v804 = vsel %vm794, %v790, 1326507024
      %v805 = vsel %vm793, %v787, %v804
      %v806 = vsel %vm792, %v803, %v805
      %v807 = vshll.u32 %v767, 8
      %v808 = vmul.u32.u64.compose %v807, %v806
      %v809 = vextract.low.u32 %v808
      %v810 = vextract.high.u32 %v808
      %v811 = vmul.u32.u64.compose %v807, %v802
      %v812 = vextract.low.u32 %v811
      %v813 = vextract.high.u32 %v811
      %v814 = vmul.u32 %v807, %v798
      %v815 = vadd.s32 %v810, %v812
      %vm816 = vc.u32 %v810, %v812
      %v817 = vadd.s32 %v813, 1
      %v818 = vsel %vm816, %v817, %v813
      %v819 = vadd.s32 %v814, %v818
      %v820 = vadd.s32 %v819, 536870912
      %v821 = vshrl.u32 %v820, 30
      %v822 = vshll.u32 %v821, 30
      %v823 = vsub.s32 %v819, %v822
      %vm824 = vcmp.lt.s32.totalorder %v823, 0
      %v825 = vsub.s32 0, %v823
      %v826 = vsel %vm824, %v825, %v823
      %v827 = vclz %v826
      %v828 = vsub.s32 %v827, 2
      %vm829 = vcmp.gt.s32.totalorder 0, %v828
      %v830 = vsel %vm829, 0, %v828
      %v831 = vsub.s32 32, %v830
      %v832 = vshll.u32 %v823, %v830
      %v833 = vshrl.u32 %v815, %v831
      %v834 = vor.u32 %v832, %v833
      %v835 = vsub.s32 4294967266, %v830
      %v836 = vadd.s32 %v835, 127
      %v837 = vshll.u32 %v836, 23
      %v838 = vor.u32 4788187, %v837
      %v839 = vand.u32 2147483647, %v838
      %v841 = vcvt.s32.f32 %v834
      %v842 = vmul.f32 %v841, %v839
      %v843 = vxor.u32 %v842, 2147483648
      %v844 = vsel %vm761, %v843, %v842
      %v845 = vsub.s32 4, %v821
      %v846 = vsel %vm761, %v845, %v821
      %v847 = vsel %vm760, %v420, %v844
      %v848 = vsel %vm760, 0, %v846
      %v849 = vcosq.f32.pop %v847
      %v850 = vsinq.f32.pop %v847
      %vm851 = vweird.f32 %v420
      %v852 = vand.u32 %v848, 3
      %vm853 = vcmp.lt.s32.totalorder %v852, 2
      %vm854 = vcmp.eq.s32.totalorder %v852, 0
      %v855 = vxor.u32 %v850, 2147483648
      %v856 = vsel %vm854, %v849, %v855
      %vm857 = vcmp.eq.s32.totalorder %v852, 2
      %v858 = vxor.u32 %v849, 2147483648
      %v859 = vsel %vm857, %v858, %v850
      %v860 = vsel %vm853, %v856, %v859
      %v861 = vsel %vm851, nan, %v860
      %v862 = vand.u32 2147483647, %v421
      %vm863 = vcmp.le.f32.partialorder %v862, 0.7853982
      %vm864 = vcmp.lt.s32.totalorder %v421, 0
      %v865 = vand.u32 %v421, 2139095040
      %v866 = vshrl.u32 %v865, 23
      %v867 = vsub.s32 %v866, 127
      %v868 = vand.u32 2147483647, %v421
      %v869 = vand.u32 %v868, 8388607
      %v870 = vor.u32 %v869, 8388608
      %v871 = vsub.s32 0, %v870
      %v872 = vadd.s32 %v867, 1
      %vm873 = vcmp.gt.s32.totalorder %v872, 0
      %v874 = vsel %vm873, %v872, 0
      %v875 = vshrl.u32 %v874, 5
      %v876 = vand.u32 %v874, 31
      %v877 = vsub.s32 32, %v876
      %v878 = vshrl.u32 683565275, %v877
      %v879 = vshll.u32 683565275, %v876
      %v880 = vshrl.u32 2475754826, %v877
      %v881 = vor.u32 %v879, %v880
      %v882 = vshll.u32 2475754826, %v876
      %v883 = vshrl.u32 2131351028, %v877
      %v884 = vor.u32 %v882, %v883
      %v885 = vshll.u32 2131351028, %v876
      %v886 = vshrl.u32 2102212464, %v877
      %v887 = vor.u32 %v885, %v886
      %v888 = vshll.u32 2102212464, %v876
      %v889 = vshrl.u32 920167782, %v877
      %v890 = vor.u32 %v888, %v889
      %v891 = vshll.u32 920167782, %v876
      %v892 = vshrl.u32 1326507024, %v877
      %v893 = vor.u32 %v891, %v892
      %vm894 = vcmp.lt.s32.totalorder %v875, 1
      %vm895 = vcmp.lt.s32.totalorder %v875, 2
      %vm896 = vcmp.lt.s32.totalorder %v875, 3
      %vm897 = vcmp.lt.s32.totalorder %v875, 4
      %v898 = vsel %vm894, %v878, %v881
      %v899 = vsel %vm897, %v887, 2102212464
      %v900 = vsel %vm896, %v884, %v899
      %v901 = vsel %vm895, %v898, %v900
      %v902 = vsel %vm894, %v881, %v884
      %v903 = vsel %vm897, %v890, 920167782
      %v904 = vsel %vm896, %v887, %v903
      %v905 = vsel %vm895, %v902, %v904
      %v906 = vsel %vm894, %v884, %v887
      %v907 = vsel %vm897, %v893, 1326507024
      %v908 = vsel %vm896, %v890, %v907
      %v909 = vsel %vm895, %v906, %v908
      %v910 = vshll.u32 %v870, 8
      %v911 = vmul.u32.u64.compose %v910, %v909
      %v912 = vextract.low.u32 %v911
      %v913 = vextract.high.u32 %v911
      %v914 = vmul.u32.u64.compose %v910, %v905
      %v915 = vextract.low.u32 %v914
      %v916 = vextract.high.u32 %v914
      %v917 = vmul.u32 %v910, %v901
      %v918 = vadd.s32 %v913, %v915
      %vm919 = vc.u32 %v913, %v915
      %v920 = vadd.s32 %v916, 1
      %v921 = vsel %vm919, %v920, %v916
      %v922 = vadd.s32 %v917, %v921
      %v923 = vadd.s32 %v922, 536870912
      %v924 = vshrl.u32 %v923, 30
      %v925 = vshll.u32 %v924, 30
      %v926 = vsub.s32 %v922, %v925
      %vm927 = vcmp.lt.s32.totalorder %v926, 0
      %v928 = vsub.s32 0, %v926
      %v929 = vsel %vm927, %v928, %v926
      %v930 = vclz %v929
      %v931 = vsub.s32 %v930, 2
      %vm932 = vcmp.gt.s32.totalorder 0, %v931
      %v933 = vsel %vm932, 0, %v931
      %v934 = vsub.s32 32, %v933
      %v935 = vshll.u32 %v926, %v933
      %v936 = vshrl.u32 %v918, %v934
      %v937 = vor.u32 %v935, %v936
      %v938 = vsub.s32 4294967266, %v933
      %v939 = vadd.s32 %v938, 127
      %v940 = vshll.u32 %v939, 23
      %v941 = vor.u32 4788187, %v940
      %v942 = vand.u32 2147483647, %v941
      %v944 = vcvt.s32.f32 %v937
      %v945 = vmul.f32 %v944, %v942
      %v946 = vxor.u32 %v945, 2147483648
      %v947 = vsel %vm864, %v946, %v945
      %v948 = vsub.s32 4, %v924
      %v949 = vsel %vm864, %v948, %v924
      %v950 = vsel %vm863, %v421, %v947
      %v951 = vsel %vm863, 0, %v949
      %v952 = vcosq.f32.pop %v950
      %v953 = vsinq.f32.pop %v950
      %vm954 = vweird.f32 %v421
      %v955 = vand.u32 %v951, 3
      %vm956 = vcmp.lt.s32.totalorder %v955, 2
      %vm957 = vcmp.eq.s32.totalorder %v955, 0
      %v958 = vxor.u32 %v953, 2147483648
      %v959 = vsel %vm957, %v952, %v958
      %vm960 = vcmp.eq.s32.totalorder %v955, 2
      %v961 = vxor.u32 %v952, 2147483648
      %v962 = vsel %vm960, %v961, %v953
      %v963 = vsel %vm956, %v959, %v962
      %v964 = vsel %vm954, nan, %v963
      %v965 = vand.u32 2147483647, %v422
      %vm966 = vcmp.le.f32.partialorder %v965, 0.7853982
      %vm967 = vcmp.lt.s32.totalorder %v422, 0
      %v968 = vand.u32 %v422, 2139095040
      %v969 = vshrl.u32 %v968, 23
      %v970 = vsub.s32 %v969, 127
      %v971 = vand.u32 2147483647, %v422
      %v972 = vand.u32 %v971, 8388607
      %v973 = vor.u32 %v972, 8388608
      %v974 = vsub.s32 0, %v973
      %v975 = vadd.s32 %v970, 1
      %vm976 = vcmp.gt.s32.totalorder %v975, 0
      %v977 = vsel %vm976, %v975, 0
      %v978 = vshrl.u32 %v977, 5
      %v979 = vand.u32 %v977, 31
      %v980 = vsub.s32 32, %v979
      %v981 = vshrl.u32 683565275, %v980
      %v982 = vshll.u32 683565275, %v979
      %v983 = vshrl.u32 2475754826, %v980
      %v984 = vor.u32 %v982, %v983
      %v985 = vshll.u32 2475754826, %v979
      %v986 = vshrl.u32 2131351028, %v980
      %v987 = vor.u32 %v985, %v986
      %v988 = vshll.u32 2131351028, %v979
      %v989 = vshrl.u32 2102212464, %v980
      %v990 = vor.u32 %v988, %v989
      %v991 = vshll.u32 2102212464, %v979
      %v992 = vshrl.u32 920167782, %v980
      %v993 = vor.u32 %v991, %v992
      %v994 = vshll.u32 920167782, %v979
      %v995 = vshrl.u32 1326507024, %v980
      %v996 = vor.u32 %v994, %v995
      %vm997 = vcmp.lt.s32.totalorder %v978, 1
      %vm998 = vcmp.lt.s32.totalorder %v978, 2
      %vm999 = vcmp.lt.s32.totalorder %v978, 3
      %vm1000 = vcmp.lt.s32.totalorder %v978, 4
      %v1001 = vsel %vm997, %v981, %v984
      %v1002 = vsel %vm1000, %v990, 2102212464
      %v1003 = vsel %vm999, %v987, %v1002
      %v1004 = vsel %vm998, %v1001, %v1003
      %v1005 = vsel %vm997, %v984, %v987
      %v1006 = vsel %vm1000, %v993, 920167782
      %v1007 = vsel %vm999, %v990, %v1006
      %v1008 = vsel %vm998, %v1005, %v1007
      %v1009 = vsel %vm997, %v987, %v990
      %v1010 = vsel %vm1000, %v996, 1326507024
      %v1011 = vsel %vm999, %v993, %v1010
      %v1012 = vsel %vm998, %v1009, %v1011
      %v1013 = vshll.u32 %v973, 8
      %v1014 = vmul.u32.u64.compose %v1013, %v1012
      %v1015 = vextract.low.u32 %v1014
      %v1016 = vextract.high.u32 %v1014
      %v1017 = vmul.u32.u64.compose %v1013, %v1008
      %v1018 = vextract.low.u32 %v1017
      %v1019 = vextract.high.u32 %v1017
      %v1020 = vmul.u32 %v1013, %v1004
      %v1021 = vadd.s32 %v1016, %v1018
      %vm1022 = vc.u32 %v1016, %v1018
      %v1023 = vadd.s32 %v1019, 1
      %v1024 = vsel %vm1022, %v1023, %v1019
      %v1025 = vadd.s32 %v1020, %v1024
      %v1026 = vadd.s32 %v1025, 536870912
      %v1027 = vshrl.u32 %v1026, 30
      %v1028 = vshll.u32 %v1027, 30
      %v1029 = vsub.s32 %v1025, %v1028
      %vm1030 = vcmp.lt.s32.totalorder %v1029, 0
      %v1031 = vsub.s32 0, %v1029
      %v1032 = vsel %vm1030, %v1031, %v1029
      %v1033 = vclz %v1032
      %v1034 = vsub.s32 %v1033, 2
      %vm1035 = vcmp.gt.s32.totalorder 0, %v1034
      %v1036 = vsel %vm1035, 0, %v1034
      %v1037 = vsub.s32 32, %v1036
      %v1038 = vshll.u32 %v1029, %v1036
      %v1039 = vshrl.u32 %v1021, %v1037
      %v1040 = vor.u32 %v1038, %v1039
      %v1041 = vsub.s32 4294967266, %v1036
      %v1042 = vadd.s32 %v1041, 127
      %v1043 = vshll.u32 %v1042, 23
      %v1044 = vor.u32 4788187, %v1043
      %v1045 = vand.u32 2147483647, %v1044
      %v1047 = vcvt.s32.f32 %v1040
      %v1048 = vmul.f32 %v1047, %v1045
      %v1049 = vxor.u32 %v1048, 2147483648
      %v1050 = vsel %vm967, %v1049, %v1048
      %v1051 = vsub.s32 4, %v1027
      %v1052 = vsel %vm967, %v1051, %v1027
      %v1053 = vsel %vm966, %v422, %v1050
      %v1054 = vsel %vm966, 0, %v1052
      %v1055 = vcosq.f32.pop %v1053
      %v1056 = vsinq.f32.pop %v1053
      %vm1057 = vweird.f32 %v422
      %v1058 = vand.u32 %v1054, 3
      %vm1059 = vcmp.lt.s32.totalorder %v1058, 2
      %vm1060 = vcmp.eq.s32.totalorder %v1058, 0
      %v1061 = vxor.u32 %v1056, 2147483648
      %v1062 = vsel %vm1060, %v1055, %v1061
      %vm1063 = vcmp.eq.s32.totalorder %v1058, 2
      %v1064 = vxor.u32 %v1055, 2147483648
      %v1065 = vsel %vm1063, %v1064, %v1056
      %v1066 = vsel %vm1059, %v1062, %v1065
      %v1067 = vsel %vm1057, nan, %v1066
      %v1068 = vand.u32 2147483647, %v423
      %vm1069 = vcmp.le.f32.partialorder %v1068, 0.7853982
      %vm1070 = vcmp.lt.s32.totalorder %v423, 0
      %v1071 = vand.u32 %v423, 2139095040
      %v1072 = vshrl.u32 %v1071, 23
      %v1073 = vsub.s32 %v1072, 127
      %v1074 = vand.u32 2147483647, %v423
      %v1075 = vand.u32 %v1074, 8388607
      %v1076 = vor.u32 %v1075, 8388608
      %v1077 = vsub.s32 0, %v1076
      %v1078 = vadd.s32 %v1073, 1
      %vm1079 = vcmp.gt.s32.totalorder %v1078, 0
      %v1080 = vsel %vm1079, %v1078, 0
      %v1081 = vshrl.u32 %v1080, 5
      %v1082 = vand.u32 %v1080, 31
      %v1083 = vsub.s32 32, %v1082
      %v1084 = vshrl.u32 683565275, %v1083
      %v1085 = vshll.u32 683565275, %v1082
      %v1086 = vshrl.u32 2475754826, %v1083
      %v1087 = vor.u32 %v1085, %v1086
      %v1088 = vshll.u32 2475754826, %v1082
      %v1089 = vshrl.u32 2131351028, %v1083
      %v1090 = vor.u32 %v1088, %v1089
      %v1091 = vshll.u32 2131351028, %v1082
      %v1092 = vshrl.u32 2102212464, %v1083
      %v1093 = vor.u32 %v1091, %v1092
      %v1094 = vshll.u32 2102212464, %v1082
      %v1095 = vshrl.u32 920167782, %v1083
      %v1096 = vor.u32 %v1094, %v1095
      %v1097 = vshll.u32 920167782, %v1082
      %v1098 = vshrl.u32 1326507024, %v1083
      %v1099 = vor.u32 %v1097, %v1098
      %vm1100 = vcmp.lt.s32.totalorder %v1081, 1
      %vm1101 = vcmp.lt.s32.totalorder %v1081, 2
      %vm1102 = vcmp.lt.s32.totalorder %v1081, 3
      %vm1103 = vcmp.lt.s32.totalorder %v1081, 4
      %v1104 = vsel %vm1100, %v1084, %v1087
      %v1105 = vsel %vm1103, %v1093, 2102212464
      %v1106 = vsel %vm1102, %v1090, %v1105
      %v1107 = vsel %vm1101, %v1104, %v1106
      %v1108 = vsel %vm1100, %v1087, %v1090
      %v1109 = vsel %vm1103, %v1096, 920167782
      %v1110 = vsel %vm1102, %v1093, %v1109
      %v1111 = vsel %vm1101, %v1108, %v1110
      %v1112 = vsel %vm1100, %v1090, %v1093
      %v1113 = vsel %vm1103, %v1099, 1326507024
      %v1114 = vsel %vm1102, %v1096, %v1113
      %v1115 = vsel %vm1101, %v1112, %v1114
      %v1116 = vshll.u32 %v1076, 8
      %v1117 = vmul.u32.u64.compose %v1116, %v1115
      %v1118 = vextract.low.u32 %v1117
      %v1119 = vextract.high.u32 %v1117
      %v1120 = vmul.u32.u64.compose %v1116, %v1111
      %v1121 = vextract.low.u32 %v1120
      %v1122 = vextract.high.u32 %v1120
      %v1123 = vmul.u32 %v1116, %v1107
      %v1124 = vadd.s32 %v1119, %v1121
      %vm1125 = vc.u32 %v1119, %v1121
      %v1126 = vadd.s32 %v1122, 1
      %v1127 = vsel %vm1125, %v1126, %v1122
      %v1128 = vadd.s32 %v1123, %v1127
      %v1129 = vadd.s32 %v1128, 536870912
      %v1130 = vshrl.u32 %v1129, 30
      %v1131 = vshll.u32 %v1130, 30
      %v1132 = vsub.s32 %v1128, %v1131
      %vm1133 = vcmp.lt.s32.totalorder %v1132, 0
      %v1134 = vsub.s32 0, %v1132
      %v1135 = vsel %vm1133, %v1134, %v1132
      %v1136 = vclz %v1135
      %v1137 = vsub.s32 %v1136, 2
      %vm1138 = vcmp.gt.s32.totalorder 0, %v1137
      %v1139 = vsel %vm1138, 0, %v1137
      %v1140 = vsub.s32 32, %v1139
      %v1141 = vshll.u32 %v1132, %v1139
      %v1142 = vshrl.u32 %v1124, %v1140
      %v1143 = vor.u32 %v1141, %v1142
      %v1144 = vsub.s32 4294967266, %v1139
      %v1145 = vadd.s32 %v1144, 127
      %v1146 = vshll.u32 %v1145, 23
      %v1147 = vor.u32 4788187, %v1146
      %v1148 = vand.u32 2147483647, %v1147
      %v1150 = vcvt.s32.f32 %v1143
      %v1151 = vmul.f32 %v1150, %v1148
      %v1152 = vxor.u32 %v1151, 2147483648
      %v1153 = vsel %vm1070, %v1152, %v1151
      %v1154 = vsub.s32 4, %v1130
      %v1155 = vsel %vm1070, %v1154, %v1130
      %v1156 = vsel %vm1069, %v423, %v1153
      %v1157 = vsel %vm1069, 0, %v1155
      %v1158 = vcosq.f32.pop %v1156
      %v1159 = vsinq.f32.pop %v1156
      %vm1160 = vweird.f32 %v423
      %v1161 = vand.u32 %v1157, 3
      %vm1162 = vcmp.lt.s32.totalorder %v1161, 2
      %vm1163 = vcmp.eq.s32.totalorder %v1161, 0
      %v1164 = vxor.u32 %v1159, 2147483648
      %v1165 = vsel %vm1163, %v1158, %v1164
      %vm1166 = vcmp.eq.s32.totalorder %v1161, 2
      %v1167 = vxor.u32 %v1158, 2147483648
      %v1168 = vsel %vm1166, %v1167, %v1159
      %v1169 = vsel %vm1162, %v1165, %v1168
      %v1170 = vsel %vm1160, nan, %v1169
      %v1171 = vand.u32 2147483647, %v424
      %vm1172 = vcmp.le.f32.partialorder %v1171, 0.7853982
      %vm1173 = vcmp.lt.s32.totalorder %v424, 0
      %v1174 = vand.u32 %v424, 2139095040
      %v1175 = vshrl.u32 %v1174, 23
      %v1176 = vsub.s32 %v1175, 127
      %v1177 = vand.u32 2147483647, %v424
      %v1178 = vand.u32 %v1177, 8388607
      %v1179 = vor.u32 %v1178, 8388608
      %v1180 = vsub.s32 0, %v1179
      %v1181 = vadd.s32 %v1176, 1
      %vm1182 = vcmp.gt.s32.totalorder %v1181, 0
      %v1183 = vsel %vm1182, %v1181, 0
      %v1184 = vshrl.u32 %v1183, 5
      %v1185 = vand.u32 %v1183, 31
      %v1186 = vsub.s32 32, %v1185
      %v1187 = vshrl.u32 683565275, %v1186
      %v1188 = vshll.u32 683565275, %v1185
      %v1189 = vshrl.u32 2475754826, %v1186
      %v1190 = vor.u32 %v1188, %v1189
      %v1191 = vshll.u32 2475754826, %v1185
      %v1192 = vshrl.u32 2131351028, %v1186
      %v1193 = vor.u32 %v1191, %v1192
      %v1194 = vshll.u32 2131351028, %v1185
      %v1195 = vshrl.u32 2102212464, %v1186
      %v1196 = vor.u32 %v1194, %v1195
      %v1197 = vshll.u32 2102212464, %v1185
      %v1198 = vshrl.u32 920167782, %v1186
      %v1199 = vor.u32 %v1197, %v1198
      %v1200 = vshll.u32 920167782, %v1185
      %v1201 = vshrl.u32 1326507024, %v1186
      %v1202 = vor.u32 %v1200, %v1201
      %vm1203 = vcmp.lt.s32.totalorder %v1184, 1
      %vm1204 = vcmp.lt.s32.totalorder %v1184, 2
      %vm1205 = vcmp.lt.s32.totalorder %v1184, 3
      %vm1206 = vcmp.lt.s32.totalorder %v1184, 4
      %v1207 = vsel %vm1203, %v1187, %v1190
      %v1208 = vsel %vm1206, %v1196, 2102212464
      %v1209 = vsel %vm1205, %v1193, %v1208
      %v1210 = vsel %vm1204, %v1207, %v1209
      %v1211 = vsel %vm1203, %v1190, %v1193
      %v1212 = vsel %vm1206, %v1199, 920167782
      %v1213 = vsel %vm1205, %v1196, %v1212
      %v1214 = vsel %vm1204, %v1211, %v1213
      %v1215 = vsel %vm1203, %v1193, %v1196
      %v1216 = vsel %vm1206, %v1202, 1326507024
      %v1217 = vsel %vm1205, %v1199, %v1216
      %v1218 = vsel %vm1204, %v1215, %v1217
      %v1219 = vshll.u32 %v1179, 8
      %v1220 = vmul.u32.u64.compose %v1219, %v1218
      %v1221 = vextract.low.u32 %v1220
      %v1222 = vextract.high.u32 %v1220
      %v1223 = vmul.u32.u64.compose %v1219, %v1214
      %v1224 = vextract.low.u32 %v1223
      %v1225 = vextract.high.u32 %v1223
      %v1226 = vmul.u32 %v1219, %v1210
      %v1227 = vadd.s32 %v1222, %v1224
      %vm1228 = vc.u32 %v1222, %v1224
      %v1229 = vadd.s32 %v1225, 1
      %v1230 = vsel %vm1228, %v1229, %v1225
      %v1231 = vadd.s32 %v1226, %v1230
      %v1232 = vadd.s32 %v1231, 536870912
      %v1233 = vshrl.u32 %v1232, 30
      %v1234 = vshll.u32 %v1233, 30
      %v1235 = vsub.s32 %v1231, %v1234
      %vm1236 = vcmp.lt.s32.totalorder %v1235, 0
      %v1237 = vsub.s32 0, %v1235
      %v1238 = vsel %vm1236, %v1237, %v1235
      %v1239 = vclz %v1238
      %v1240 = vsub.s32 %v1239, 2
      %vm1241 = vcmp.gt.s32.totalorder 0, %v1240
      %v1242 = vsel %vm1241, 0, %v1240
      %v1243 = vsub.s32 32, %v1242
      %v1244 = vshll.u32 %v1235, %v1242
      %v1245 = vshrl.u32 %v1227, %v1243
      %v1246 = vor.u32 %v1244, %v1245
      %v1247 = vsub.s32 4294967266, %v1242
      %v1248 = vadd.s32 %v1247, 127
      %v1249 = vshll.u32 %v1248, 23
      %v1250 = vor.u32 4788187, %v1249
      %v1251 = vand.u32 2147483647, %v1250
      %v1253 = vcvt.s32.f32 %v1246
      %v1254 = vmul.f32 %v1253, %v1251
      %v1255 = vxor.u32 %v1254, 2147483648
      %v1256 = vsel %vm1173, %v1255, %v1254
      %v1257 = vsub.s32 4, %v1233
      %v1258 = vsel %vm1173, %v1257, %v1233
      %v1259 = vsel %vm1172, %v424, %v1256
      %v1260 = vsel %vm1172, 0, %v1258
      %v1261 = vcosq.f32.pop %v1259
      %v1262 = vsinq.f32.pop %v1259
      %vm1263 = vweird.f32 %v424
      %v1264 = vand.u32 %v1260, 3
      %vm1265 = vcmp.lt.s32.totalorder %v1264, 2
      %vm1266 = vcmp.eq.s32.totalorder %v1264, 0
      %v1267 = vxor.u32 %v1262, 2147483648
      %v1268 = vsel %vm1266, %v1261, %v1267
      %vm1269 = vcmp.eq.s32.totalorder %v1264, 2
      %v1270 = vxor.u32 %v1261, 2147483648
      %v1271 = vsel %vm1269, %v1270, %v1262
      %v1272 = vsel %vm1265, %v1268, %v1271
      %v1273 = vsel %vm1263, nan, %v1272
      %v1274 = vand.u32 2147483647, %v425
      %vm1275 = vcmp.le.f32.partialorder %v1274, 0.7853982
      %vm1276 = vcmp.lt.s32.totalorder %v425, 0
      %v1277 = vand.u32 %v425, 2139095040
      %v1278 = vshrl.u32 %v1277, 23
      %v1279 = vsub.s32 %v1278, 127
      %v1280 = vand.u32 2147483647, %v425
      %v1281 = vand.u32 %v1280, 8388607
      %v1282 = vor.u32 %v1281, 8388608
      %v1283 = vsub.s32 0, %v1282
      %v1284 = vadd.s32 %v1279, 1
      %vm1285 = vcmp.gt.s32.totalorder %v1284, 0
      %v1286 = vsel %vm1285, %v1284, 0
      %v1287 = vshrl.u32 %v1286, 5
      %v1288 = vand.u32 %v1286, 31
      %v1289 = vsub.s32 32, %v1288
      %v1290 = vshrl.u32 683565275, %v1289
      %v1291 = vshll.u32 683565275, %v1288
      %v1292 = vshrl.u32 2475754826, %v1289
      %v1293 = vor.u32 %v1291, %v1292
      %v1294 = vshll.u32 2475754826, %v1288
      %v1295 = vshrl.u32 2131351028, %v1289
      %v1296 = vor.u32 %v1294, %v1295
      %v1297 = vshll.u32 2131351028, %v1288
      %v1298 = vshrl.u32 2102212464, %v1289
      %v1299 = vor.u32 %v1297, %v1298
      %v1300 = vshll.u32 2102212464, %v1288
      %v1301 = vshrl.u32 920167782, %v1289
      %v1302 = vor.u32 %v1300, %v1301
      %v1303 = vshll.u32 920167782, %v1288
      %v1304 = vshrl.u32 1326507024, %v1289
      %v1305 = vor.u32 %v1303, %v1304
      %vm1306 = vcmp.lt.s32.totalorder %v1287, 1
      %vm1307 = vcmp.lt.s32.totalorder %v1287, 2
      %vm1308 = vcmp.lt.s32.totalorder %v1287, 3
      %vm1309 = vcmp.lt.s32.totalorder %v1287, 4
      %v1310 = vsel %vm1306, %v1290, %v1293
      %v1311 = vsel %vm1309, %v1299, 2102212464
      %v1312 = vsel %vm1308, %v1296, %v1311
      %v1313 = vsel %vm1307, %v1310, %v1312
      %v1314 = vsel %vm1306, %v1293, %v1296
      %v1315 = vsel %vm1309, %v1302, 920167782
      %v1316 = vsel %vm1308, %v1299, %v1315
      %v1317 = vsel %vm1307, %v1314, %v1316
      %v1318 = vsel %vm1306, %v1296, %v1299
      %v1319 = vsel %vm1309, %v1305, 1326507024
      %v1320 = vsel %vm1308, %v1302, %v1319
      %v1321 = vsel %vm1307, %v1318, %v1320
      %v1322 = vshll.u32 %v1282, 8
      %v1323 = vmul.u32.u64.compose %v1322, %v1321
      %v1324 = vextract.low.u32 %v1323
      %v1325 = vextract.high.u32 %v1323
      %v1326 = vmul.u32.u64.compose %v1322, %v1317
      %v1327 = vextract.low.u32 %v1326
      %v1328 = vextract.high.u32 %v1326
      %v1329 = vmul.u32 %v1322, %v1313
      %v1330 = vadd.s32 %v1325, %v1327
      %vm1331 = vc.u32 %v1325, %v1327
      %v1332 = vadd.s32 %v1328, 1
      %v1333 = vsel %vm1331, %v1332, %v1328
      %v1334 = vadd.s32 %v1329, %v1333
      %v1335 = vadd.s32 %v1334, 536870912
      %v1336 = vshrl.u32 %v1335, 30
      %v1337 = vshll.u32 %v1336, 30
      %v1338 = vsub.s32 %v1334, %v1337
      %vm1339 = vcmp.lt.s32.totalorder %v1338, 0
      %v1340 = vsub.s32 0, %v1338
      %v1341 = vsel %vm1339, %v1340, %v1338
      %v1342 = vclz %v1341
      %v1343 = vsub.s32 %v1342, 2
      %vm1344 = vcmp.gt.s32.totalorder 0, %v1343
      %v1345 = vsel %vm1344, 0, %v1343
      %v1346 = vsub.s32 32, %v1345
      %v1347 = vshll.u32 %v1338, %v1345
      %v1348 = vshrl.u32 %v1330, %v1346
      %v1349 = vor.u32 %v1347, %v1348
      %v1350 = vsub.s32 4294967266, %v1345
      %v1351 = vadd.s32 %v1350, 127
      %v1352 = vshll.u32 %v1351, 23
      %v1353 = vor.u32 4788187, %v1352
      %v1354 = vand.u32 2147483647, %v1353
      %v1356 = vcvt.s32.f32 %v1349
      %v1357 = vmul.f32 %v1356, %v1354
      %v1358 = vxor.u32 %v1357, 2147483648
      %v1359 = vsel %vm1276, %v1358, %v1357
      %v1360 = vsub.s32 4, %v1336
      %v1361 = vsel %vm1276, %v1360, %v1336
      %v1362 = vsel %vm1275, %v425, %v1359
      %v1363 = vsel %vm1275, 0, %v1361
      %v1364 = vcosq.f32.pop %v1362
      %v1365 = vsinq.f32.pop %v1362
      %vm1366 = vweird.f32 %v425
      %v1367 = vand.u32 %v1363, 3
      %vm1368 = vcmp.lt.s32.totalorder %v1367, 2
      %vm1369 = vcmp.eq.s32.totalorder %v1367, 0
      %v1370 = vxor.u32 %v1365, 2147483648
      %v1371 = vsel %vm1369, %v1364, %v1370
      %vm1372 = vcmp.eq.s32.totalorder %v1367, 2
      %v1373 = vxor.u32 %v1364, 2147483648
      %v1374 = vsel %vm1372, %v1373, %v1365
      %v1375 = vsel %vm1368, %v1371, %v1374
      %v1376 = vsel %vm1366, nan, %v1375
      %v1377 = vand.u32 2147483647, %v426
      %vm1378 = vcmp.le.f32.partialorder %v1377, 0.7853982
      %vm1379 = vcmp.lt.s32.totalorder %v426, 0
      %v1380 = vand.u32 %v426, 2139095040
      %v1381 = vshrl.u32 %v1380, 23
      %v1382 = vsub.s32 %v1381, 127
      %v1383 = vand.u32 2147483647, %v426
      %v1384 = vand.u32 %v1383, 8388607
      %v1385 = vor.u32 %v1384, 8388608
      %v1386 = vsub.s32 0, %v1385
      %v1387 = vadd.s32 %v1382, 1
      %vm1388 = vcmp.gt.s32.totalorder %v1387, 0
      %v1389 = vsel %vm1388, %v1387, 0
      %v1390 = vshrl.u32 %v1389, 5
      %v1391 = vand.u32 %v1389, 31
      %v1392 = vsub.s32 32, %v1391
      %v1393 = vshrl.u32 683565275, %v1392
      %v1394 = vshll.u32 683565275, %v1391
      %v1395 = vshrl.u32 2475754826, %v1392
      %v1396 = vor.u32 %v1394, %v1395
      %v1397 = vshll.u32 2475754826, %v1391
      %v1398 = vshrl.u32 2131351028, %v1392
      %v1399 = vor.u32 %v1397, %v1398
      %v1400 = vshll.u32 2131351028, %v1391
      %v1401 = vshrl.u32 2102212464, %v1392
      %v1402 = vor.u32 %v1400, %v1401
      %v1403 = vshll.u32 2102212464, %v1391
      %v1404 = vshrl.u32 920167782, %v1392
      %v1405 = vor.u32 %v1403, %v1404
      %v1406 = vshll.u32 920167782, %v1391
      %v1407 = vshrl.u32 1326507024, %v1392
      %v1408 = vor.u32 %v1406, %v1407
      %vm1409 = vcmp.lt.s32.totalorder %v1390, 1
      %vm1410 = vcmp.lt.s32.totalorder %v1390, 2
      %vm1411 = vcmp.lt.s32.totalorder %v1390, 3
      %vm1412 = vcmp.lt.s32.totalorder %v1390, 4
      %v1413 = vsel %vm1409, %v1393, %v1396
      %v1414 = vsel %vm1412, %v1402, 2102212464
      %v1415 = vsel %vm1411, %v1399, %v1414
      %v1416 = vsel %vm1410, %v1413, %v1415
      %v1417 = vsel %vm1409, %v1396, %v1399
      %v1418 = vsel %vm1412, %v1405, 920167782
      %v1419 = vsel %vm1411, %v1402, %v1418
      %v1420 = vsel %vm1410, %v1417, %v1419
      %v1421 = vsel %vm1409, %v1399, %v1402
      %v1422 = vsel %vm1412, %v1408, 1326507024
      %v1423 = vsel %vm1411, %v1405, %v1422
      %v1424 = vsel %vm1410, %v1421, %v1423
      %v1425 = vshll.u32 %v1385, 8
      %v1426 = vmul.u32.u64.compose %v1425, %v1424
      %v1427 = vextract.low.u32 %v1426
      %v1428 = vextract.high.u32 %v1426
      %v1429 = vmul.u32.u64.compose %v1425, %v1420
      %v1430 = vextract.low.u32 %v1429
      %v1431 = vextract.high.u32 %v1429
      %v1432 = vmul.u32 %v1425, %v1416
      %v1433 = vadd.s32 %v1428, %v1430
      %vm1434 = vc.u32 %v1428, %v1430
      %v1435 = vadd.s32 %v1431, 1
      %v1436 = vsel %vm1434, %v1435, %v1431
      %v1437 = vadd.s32 %v1432, %v1436
      %v1438 = vadd.s32 %v1437, 536870912
      %v1439 = vshrl.u32 %v1438, 30
      %v1440 = vshll.u32 %v1439, 30
      %v1441 = vsub.s32 %v1437, %v1440
      %vm1442 = vcmp.lt.s32.totalorder %v1441, 0
      %v1443 = vsub.s32 0, %v1441
      %v1444 = vsel %vm1442, %v1443, %v1441
      %v1445 = vclz %v1444
      %v1446 = vsub.s32 %v1445, 2
      %vm1447 = vcmp.gt.s32.totalorder 0, %v1446
      %v1448 = vsel %vm1447, 0, %v1446
      %v1449 = vsub.s32 32, %v1448
      %v1450 = vshll.u32 %v1441, %v1448
      %v1451 = vshrl.u32 %v1433, %v1449
      %v1452 = vor.u32 %v1450, %v1451
      %v1453 = vsub.s32 4294967266, %v1448
      %v1454 = vadd.s32 %v1453, 127
      %v1455 = vshll.u32 %v1454, 23
      %v1456 = vor.u32 4788187, %v1455
      %v1457 = vand.u32 2147483647, %v1456
      %v1459 = vcvt.s32.f32 %v1452
      %v1460 = vmul.f32 %v1459, %v1457
      %v1461 = vxor.u32 %v1460, 2147483648
      %v1462 = vsel %vm1379, %v1461, %v1460
      %v1463 = vsub.s32 4, %v1439
      %v1464 = vsel %vm1379, %v1463, %v1439
      %v1465 = vsel %vm1378, %v426, %v1462
      %v1466 = vsel %vm1378, 0, %v1464
      %v1467 = vcosq.f32.pop %v1465
      %v1468 = vsinq.f32.pop %v1465
      %vm1469 = vweird.f32 %v426
      %v1470 = vand.u32 %v1466, 3
      %vm1471 = vcmp.lt.s32.totalorder %v1470, 2
      %vm1472 = vcmp.eq.s32.totalorder %v1470, 0
      %v1473 = vxor.u32 %v1468, 2147483648
      %v1474 = vsel %vm1472, %v1467, %v1473
      %vm1475 = vcmp.eq.s32.totalorder %v1470, 2
      %v1476 = vxor.u32 %v1467, 2147483648
      %v1477 = vsel %vm1475, %v1476, %v1468
      %v1478 = vsel %vm1471, %v1474, %v1477
      %v1479 = vsel %vm1469, nan, %v1478
      %v1480 = vand.u32 2147483647, %v427
      %vm1481 = vcmp.le.f32.partialorder %v1480, 0.7853982
      %vm1482 = vcmp.lt.s32.totalorder %v427, 0
      %v1483 = vand.u32 %v427, 2139095040
      %v1484 = vshrl.u32 %v1483, 23
      %v1485 = vsub.s32 %v1484, 127
      %v1486 = vand.u32 2147483647, %v427
      %v1487 = vand.u32 %v1486, 8388607
      %v1488 = vor.u32 %v1487, 8388608
      %v1489 = vsub.s32 0, %v1488
      %v1490 = vadd.s32 %v1485, 1
      %vm1491 = vcmp.gt.s32.totalorder %v1490, 0
      %v1492 = vsel %vm1491, %v1490, 0
      %v1493 = vshrl.u32 %v1492, 5
      %v1494 = vand.u32 %v1492, 31
      %v1495 = vsub.s32 32, %v1494
      %v1496 = vshrl.u32 683565275, %v1495
      %v1497 = vshll.u32 683565275, %v1494
      %v1498 = vshrl.u32 2475754826, %v1495
      %v1499 = vor.u32 %v1497, %v1498
      %v1500 = vshll.u32 2475754826, %v1494
      %v1501 = vshrl.u32 2131351028, %v1495
      %v1502 = vor.u32 %v1500, %v1501
      %v1503 = vshll.u32 2131351028, %v1494
      %v1504 = vshrl.u32 2102212464, %v1495
      %v1505 = vor.u32 %v1503, %v1504
      %v1506 = vshll.u32 2102212464, %v1494
      %v1507 = vshrl.u32 920167782, %v1495
      %v1508 = vor.u32 %v1506, %v1507
      %v1509 = vshll.u32 920167782, %v1494
      %v1510 = vshrl.u32 1326507024, %v1495
      %v1511 = vor.u32 %v1509, %v1510
      %vm1512 = vcmp.lt.s32.totalorder %v1493, 1
      %vm1513 = vcmp.lt.s32.totalorder %v1493, 2
      %vm1514 = vcmp.lt.s32.totalorder %v1493, 3
      %vm1515 = vcmp.lt.s32.totalorder %v1493, 4
      %v1516 = vsel %vm1512, %v1496, %v1499
      %v1517 = vsel %vm1515, %v1505, 2102212464
      %v1518 = vsel %vm1514, %v1502, %v1517
      %v1519 = vsel %vm1513, %v1516, %v1518
      %v1520 = vsel %vm1512, %v1499, %v1502
      %v1521 = vsel %vm1515, %v1508, 920167782
      %v1522 = vsel %vm1514, %v1505, %v1521
      %v1523 = vsel %vm1513, %v1520, %v1522
      %v1524 = vsel %vm1512, %v1502, %v1505
      %v1525 = vsel %vm1515, %v1511, 1326507024
      %v1526 = vsel %vm1514, %v1508, %v1525
      %v1527 = vsel %vm1513, %v1524, %v1526
      %v1528 = vshll.u32 %v1488, 8
      %v1529 = vmul.u32.u64.compose %v1528, %v1527
      %v1530 = vextract.low.u32 %v1529
      %v1531 = vextract.high.u32 %v1529
      %v1532 = vmul.u32.u64.compose %v1528, %v1523
      %v1533 = vextract.low.u32 %v1532
      %v1534 = vextract.high.u32 %v1532
      %v1535 = vmul.u32 %v1528, %v1519
      %v1536 = vadd.s32 %v1531, %v1533
      %vm1537 = vc.u32 %v1531, %v1533
      %v1538 = vadd.s32 %v1534, 1
      %v1539 = vsel %vm1537, %v1538, %v1534
      %v1540 = vadd.s32 %v1535, %v1539
      %v1541 = vadd.s32 %v1540, 536870912
      %v1542 = vshrl.u32 %v1541, 30
      %v1543 = vshll.u32 %v1542, 30
      %v1544 = vsub.s32 %v1540, %v1543
      %vm1545 = vcmp.lt.s32.totalorder %v1544, 0
      %v1546 = vsub.s32 0, %v1544
      %v1547 = vsel %vm1545, %v1546, %v1544
      %v1548 = vclz %v1547
      %v1549 = vsub.s32 %v1548, 2
      %vm1550 = vcmp.gt.s32.totalorder 0, %v1549
      %v1551 = vsel %vm1550, 0, %v1549
      %v1552 = vsub.s32 32, %v1551
      %v1553 = vshll.u32 %v1544, %v1551
      %v1554 = vshrl.u32 %v1536, %v1552
      %v1555 = vor.u32 %v1553, %v1554
      %v1556 = vsub.s32 4294967266, %v1551
      %v1557 = vadd.s32 %v1556, 127
      %v1558 = vshll.u32 %v1557, 23
      %v1559 = vor.u32 4788187, %v1558
      %v1560 = vand.u32 2147483647, %v1559
      %v1562 = vcvt.s32.f32 %v1555
      %v1563 = vmul.f32 %v1562, %v1560
      %v1564 = vxor.u32 %v1563, 2147483648
      %v1565 = vsel %vm1482, %v1564, %v1563
      %v1566 = vsub.s32 4, %v1542
      %v1567 = vsel %vm1482, %v1566, %v1542
      %v1568 = vsel %vm1481, %v427, %v1565
      %v1569 = vsel %vm1481, 0, %v1567
      %v1570 = vcosq.f32.pop %v1568
      %v1571 = vsinq.f32.pop %v1568
      %vm1572 = vweird.f32 %v427
      %v1573 = vand.u32 %v1569, 3
      %vm1574 = vcmp.lt.s32.totalorder %v1573, 2
      %vm1575 = vcmp.eq.s32.totalorder %v1573, 0
      %v1576 = vxor.u32 %v1571, 2147483648
      %v1577 = vsel %vm1575, %v1570, %v1576
      %vm1578 = vcmp.eq.s32.totalorder %v1573, 2
      %v1579 = vxor.u32 %v1570, 2147483648
      %v1580 = vsel %vm1578, %v1579, %v1571
      %v1581 = vsel %vm1574, %v1577, %v1580
      %v1582 = vsel %vm1572, nan, %v1581
      %v1583 = vand.u32 2147483647, %v428
      %vm1584 = vcmp.le.f32.partialorder %v1583, 0.7853982
      %vm1585 = vcmp.lt.s32.totalorder %v428, 0
      %v1586 = vand.u32 %v428, 2139095040
      %v1587 = vshrl.u32 %v1586, 23
      %v1588 = vsub.s32 %v1587, 127
      %v1589 = vand.u32 2147483647, %v428
      %v1590 = vand.u32 %v1589, 8388607
      %v1591 = vor.u32 %v1590, 8388608
      %v1592 = vsub.s32 0, %v1591
      %v1593 = vadd.s32 %v1588, 1
      %vm1594 = vcmp.gt.s32.totalorder %v1593, 0
      %v1595 = vsel %vm1594, %v1593, 0
      %v1596 = vshrl.u32 %v1595, 5
      %v1597 = vand.u32 %v1595, 31
      %v1598 = vsub.s32 32, %v1597
      %v1599 = vshrl.u32 683565275, %v1598
      %v1600 = vshll.u32 683565275, %v1597
      %v1601 = vshrl.u32 2475754826, %v1598
      %v1602 = vor.u32 %v1600, %v1601
      %v1603 = vshll.u32 2475754826, %v1597
      %v1604 = vshrl.u32 2131351028, %v1598
      %v1605 = vor.u32 %v1603, %v1604
      %v1606 = vshll.u32 2131351028, %v1597
      %v1607 = vshrl.u32 2102212464, %v1598
      %v1608 = vor.u32 %v1606, %v1607
      %v1609 = vshll.u32 2102212464, %v1597
      %v1610 = vshrl.u32 920167782, %v1598
      %v1611 = vor.u32 %v1609, %v1610
      %v1612 = vshll.u32 920167782, %v1597
      %v1613 = vshrl.u32 1326507024, %v1598
      %v1614 = vor.u32 %v1612, %v1613
      %vm1615 = vcmp.lt.s32.totalorder %v1596, 1
      %vm1616 = vcmp.lt.s32.totalorder %v1596, 2
      %vm1617 = vcmp.lt.s32.totalorder %v1596, 3
      %vm1618 = vcmp.lt.s32.totalorder %v1596, 4
      %v1619 = vsel %vm1615, %v1599, %v1602
      %v1620 = vsel %vm1618, %v1608, 2102212464
      %v1621 = vsel %vm1617, %v1605, %v1620
      %v1622 = vsel %vm1616, %v1619, %v1621
      %v1623 = vsel %vm1615, %v1602, %v1605
      %v1624 = vsel %vm1618, %v1611, 920167782
      %v1625 = vsel %vm1617, %v1608, %v1624
      %v1626 = vsel %vm1616, %v1623, %v1625
      %v1627 = vsel %vm1615, %v1605, %v1608
      %v1628 = vsel %vm1618, %v1614, 1326507024
      %v1629 = vsel %vm1617, %v1611, %v1628
      %v1630 = vsel %vm1616, %v1627, %v1629
      %v1631 = vshll.u32 %v1591, 8
      %v1632 = vmul.u32.u64.compose %v1631, %v1630
      %v1633 = vextract.low.u32 %v1632
      %v1634 = vextract.high.u32 %v1632
      %v1635 = vmul.u32.u64.compose %v1631, %v1626
      %v1636 = vextract.low.u32 %v1635
      %v1637 = vextract.high.u32 %v1635
      %v1638 = vmul.u32 %v1631, %v1622
      %v1639 = vadd.s32 %v1634, %v1636
      %vm1640 = vc.u32 %v1634, %v1636
      %v1641 = vadd.s32 %v1637, 1
      %v1642 = vsel %vm1640, %v1641, %v1637
      %v1643 = vadd.s32 %v1638, %v1642
      %v1644 = vadd.s32 %v1643, 536870912
      %v1645 = vshrl.u32 %v1644, 30
      %v1646 = vshll.u32 %v1645, 30
      %v1647 = vsub.s32 %v1643, %v1646
      %vm1648 = vcmp.lt.s32.totalorder %v1647, 0
      %v1649 = vsub.s32 0, %v1647
      %v1650 = vsel %vm1648, %v1649, %v1647
      %v1651 = vclz %v1650
      %v1652 = vsub.s32 %v1651, 2
      %vm1653 = vcmp.gt.s32.totalorder 0, %v1652
      %v1654 = vsel %vm1653, 0, %v1652
      %v1655 = vsub.s32 32, %v1654
      %v1656 = vshll.u32 %v1647, %v1654
      %v1657 = vshrl.u32 %v1639, %v1655
      %v1658 = vor.u32 %v1656, %v1657
      %v1659 = vsub.s32 4294967266, %v1654
      %v1660 = vadd.s32 %v1659, 127
      %v1661 = vshll.u32 %v1660, 23
      %v1662 = vor.u32 4788187, %v1661
      %v1663 = vand.u32 2147483647, %v1662
      %v1665 = vcvt.s32.f32 %v1658
      %v1666 = vmul.f32 %v1665, %v1663
      %v1667 = vxor.u32 %v1666, 2147483648
      %v1668 = vsel %vm1585, %v1667, %v1666
      %v1669 = vsub.s32 4, %v1645
      %v1670 = vsel %vm1585, %v1669, %v1645
      %v1671 = vsel %vm1584, %v428, %v1668
      %v1672 = vsel %vm1584, 0, %v1670
      %v1673 = vcosq.f32.pop %v1671
      %v1674 = vsinq.f32.pop %v1671
      %vm1675 = vweird.f32 %v428
      %v1676 = vand.u32 %v1672, 3
      %vm1677 = vcmp.lt.s32.totalorder %v1676, 2
      %vm1678 = vcmp.eq.s32.totalorder %v1676, 0
      %v1679 = vxor.u32 %v1674, 2147483648
      %v1680 = vsel %vm1678, %v1673, %v1679
      %vm1681 = vcmp.eq.s32.totalorder %v1676, 2
      %v1682 = vxor.u32 %v1673, 2147483648
      %v1683 = vsel %vm1681, %v1682, %v1674
      %v1684 = vsel %vm1677, %v1680, %v1683
      %v1685 = vsel %vm1675, nan, %v1684
      %v1686 = vand.u32 2147483647, %v429
      %vm1687 = vcmp.le.f32.partialorder %v1686, 0.7853982
      %vm1688 = vcmp.lt.s32.totalorder %v429, 0
      %v1689 = vand.u32 %v429, 2139095040
      %v1690 = vshrl.u32 %v1689, 23
      %v1691 = vsub.s32 %v1690, 127
      %v1692 = vand.u32 2147483647, %v429
      %v1693 = vand.u32 %v1692, 8388607
      %v1694 = vor.u32 %v1693, 8388608
      %v1695 = vsub.s32 0, %v1694
      %v1696 = vadd.s32 %v1691, 1
      %vm1697 = vcmp.gt.s32.totalorder %v1696, 0
      %v1698 = vsel %vm1697, %v1696, 0
      %v1699 = vshrl.u32 %v1698, 5
      %v1700 = vand.u32 %v1698, 31
      %v1701 = vsub.s32 32, %v1700
      %v1702 = vshrl.u32 683565275, %v1701
      %v1703 = vshll.u32 683565275, %v1700
      %v1704 = vshrl.u32 2475754826, %v1701
      %v1705 = vor.u32 %v1703, %v1704
      %v1706 = vshll.u32 2475754826, %v1700
      %v1707 = vshrl.u32 2131351028, %v1701
      %v1708 = vor.u32 %v1706, %v1707
      %v1709 = vshll.u32 2131351028, %v1700
      %v1710 = vshrl.u32 2102212464, %v1701
      %v1711 = vor.u32 %v1709, %v1710
      %v1712 = vshll.u32 2102212464, %v1700
      %v1713 = vshrl.u32 920167782, %v1701
      %v1714 = vor.u32 %v1712, %v1713
      %v1715 = vshll.u32 920167782, %v1700
      %v1716 = vshrl.u32 1326507024, %v1701
      %v1717 = vor.u32 %v1715, %v1716
      %vm1718 = vcmp.lt.s32.totalorder %v1699, 1
      %vm1719 = vcmp.lt.s32.totalorder %v1699, 2
      %vm1720 = vcmp.lt.s32.totalorder %v1699, 3
      %vm1721 = vcmp.lt.s32.totalorder %v1699, 4
      %v1722 = vsel %vm1718, %v1702, %v1705
      %v1723 = vsel %vm1721, %v1711, 2102212464
      %v1724 = vsel %vm1720, %v1708, %v1723
      %v1725 = vsel %vm1719, %v1722, %v1724
      %v1726 = vsel %vm1718, %v1705, %v1708
      %v1727 = vsel %vm1721, %v1714, 920167782
      %v1728 = vsel %vm1720, %v1711, %v1727
      %v1729 = vsel %vm1719, %v1726, %v1728
      %v1730 = vsel %vm1718, %v1708, %v1711
      %v1731 = vsel %vm1721, %v1717, 1326507024
      %v1732 = vsel %vm1720, %v1714, %v1731
      %v1733 = vsel %vm1719, %v1730, %v1732
      %v1734 = vshll.u32 %v1694, 8
      %v1735 = vmul.u32.u64.compose %v1734, %v1733
      %v1736 = vextract.low.u32 %v1735
      %v1737 = vextract.high.u32 %v1735
      %v1738 = vmul.u32.u64.compose %v1734, %v1729
      %v1739 = vextract.low.u32 %v1738
      %v1740 = vextract.high.u32 %v1738
      %v1741 = vmul.u32 %v1734, %v1725
      %v1742 = vadd.s32 %v1737, %v1739
      %vm1743 = vc.u32 %v1737, %v1739
      %v1744 = vadd.s32 %v1740, 1
      %v1745 = vsel %vm1743, %v1744, %v1740
      %v1746 = vadd.s32 %v1741, %v1745
      %v1747 = vadd.s32 %v1746, 536870912
      %v1748 = vshrl.u32 %v1747, 30
      %v1749 = vshll.u32 %v1748, 30
      %v1750 = vsub.s32 %v1746, %v1749
      %vm1751 = vcmp.lt.s32.totalorder %v1750, 0
      %v1752 = vsub.s32 0, %v1750
      %v1753 = vsel %vm1751, %v1752, %v1750
      %v1754 = vclz %v1753
      %v1755 = vsub.s32 %v1754, 2
      %vm1756 = vcmp.gt.s32.totalorder 0, %v1755
      %v1757 = vsel %vm1756, 0, %v1755
      %v1758 = vsub.s32 32, %v1757
      %v1759 = vshll.u32 %v1750, %v1757
      %v1760 = vshrl.u32 %v1742, %v1758
      %v1761 = vor.u32 %v1759, %v1760
      %v1762 = vsub.s32 4294967266, %v1757
      %v1763 = vadd.s32 %v1762, 127
      %v1764 = vshll.u32 %v1763, 23
      %v1765 = vor.u32 4788187, %v1764
      %v1766 = vand.u32 2147483647, %v1765
      %v1768 = vcvt.s32.f32 %v1761
      %v1769 = vmul.f32 %v1768, %v1766
      %v1770 = vxor.u32 %v1769, 2147483648
      %v1771 = vsel %vm1688, %v1770, %v1769
      %v1772 = vsub.s32 4, %v1748
      %v1773 = vsel %vm1688, %v1772, %v1748
      %v1774 = vsel %vm1687, %v429, %v1771
      %v1775 = vsel %vm1687, 0, %v1773
      %v1776 = vcosq.f32.pop %v1774
      %v1777 = vsinq.f32.pop %v1774
      %vm1778 = vweird.f32 %v429
      %v1779 = vand.u32 %v1775, 3
      %vm1780 = vcmp.lt.s32.totalorder %v1779, 2
      %vm1781 = vcmp.eq.s32.totalorder %v1779, 0
      %v1782 = vxor.u32 %v1777, 2147483648
      %v1783 = vsel %vm1781, %v1776, %v1782
      %vm1784 = vcmp.eq.s32.totalorder %v1779, 2
      %v1785 = vxor.u32 %v1776, 2147483648
      %v1786 = vsel %vm1784, %v1785, %v1777
      %v1787 = vsel %vm1780, %v1783, %v1786
      %v1788 = vsel %vm1778, nan, %v1787
      %v1789 = vand.u32 2147483647, %v430
      %vm1790 = vcmp.le.f32.partialorder %v1789, 0.7853982
      %vm1791 = vcmp.lt.s32.totalorder %v430, 0
      %v1792 = vand.u32 %v430, 2139095040
      %v1793 = vshrl.u32 %v1792, 23
      %v1794 = vsub.s32 %v1793, 127
      %v1795 = vand.u32 2147483647, %v430
      %v1796 = vand.u32 %v1795, 8388607
      %v1797 = vor.u32 %v1796, 8388608
      %v1798 = vsub.s32 0, %v1797
      %v1799 = vadd.s32 %v1794, 1
      %vm1800 = vcmp.gt.s32.totalorder %v1799, 0
      %v1801 = vsel %vm1800, %v1799, 0
      %v1802 = vshrl.u32 %v1801, 5
      %v1803 = vand.u32 %v1801, 31
      %v1804 = vsub.s32 32, %v1803
      %v1805 = vshrl.u32 683565275, %v1804
      %v1806 = vshll.u32 683565275, %v1803
      %v1807 = vshrl.u32 2475754826, %v1804
      %v1808 = vor.u32 %v1806, %v1807
      %v1809 = vshll.u32 2475754826, %v1803
      %v1810 = vshrl.u32 2131351028, %v1804
      %v1811 = vor.u32 %v1809, %v1810
      %v1812 = vshll.u32 2131351028, %v1803
      %v1813 = vshrl.u32 2102212464, %v1804
      %v1814 = vor.u32 %v1812, %v1813
      %v1815 = vshll.u32 2102212464, %v1803
      %v1816 = vshrl.u32 920167782, %v1804
      %v1817 = vor.u32 %v1815, %v1816
      %v1818 = vshll.u32 920167782, %v1803
      %v1819 = vshrl.u32 1326507024, %v1804
      %v1820 = vor.u32 %v1818, %v1819
      %vm1821 = vcmp.lt.s32.totalorder %v1802, 1
      %vm1822 = vcmp.lt.s32.totalorder %v1802, 2
      %vm1823 = vcmp.lt.s32.totalorder %v1802, 3
      %vm1824 = vcmp.lt.s32.totalorder %v1802, 4
      %v1825 = vsel %vm1821, %v1805, %v1808
      %v1826 = vsel %vm1824, %v1814, 2102212464
      %v1827 = vsel %vm1823, %v1811, %v1826
      %v1828 = vsel %vm1822, %v1825, %v1827
      %v1829 = vsel %vm1821, %v1808, %v1811
      %v1830 = vsel %vm1824, %v1817, 920167782
      %v1831 = vsel %vm1823, %v1814, %v1830
      %v1832 = vsel %vm1822, %v1829, %v1831
      %v1833 = vsel %vm1821, %v1811, %v1814
      %v1834 = vsel %vm1824, %v1820, 1326507024
      %v1835 = vsel %vm1823, %v1817, %v1834
      %v1836 = vsel %vm1822, %v1833, %v1835
      %v1837 = vshll.u32 %v1797, 8
      %v1838 = vmul.u32.u64.compose %v1837, %v1836
      %v1839 = vextract.low.u32 %v1838
      %v1840 = vextract.high.u32 %v1838
      %v1841 = vmul.u32.u64.compose %v1837, %v1832
      %v1842 = vextract.low.u32 %v1841
      %v1843 = vextract.high.u32 %v1841
      %v1844 = vmul.u32 %v1837, %v1828
      %v1845 = vadd.s32 %v1840, %v1842
      %vm1846 = vc.u32 %v1840, %v1842
      %v1847 = vadd.s32 %v1843, 1
      %v1848 = vsel %vm1846, %v1847, %v1843
      %v1849 = vadd.s32 %v1844, %v1848
      %v1850 = vadd.s32 %v1849, 536870912
      %v1851 = vshrl.u32 %v1850, 30
      %v1852 = vshll.u32 %v1851, 30
      %v1853 = vsub.s32 %v1849, %v1852
      %vm1854 = vcmp.lt.s32.totalorder %v1853, 0
      %v1855 = vsub.s32 0, %v1853
      %v1856 = vsel %vm1854, %v1855, %v1853
      %v1857 = vclz %v1856
      %v1858 = vsub.s32 %v1857, 2
      %vm1859 = vcmp.gt.s32.totalorder 0, %v1858
      %v1860 = vsel %vm1859, 0, %v1858
      %v1861 = vsub.s32 32, %v1860
      %v1862 = vshll.u32 %v1853, %v1860
      %v1863 = vshrl.u32 %v1845, %v1861
      %v1864 = vor.u32 %v1862, %v1863
      %v1865 = vsub.s32 4294967266, %v1860
      %v1866 = vadd.s32 %v1865, 127
      %v1867 = vshll.u32 %v1866, 23
      %v1868 = vor.u32 4788187, %v1867
      %v1869 = vand.u32 2147483647, %v1868
      %v1871 = vcvt.s32.f32 %v1864
      %v1872 = vmul.f32 %v1871, %v1869
      %v1873 = vxor.u32 %v1872, 2147483648
      %v1874 = vsel %vm1791, %v1873, %v1872
      %v1875 = vsub.s32 4, %v1851
      %v1876 = vsel %vm1791, %v1875, %v1851
      %v1877 = vsel %vm1790, %v430, %v1874
      %v1878 = vsel %vm1790, 0, %v1876
      %v1879 = vcosq.f32.pop %v1877
      %v1880 = vsinq.f32.pop %v1877
      %vm1881 = vweird.f32 %v430
      %v1882 = vand.u32 %v1878, 3
      %vm1883 = vcmp.lt.s32.totalorder %v1882, 2
      %vm1884 = vcmp.eq.s32.totalorder %v1882, 0
      %v1885 = vxor.u32 %v1880, 2147483648
      %v1886 = vsel %vm1884, %v1879, %v1885
      %vm1887 = vcmp.eq.s32.totalorder %v1882, 2
      %v1888 = vxor.u32 %v1879, 2147483648
      %v1889 = vsel %vm1887, %v1888, %v1880
      %v1890 = vsel %vm1883, %v1886, %v1889
      %v1891 = vsel %vm1881, nan, %v1890
      %v1892 = vand.u32 2147483647, %v431
      %vm1893 = vcmp.le.f32.partialorder %v1892, 0.7853982
      %vm1894 = vcmp.lt.s32.totalorder %v431, 0
      %v1895 = vand.u32 %v431, 2139095040
      %v1896 = vshrl.u32 %v1895, 23
      %v1897 = vsub.s32 %v1896, 127
      %v1898 = vand.u32 2147483647, %v431
      %v1899 = vand.u32 %v1898, 8388607
      %v1900 = vor.u32 %v1899, 8388608
      %v1901 = vsub.s32 0, %v1900
      %v1902 = vadd.s32 %v1897, 1
      %vm1903 = vcmp.gt.s32.totalorder %v1902, 0
      %v1904 = vsel %vm1903, %v1902, 0
      %v1905 = vshrl.u32 %v1904, 5
      %v1906 = vand.u32 %v1904, 31
      %v1907 = vsub.s32 32, %v1906
      %v1908 = vshrl.u32 683565275, %v1907
      %v1909 = vshll.u32 683565275, %v1906
      %v1910 = vshrl.u32 2475754826, %v1907
      %v1911 = vor.u32 %v1909, %v1910
      %v1912 = vshll.u32 2475754826, %v1906
      %v1913 = vshrl.u32 2131351028, %v1907
      %v1914 = vor.u32 %v1912, %v1913
      %v1915 = vshll.u32 2131351028, %v1906
      %v1916 = vshrl.u32 2102212464, %v1907
      %v1917 = vor.u32 %v1915, %v1916
      %v1918 = vshll.u32 2102212464, %v1906
      %v1919 = vshrl.u32 920167782, %v1907
      %v1920 = vor.u32 %v1918, %v1919
      %v1921 = vshll.u32 920167782, %v1906
      %v1922 = vshrl.u32 1326507024, %v1907
      %v1923 = vor.u32 %v1921, %v1922
      %vm1924 = vcmp.lt.s32.totalorder %v1905, 1
      %vm1925 = vcmp.lt.s32.totalorder %v1905, 2
      %vm1926 = vcmp.lt.s32.totalorder %v1905, 3
      %vm1927 = vcmp.lt.s32.totalorder %v1905, 4
      %v1928 = vsel %vm1924, %v1908, %v1911
      %v1929 = vsel %vm1927, %v1917, 2102212464
      %v1930 = vsel %vm1926, %v1914, %v1929
      %v1931 = vsel %vm1925, %v1928, %v1930
      %v1932 = vsel %vm1924, %v1911, %v1914
      %v1933 = vsel %vm1927, %v1920, 920167782
      %v1934 = vsel %vm1926, %v1917, %v1933
      %v1935 = vsel %vm1925, %v1932, %v1934
      %v1936 = vsel %vm1924, %v1914, %v1917
      %v1937 = vsel %vm1927, %v1923, 1326507024
      %v1938 = vsel %vm1926, %v1920, %v1937
      %v1939 = vsel %vm1925, %v1936, %v1938
      %v1940 = vshll.u32 %v1900, 8
      %v1941 = vmul.u32.u64.compose %v1940, %v1939
      %v1942 = vextract.low.u32 %v1941
      %v1943 = vextract.high.u32 %v1941
      %v1944 = vmul.u32.u64.compose %v1940, %v1935
      %v1945 = vextract.low.u32 %v1944
      %v1946 = vextract.high.u32 %v1944
      %v1947 = vmul.u32 %v1940, %v1931
      %v1948 = vadd.s32 %v1943, %v1945
      %vm1949 = vc.u32 %v1943, %v1945
      %v1950 = vadd.s32 %v1946, 1
      %v1951 = vsel %vm1949, %v1950, %v1946
      %v1952 = vadd.s32 %v1947, %v1951
      %v1953 = vadd.s32 %v1952, 536870912
      %v1954 = vshrl.u32 %v1953, 30
      %v1955 = vshll.u32 %v1954, 30
      %v1956 = vsub.s32 %v1952, %v1955
      %vm1957 = vcmp.lt.s32.totalorder %v1956, 0
      %v1958 = vsub.s32 0, %v1956
      %v1959 = vsel %vm1957, %v1958, %v1956
      %v1960 = vclz %v1959
      %v1961 = vsub.s32 %v1960, 2
      %vm1962 = vcmp.gt.s32.totalorder 0, %v1961
      %v1963 = vsel %vm1962, 0, %v1961
      %v1964 = vsub.s32 32, %v1963
      %v1965 = vshll.u32 %v1956, %v1963
      %v1966 = vshrl.u32 %v1948, %v1964
      %v1967 = vor.u32 %v1965, %v1966
      %v1968 = vsub.s32 4294967266, %v1963
      %v1969 = vadd.s32 %v1968, 127
      %v1970 = vshll.u32 %v1969, 23
      %v1971 = vor.u32 4788187, %v1970
      %v1972 = vand.u32 2147483647, %v1971
      %v1974 = vcvt.s32.f32 %v1967
      %v1975 = vmul.f32 %v1974, %v1972
      %v1976 = vxor.u32 %v1975, 2147483648
      %v1977 = vsel %vm1894, %v1976, %v1975
      %v1978 = vsub.s32 4, %v1954
      %v1979 = vsel %vm1894, %v1978, %v1954
      %v1980 = vsel %vm1893, %v431, %v1977
      %v1981 = vsel %vm1893, 0, %v1979
      %v1982 = vcosq.f32.pop %v1980
      %v1983 = vsinq.f32.pop %v1980
      %vm1984 = vweird.f32 %v431
      %v1985 = vand.u32 %v1981, 3
      %vm1986 = vcmp.lt.s32.totalorder %v1985, 2
      %vm1987 = vcmp.eq.s32.totalorder %v1985, 0
      %v1988 = vxor.u32 %v1983, 2147483648
      %v1989 = vsel %vm1987, %v1982, %v1988
      %vm1990 = vcmp.eq.s32.totalorder %v1985, 2
      %v1991 = vxor.u32 %v1982, 2147483648
      %v1992 = vsel %vm1990, %v1991, %v1983
      %v1993 = vsel %vm1986, %v1989, %v1992
      %v1994 = vsel %vm1984, nan, %v1993
      %v1995 = vand.u32 2147483647, %v432
      %vm1996 = vcmp.le.f32.partialorder %v1995, 0.7853982
      %vm1997 = vcmp.lt.s32.totalorder %v432, 0
      %v1998 = vand.u32 %v432, 2139095040
      %v1999 = vshrl.u32 %v1998, 23
      %v2000 = vsub.s32 %v1999, 127
      %v2001 = vand.u32 2147483647, %v432
      %v2002 = vand.u32 %v2001, 8388607
      %v2003 = vor.u32 %v2002, 8388608
      %v2004 = vsub.s32 0, %v2003
      %v2005 = vadd.s32 %v2000, 1
      %vm2006 = vcmp.gt.s32.totalorder %v2005, 0
      %v2007 = vsel %vm2006, %v2005, 0
      %v2008 = vshrl.u32 %v2007, 5
      %v2009 = vand.u32 %v2007, 31
      %v2010 = vsub.s32 32, %v2009
      %v2011 = vshrl.u32 683565275, %v2010
      %v2012 = vshll.u32 683565275, %v2009
      %v2013 = vshrl.u32 2475754826, %v2010
      %v2014 = vor.u32 %v2012, %v2013
      %v2015 = vshll.u32 2475754826, %v2009
      %v2016 = vshrl.u32 2131351028, %v2010
      %v2017 = vor.u32 %v2015, %v2016
      %v2018 = vshll.u32 2131351028, %v2009
      %v2019 = vshrl.u32 2102212464, %v2010
      %v2020 = vor.u32 %v2018, %v2019
      %v2021 = vshll.u32 2102212464, %v2009
      %v2022 = vshrl.u32 920167782, %v2010
      %v2023 = vor.u32 %v2021, %v2022
      %v2024 = vshll.u32 920167782, %v2009
      %v2025 = vshrl.u32 1326507024, %v2010
      %v2026 = vor.u32 %v2024, %v2025
      %vm2027 = vcmp.lt.s32.totalorder %v2008, 1
      %vm2028 = vcmp.lt.s32.totalorder %v2008, 2
      %vm2029 = vcmp.lt.s32.totalorder %v2008, 3
      %vm2030 = vcmp.lt.s32.totalorder %v2008, 4
      %v2031 = vsel %vm2027, %v2011, %v2014
      %v2032 = vsel %vm2030, %v2020, 2102212464
      %v2033 = vsel %vm2029, %v2017, %v2032
      %v2034 = vsel %vm2028, %v2031, %v2033
      %v2035 = vsel %vm2027, %v2014, %v2017
      %v2036 = vsel %vm2030, %v2023, 920167782
      %v2037 = vsel %vm2029, %v2020, %v2036
      %v2038 = vsel %vm2028, %v2035, %v2037
      %v2039 = vsel %vm2027, %v2017, %v2020
      %v2040 = vsel %vm2030, %v2026, 1326507024
      %v2041 = vsel %vm2029, %v2023, %v2040
      %v2042 = vsel %vm2028, %v2039, %v2041
      %v2043 = vshll.u32 %v2003, 8
      %v2044 = vmul.u32.u64.compose %v2043, %v2042
      %v2045 = vextract.low.u32 %v2044
      %v2046 = vextract.high.u32 %v2044
      %v2047 = vmul.u32.u64.compose %v2043, %v2038
      %v2048 = vextract.low.u32 %v2047
      %v2049 = vextract.high.u32 %v2047
      %v2050 = vmul.u32 %v2043, %v2034
      %v2051 = vadd.s32 %v2046, %v2048
      %vm2052 = vc.u32 %v2046, %v2048
      %v2053 = vadd.s32 %v2049, 1
      %v2054 = vsel %vm2052, %v2053, %v2049
      %v2055 = vadd.s32 %v2050, %v2054
      %v2056 = vadd.s32 %v2055, 536870912
      %v2057 = vshrl.u32 %v2056, 30
      %v2058 = vshll.u32 %v2057, 30
      %v2059 = vsub.s32 %v2055, %v2058
      %vm2060 = vcmp.lt.s32.totalorder %v2059, 0
      %v2061 = vsub.s32 0, %v2059
      %v2062 = vsel %vm2060, %v2061, %v2059
      %v2063 = vclz %v2062
      %v2064 = vsub.s32 %v2063, 2
      %vm2065 = vcmp.gt.s32.totalorder 0, %v2064
      %v2066 = vsel %vm2065, 0, %v2064
      %v2067 = vsub.s32 32, %v2066
      %v2068 = vshll.u32 %v2059, %v2066
      %v2069 = vshrl.u32 %v2051, %v2067
      %v2070 = vor.u32 %v2068, %v2069
      %v2071 = vsub.s32 4294967266, %v2066
      %v2072 = vadd.s32 %v2071, 127
      %v2073 = vshll.u32 %v2072, 23
      %v2074 = vor.u32 4788187, %v2073
      %v2075 = vand.u32 2147483647, %v2074
      %v2077 = vcvt.s32.f32 %v2070
      %v2078 = vmul.f32 %v2077, %v2075
      %v2079 = vxor.u32 %v2078, 2147483648
      %v2080 = vsel %vm1997, %v2079, %v2078
      %v2081 = vsub.s32 4, %v2057
      %v2082 = vsel %vm1997, %v2081, %v2057
      %v2083 = vsel %vm1996, %v432, %v2080
      %v2084 = vsel %vm1996, 0, %v2082
      %v2085 = vcosq.f32.pop %v2083
      %v2086 = vsinq.f32.pop %v2083
      %vm2087 = vweird.f32 %v432
      %v2088 = vand.u32 %v2084, 3
      %vm2089 = vcmp.lt.s32.totalorder %v2088, 2
      %vm2090 = vcmp.eq.s32.totalorder %v2088, 0
      %v2091 = vxor.u32 %v2086, 2147483648
      %v2092 = vsel %vm2090, %v2085, %v2091
      %vm2093 = vcmp.eq.s32.totalorder %v2088, 2
      %v2094 = vxor.u32 %v2085, 2147483648
      %v2095 = vsel %vm2093, %v2094, %v2086
      %v2096 = vsel %vm2089, %v2092, %v2095
      %v2097 = vsel %vm2087, nan, %v2096
      %v2098 = vand.u32 2147483647, %v433
      %vm2099 = vcmp.le.f32.partialorder %v2098, 0.7853982
      %vm2100 = vcmp.lt.s32.totalorder %v433, 0
      %v2101 = vand.u32 %v433, 2139095040
      %v2102 = vshrl.u32 %v2101, 23
      %v2103 = vsub.s32 %v2102, 127
      %v2104 = vand.u32 2147483647, %v433
      %v2105 = vand.u32 %v2104, 8388607
      %v2106 = vor.u32 %v2105, 8388608
      %v2107 = vsub.s32 0, %v2106
      %v2108 = vadd.s32 %v2103, 1
      %vm2109 = vcmp.gt.s32.totalorder %v2108, 0
      %v2110 = vsel %vm2109, %v2108, 0
      %v2111 = vshrl.u32 %v2110, 5
      %v2112 = vand.u32 %v2110, 31
      %v2113 = vsub.s32 32, %v2112
      %v2114 = vshrl.u32 683565275, %v2113
      %v2115 = vshll.u32 683565275, %v2112
      %v2116 = vshrl.u32 2475754826, %v2113
      %v2117 = vor.u32 %v2115, %v2116
      %v2118 = vshll.u32 2475754826, %v2112
      %v2119 = vshrl.u32 2131351028, %v2113
      %v2120 = vor.u32 %v2118, %v2119
      %v2121 = vshll.u32 2131351028, %v2112
      %v2122 = vshrl.u32 2102212464, %v2113
      %v2123 = vor.u32 %v2121, %v2122
      %v2124 = vshll.u32 2102212464, %v2112
      %v2125 = vshrl.u32 920167782, %v2113
      %v2126 = vor.u32 %v2124, %v2125
      %v2127 = vshll.u32 920167782, %v2112
      %v2128 = vshrl.u32 1326507024, %v2113
      %v2129 = vor.u32 %v2127, %v2128
      %vm2130 = vcmp.lt.s32.totalorder %v2111, 1
      %vm2131 = vcmp.lt.s32.totalorder %v2111, 2
      %vm2132 = vcmp.lt.s32.totalorder %v2111, 3
      %vm2133 = vcmp.lt.s32.totalorder %v2111, 4
      %v2134 = vsel %vm2130, %v2114, %v2117
      %v2135 = vsel %vm2133, %v2123, 2102212464
      %v2136 = vsel %vm2132, %v2120, %v2135
      %v2137 = vsel %vm2131, %v2134, %v2136
      %v2138 = vsel %vm2130, %v2117, %v2120
      %v2139 = vsel %vm2133, %v2126, 920167782
      %v2140 = vsel %vm2132, %v2123, %v2139
      %v2141 = vsel %vm2131, %v2138, %v2140
      %v2142 = vsel %vm2130, %v2120, %v2123
      %v2143 = vsel %vm2133, %v2129, 1326507024
      %v2144 = vsel %vm2132, %v2126, %v2143
      %v2145 = vsel %vm2131, %v2142, %v2144
      %v2146 = vshll.u32 %v2106, 8
      %v2147 = vmul.u32.u64.compose %v2146, %v2145
      %v2148 = vextract.low.u32 %v2147
      %v2149 = vextract.high.u32 %v2147
      %v2150 = vmul.u32.u64.compose %v2146, %v2141
      %v2151 = vextract.low.u32 %v2150
      %v2152 = vextract.high.u32 %v2150
      %v2153 = vmul.u32 %v2146, %v2137
      %v2154 = vadd.s32 %v2149, %v2151
      %vm2155 = vc.u32 %v2149, %v2151
      %v2156 = vadd.s32 %v2152, 1
      %v2157 = vsel %vm2155, %v2156, %v2152
      %v2158 = vadd.s32 %v2153, %v2157
      %v2159 = vadd.s32 %v2158, 536870912
      %v2160 = vshrl.u32 %v2159, 30
      %v2161 = vshll.u32 %v2160, 30
      %v2162 = vsub.s32 %v2158, %v2161
      %vm2163 = vcmp.lt.s32.totalorder %v2162, 0
      %v2164 = vsub.s32 0, %v2162
      %v2165 = vsel %vm2163, %v2164, %v2162
      %v2166 = vclz %v2165
      %v2167 = vsub.s32 %v2166, 2
      %vm2168 = vcmp.gt.s32.totalorder 0, %v2167
      %v2169 = vsel %vm2168, 0, %v2167
      %v2170 = vsub.s32 32, %v2169
      %v2171 = vshll.u32 %v2162, %v2169
      %v2172 = vshrl.u32 %v2154, %v2170
      %v2173 = vor.u32 %v2171, %v2172
      %v2174 = vsub.s32 4294967266, %v2169
      %v2175 = vadd.s32 %v2174, 127
      %v2176 = vshll.u32 %v2175, 23
      %v2177 = vor.u32 4788187, %v2176
      %v2178 = vand.u32 2147483647, %v2177
      %v2180 = vcvt.s32.f32 %v2173
      %v2181 = vmul.f32 %v2180, %v2178
      %v2182 = vxor.u32 %v2181, 2147483648
      %v2183 = vsel %vm2100, %v2182, %v2181
      %v2184 = vsub.s32 4, %v2160
      %v2185 = vsel %vm2100, %v2184, %v2160
      %v2186 = vsel %vm2099, %v433, %v2183
      %v2187 = vsel %vm2099, 0, %v2185
      %v2188 = vcosq.f32.pop %v2186
      %v2189 = vsinq.f32.pop %v2186
      %vm2190 = vweird.f32 %v433
      %v2191 = vand.u32 %v2187, 3
      %vm2192 = vcmp.lt.s32.totalorder %v2191, 2
      %vm2193 = vcmp.eq.s32.totalorder %v2191, 0
      %v2194 = vxor.u32 %v2189, 2147483648
      %v2195 = vsel %vm2193, %v2188, %v2194
      %vm2196 = vcmp.eq.s32.totalorder %v2191, 2
      %v2197 = vxor.u32 %v2188, 2147483648
      %v2198 = vsel %vm2196, %v2197, %v2189
      %v2199 = vsel %vm2192, %v2195, %v2198
      %v2200 = vsel %vm2190, nan, %v2199
      %v2201 = vand.u32 2147483647, %v434
      %vm2202 = vcmp.le.f32.partialorder %v2201, 0.7853982
      %vm2203 = vcmp.lt.s32.totalorder %v434, 0
      %v2204 = vand.u32 %v434, 2139095040
      %v2205 = vshrl.u32 %v2204, 23
      %v2206 = vsub.s32 %v2205, 127
      %v2207 = vand.u32 2147483647, %v434
      %v2208 = vand.u32 %v2207, 8388607
      %v2209 = vor.u32 %v2208, 8388608
      %v2210 = vsub.s32 0, %v2209
      %v2211 = vadd.s32 %v2206, 1
      %vm2212 = vcmp.gt.s32.totalorder %v2211, 0
      %v2213 = vsel %vm2212, %v2211, 0
      %v2214 = vshrl.u32 %v2213, 5
      %v2215 = vand.u32 %v2213, 31
      %v2216 = vsub.s32 32, %v2215
      %v2217 = vshrl.u32 683565275, %v2216
      %v2218 = vshll.u32 683565275, %v2215
      %v2219 = vshrl.u32 2475754826, %v2216
      %v2220 = vor.u32 %v2218, %v2219
      %v2221 = vshll.u32 2475754826, %v2215
      %v2222 = vshrl.u32 2131351028, %v2216
      %v2223 = vor.u32 %v2221, %v2222
      %v2224 = vshll.u32 2131351028, %v2215
      %v2225 = vshrl.u32 2102212464, %v2216
      %v2226 = vor.u32 %v2224, %v2225
      %v2227 = vshll.u32 2102212464, %v2215
      %v2228 = vshrl.u32 920167782, %v2216
      %v2229 = vor.u32 %v2227, %v2228
      %v2230 = vshll.u32 920167782, %v2215
      %v2231 = vshrl.u32 1326507024, %v2216
      %v2232 = vor.u32 %v2230, %v2231
      %vm2233 = vcmp.lt.s32.totalorder %v2214, 1
      %vm2234 = vcmp.lt.s32.totalorder %v2214, 2
      %vm2235 = vcmp.lt.s32.totalorder %v2214, 3
      %vm2236 = vcmp.lt.s32.totalorder %v2214, 4
      %v2237 = vsel %vm2233, %v2217, %v2220
      %v2238 = vsel %vm2236, %v2226, 2102212464
      %v2239 = vsel %vm2235, %v2223, %v2238
      %v2240 = vsel %vm2234, %v2237, %v2239
      %v2241 = vsel %vm2233, %v2220, %v2223
      %v2242 = vsel %vm2236, %v2229, 920167782
      %v2243 = vsel %vm2235, %v2226, %v2242
      %v2244 = vsel %vm2234, %v2241, %v2243
      %v2245 = vsel %vm2233, %v2223, %v2226
      %v2246 = vsel %vm2236, %v2232, 1326507024
      %v2247 = vsel %vm2235, %v2229, %v2246
      %v2248 = vsel %vm2234, %v2245, %v2247
      %v2249 = vshll.u32 %v2209, 8
      %v2250 = vmul.u32.u64.compose %v2249, %v2248
      %v2251 = vextract.low.u32 %v2250
      %v2252 = vextract.high.u32 %v2250
      %v2253 = vmul.u32.u64.compose %v2249, %v2244
      %v2254 = vextract.low.u32 %v2253
      %v2255 = vextract.high.u32 %v2253
      %v2256 = vmul.u32 %v2249, %v2240
      %v2257 = vadd.s32 %v2252, %v2254
      %vm2258 = vc.u32 %v2252, %v2254
      %v2259 = vadd.s32 %v2255, 1
      %v2260 = vsel %vm2258, %v2259, %v2255
      %v2261 = vadd.s32 %v2256, %v2260
      %v2262 = vadd.s32 %v2261, 536870912
      %v2263 = vshrl.u32 %v2262, 30
      %v2264 = vshll.u32 %v2263, 30
      %v2265 = vsub.s32 %v2261, %v2264
      %vm2266 = vcmp.lt.s32.totalorder %v2265, 0
      %v2267 = vsub.s32 0, %v2265
      %v2268 = vsel %vm2266, %v2267, %v2265
      %v2269 = vclz %v2268
      %v2270 = vsub.s32 %v2269, 2
      %vm2271 = vcmp.gt.s32.totalorder 0, %v2270
      %v2272 = vsel %vm2271, 0, %v2270
      %v2273 = vsub.s32 32, %v2272
      %v2274 = vshll.u32 %v2265, %v2272
      %v2275 = vshrl.u32 %v2257, %v2273
      %v2276 = vor.u32 %v2274, %v2275
      %v2277 = vsub.s32 4294967266, %v2272
      %v2278 = vadd.s32 %v2277, 127
      %v2279 = vshll.u32 %v2278, 23
      %v2280 = vor.u32 4788187, %v2279
      %v2281 = vand.u32 2147483647, %v2280
      %v2283 = vcvt.s32.f32 %v2276
      %v2284 = vmul.f32 %v2283, %v2281
      %v2285 = vxor.u32 %v2284, 2147483648
      %v2286 = vsel %vm2203, %v2285, %v2284
      %v2287 = vsub.s32 4, %v2263
      %v2288 = vsel %vm2203, %v2287, %v2263
      %v2289 = vsel %vm2202, %v434, %v2286
      %v2290 = vsel %vm2202, 0, %v2288
      %v2291 = vcosq.f32.pop %v2289
      %v2292 = vsinq.f32.pop %v2289
      %vm2293 = vweird.f32 %v434
      %v2294 = vand.u32 %v2290, 3
      %vm2295 = vcmp.lt.s32.totalorder %v2294, 2
      %vm2296 = vcmp.eq.s32.totalorder %v2294, 0
      %v2297 = vxor.u32 %v2292, 2147483648
      %v2298 = vsel %vm2296, %v2291, %v2297
      %vm2299 = vcmp.eq.s32.totalorder %v2294, 2
      %v2300 = vxor.u32 %v2291, 2147483648
      %v2301 = vsel %vm2299, %v2300, %v2292
      %v2302 = vsel %vm2295, %v2298, %v2301
      %v2303 = vsel %vm2293, nan, %v2302
      %v2304 = vand.u32 2147483647, %v435
      %vm2305 = vcmp.le.f32.partialorder %v2304, 0.7853982
      %vm2306 = vcmp.lt.s32.totalorder %v435, 0
      %v2307 = vand.u32 %v435, 2139095040
      %v2308 = vshrl.u32 %v2307, 23
      %v2309 = vsub.s32 %v2308, 127
      %v2310 = vand.u32 2147483647, %v435
      %v2311 = vand.u32 %v2310, 8388607
      %v2312 = vor.u32 %v2311, 8388608
      %v2313 = vsub.s32 0, %v2312
      %v2314 = vadd.s32 %v2309, 1
      %vm2315 = vcmp.gt.s32.totalorder %v2314, 0
      %v2316 = vsel %vm2315, %v2314, 0
      %v2317 = vshrl.u32 %v2316, 5
      %v2318 = vand.u32 %v2316, 31
      %v2319 = vsub.s32 32, %v2318
      %v2320 = vshrl.u32 683565275, %v2319
      %v2321 = vshll.u32 683565275, %v2318
      %v2322 = vshrl.u32 2475754826, %v2319
      %v2323 = vor.u32 %v2321, %v2322
      %v2324 = vshll.u32 2475754826, %v2318
      %v2325 = vshrl.u32 2131351028, %v2319
      %v2326 = vor.u32 %v2324, %v2325
      %v2327 = vshll.u32 2131351028, %v2318
      %v2328 = vshrl.u32 2102212464, %v2319
      %v2329 = vor.u32 %v2327, %v2328
      %v2330 = vshll.u32 2102212464, %v2318
      %v2331 = vshrl.u32 920167782, %v2319
      %v2332 = vor.u32 %v2330, %v2331
      %v2333 = vshll.u32 920167782, %v2318
      %v2334 = vshrl.u32 1326507024, %v2319
      %v2335 = vor.u32 %v2333, %v2334
      %vm2336 = vcmp.lt.s32.totalorder %v2317, 1
      %vm2337 = vcmp.lt.s32.totalorder %v2317, 2
      %vm2338 = vcmp.lt.s32.totalorder %v2317, 3
      %vm2339 = vcmp.lt.s32.totalorder %v2317, 4
      %v2340 = vsel %vm2336, %v2320, %v2323
      %v2341 = vsel %vm2339, %v2329, 2102212464
      %v2342 = vsel %vm2338, %v2326, %v2341
      %v2343 = vsel %vm2337, %v2340, %v2342
      %v2344 = vsel %vm2336, %v2323, %v2326
      %v2345 = vsel %vm2339, %v2332, 920167782
      %v2346 = vsel %vm2338, %v2329, %v2345
      %v2347 = vsel %vm2337, %v2344, %v2346
      %v2348 = vsel %vm2336, %v2326, %v2329
      %v2349 = vsel %vm2339, %v2335, 1326507024
      %v2350 = vsel %vm2338, %v2332, %v2349
      %v2351 = vsel %vm2337, %v2348, %v2350
      %v2352 = vshll.u32 %v2312, 8
      %v2353 = vmul.u32.u64.compose %v2352, %v2351
      %v2354 = vextract.low.u32 %v2353
      %v2355 = vextract.high.u32 %v2353
      %v2356 = vmul.u32.u64.compose %v2352, %v2347
      %v2357 = vextract.low.u32 %v2356
      %v2358 = vextract.high.u32 %v2356
      %v2359 = vmul.u32 %v2352, %v2343
      %v2360 = vadd.s32 %v2355, %v2357
      %vm2361 = vc.u32 %v2355, %v2357
      %v2362 = vadd.s32 %v2358, 1
      %v2363 = vsel %vm2361, %v2362, %v2358
      %v2364 = vadd.s32 %v2359, %v2363
      %v2365 = vadd.s32 %v2364, 536870912
      %v2366 = vshrl.u32 %v2365, 30
      %v2367 = vshll.u32 %v2366, 30
      %v2368 = vsub.s32 %v2364, %v2367
      %vm2369 = vcmp.lt.s32.totalorder %v2368, 0
      %v2370 = vsub.s32 0, %v2368
      %v2371 = vsel %vm2369, %v2370, %v2368
      %v2372 = vclz %v2371
      %v2373 = vsub.s32 %v2372, 2
      %vm2374 = vcmp.gt.s32.totalorder 0, %v2373
      %v2375 = vsel %vm2374, 0, %v2373
      %v2376 = vsub.s32 32, %v2375
      %v2377 = vshll.u32 %v2368, %v2375
      %v2378 = vshrl.u32 %v2360, %v2376
      %v2379 = vor.u32 %v2377, %v2378
      %v2380 = vsub.s32 4294967266, %v2375
      %v2381 = vadd.s32 %v2380, 127
      %v2382 = vshll.u32 %v2381, 23
      %v2383 = vor.u32 4788187, %v2382
      %v2384 = vand.u32 2147483647, %v2383
      %v2386 = vcvt.s32.f32 %v2379
      %v2387 = vmul.f32 %v2386, %v2384
      %v2388 = vxor.u32 %v2387, 2147483648
      %v2389 = vsel %vm2306, %v2388, %v2387
      %v2390 = vsub.s32 4, %v2366
      %v2391 = vsel %vm2306, %v2390, %v2366
      %v2392 = vsel %vm2305, %v435, %v2389
      %v2393 = vsel %vm2305, 0, %v2391
      %v2394 = vcosq.f32.pop %v2392
      %v2395 = vsinq.f32.pop %v2392
      %vm2396 = vweird.f32 %v435
      %v2397 = vand.u32 %v2393, 3
      %vm2398 = vcmp.lt.s32.totalorder %v2397, 2
      %vm2399 = vcmp.eq.s32.totalorder %v2397, 0
      %v2400 = vxor.u32 %v2395, 2147483648
      %v2401 = vsel %vm2399, %v2394, %v2400
      %vm2402 = vcmp.eq.s32.totalorder %v2397, 2
      %v2403 = vxor.u32 %v2394, 2147483648
      %v2404 = vsel %vm2402, %v2403, %v2395
      %v2405 = vsel %vm2398, %v2401, %v2404
      %v2406 = vsel %vm2396, nan, %v2405
      %v2407 = vand.u32 2147483647, %v436
      %vm2408 = vcmp.le.f32.partialorder %v2407, 0.7853982
      %vm2409 = vcmp.lt.s32.totalorder %v436, 0
      %v2410 = vand.u32 %v436, 2139095040
      %v2411 = vshrl.u32 %v2410, 23
      %v2412 = vsub.s32 %v2411, 127
      %v2413 = vand.u32 2147483647, %v436
      %v2414 = vand.u32 %v2413, 8388607
      %v2415 = vor.u32 %v2414, 8388608
      %v2416 = vsub.s32 0, %v2415
      %v2417 = vadd.s32 %v2412, 1
      %vm2418 = vcmp.gt.s32.totalorder %v2417, 0
      %v2419 = vsel %vm2418, %v2417, 0
      %v2420 = vshrl.u32 %v2419, 5
      %v2421 = vand.u32 %v2419, 31
      %v2422 = vsub.s32 32, %v2421
      %v2423 = vshrl.u32 683565275, %v2422
      %v2424 = vshll.u32 683565275, %v2421
      %v2425 = vshrl.u32 2475754826, %v2422
      %v2426 = vor.u32 %v2424, %v2425
      %v2427 = vshll.u32 2475754826, %v2421
      %v2428 = vshrl.u32 2131351028, %v2422
      %v2429 = vor.u32 %v2427, %v2428
      %v2430 = vshll.u32 2131351028, %v2421
      %v2431 = vshrl.u32 2102212464, %v2422
      %v2432 = vor.u32 %v2430, %v2431
      %v2433 = vshll.u32 2102212464, %v2421
      %v2434 = vshrl.u32 920167782, %v2422
      %v2435 = vor.u32 %v2433, %v2434
      %v2436 = vshll.u32 920167782, %v2421
      %v2437 = vshrl.u32 1326507024, %v2422
      %v2438 = vor.u32 %v2436, %v2437
      %vm2439 = vcmp.lt.s32.totalorder %v2420, 1
      %vm2440 = vcmp.lt.s32.totalorder %v2420, 2
      %vm2441 = vcmp.lt.s32.totalorder %v2420, 3
      %vm2442 = vcmp.lt.s32.totalorder %v2420, 4
      %v2443 = vsel %vm2439, %v2423, %v2426
      %v2444 = vsel %vm2442, %v2432, 2102212464
      %v2445 = vsel %vm2441, %v2429, %v2444
      %v2446 = vsel %vm2440, %v2443, %v2445
      %v2447 = vsel %vm2439, %v2426, %v2429
      %v2448 = vsel %vm2442, %v2435, 920167782
      %v2449 = vsel %vm2441, %v2432, %v2448
      %v2450 = vsel %vm2440, %v2447, %v2449
      %v2451 = vsel %vm2439, %v2429, %v2432
      %v2452 = vsel %vm2442, %v2438, 1326507024
      %v2453 = vsel %vm2441, %v2435, %v2452
      %v2454 = vsel %vm2440, %v2451, %v2453
      %v2455 = vshll.u32 %v2415, 8
      %v2456 = vmul.u32.u64.compose %v2455, %v2454
      %v2457 = vextract.low.u32 %v2456
      %v2458 = vextract.high.u32 %v2456
      %v2459 = vmul.u32.u64.compose %v2455, %v2450
      %v2460 = vextract.low.u32 %v2459
      %v2461 = vextract.high.u32 %v2459
      %v2462 = vmul.u32 %v2455, %v2446
      %v2463 = vadd.s32 %v2458, %v2460
      %vm2464 = vc.u32 %v2458, %v2460
      %v2465 = vadd.s32 %v2461, 1
      %v2466 = vsel %vm2464, %v2465, %v2461
      %v2467 = vadd.s32 %v2462, %v2466
      %v2468 = vadd.s32 %v2467, 536870912
      %v2469 = vshrl.u32 %v2468, 30
      %v2470 = vshll.u32 %v2469, 30
      %v2471 = vsub.s32 %v2467, %v2470
      %vm2472 = vcmp.lt.s32.totalorder %v2471, 0
      %v2473 = vsub.s32 0, %v2471
      %v2474 = vsel %vm2472, %v2473, %v2471
      %v2475 = vclz %v2474
      %v2476 = vsub.s32 %v2475, 2
      %vm2477 = vcmp.gt.s32.totalorder 0, %v2476
      %v2478 = vsel %vm2477, 0, %v2476
      %v2479 = vsub.s32 32, %v2478
      %v2480 = vshll.u32 %v2471, %v2478
      %v2481 = vshrl.u32 %v2463, %v2479
      %v2482 = vor.u32 %v2480, %v2481
      %v2483 = vsub.s32 4294967266, %v2478
      %v2484 = vadd.s32 %v2483, 127
      %v2485 = vshll.u32 %v2484, 23
      %v2486 = vor.u32 4788187, %v2485
      %v2487 = vand.u32 2147483647, %v2486
      %v2489 = vcvt.s32.f32 %v2482
      %v2490 = vmul.f32 %v2489, %v2487
      %v2491 = vxor.u32 %v2490, 2147483648
      %v2492 = vsel %vm2409, %v2491, %v2490
      %v2493 = vsub.s32 4, %v2469
      %v2494 = vsel %vm2409, %v2493, %v2469
      %v2495 = vsel %vm2408, %v436, %v2492
      %v2496 = vsel %vm2408, 0, %v2494
      %v2497 = vcosq.f32.pop %v2495
      %v2498 = vsinq.f32.pop %v2495
      %vm2499 = vweird.f32 %v436
      %v2500 = vand.u32 %v2496, 3
      %vm2501 = vcmp.lt.s32.totalorder %v2500, 2
      %vm2502 = vcmp.eq.s32.totalorder %v2500, 0
      %v2503 = vxor.u32 %v2498, 2147483648
      %v2504 = vsel %vm2502, %v2497, %v2503
      %vm2505 = vcmp.eq.s32.totalorder %v2500, 2
      %v2506 = vxor.u32 %v2497, 2147483648
      %v2507 = vsel %vm2505, %v2506, %v2498
      %v2508 = vsel %vm2501, %v2504, %v2507
      %v2509 = vsel %vm2499, nan, %v2508
      %v2510 = vand.u32 2147483647, %v437
      %vm2511 = vcmp.le.f32.partialorder %v2510, 0.7853982
      %vm2512 = vcmp.lt.s32.totalorder %v437, 0
      %v2513 = vand.u32 %v437, 2139095040
      %v2514 = vshrl.u32 %v2513, 23
      %v2515 = vsub.s32 %v2514, 127
      %v2516 = vand.u32 2147483647, %v437
      %v2517 = vand.u32 %v2516, 8388607
      %v2518 = vor.u32 %v2517, 8388608
      %v2519 = vsub.s32 0, %v2518
      %v2520 = vadd.s32 %v2515, 1
      %vm2521 = vcmp.gt.s32.totalorder %v2520, 0
      %v2522 = vsel %vm2521, %v2520, 0
      %v2523 = vshrl.u32 %v2522, 5
      %v2524 = vand.u32 %v2522, 31
      %v2525 = vsub.s32 32, %v2524
      %v2526 = vshrl.u32 683565275, %v2525
      %v2527 = vshll.u32 683565275, %v2524
      %v2528 = vshrl.u32 2475754826, %v2525
      %v2529 = vor.u32 %v2527, %v2528
      %v2530 = vshll.u32 2475754826, %v2524
      %v2531 = vshrl.u32 2131351028, %v2525
      %v2532 = vor.u32 %v2530, %v2531
      %v2533 = vshll.u32 2131351028, %v2524
      %v2534 = vshrl.u32 2102212464, %v2525
      %v2535 = vor.u32 %v2533, %v2534
      %v2536 = vshll.u32 2102212464, %v2524
      %v2537 = vshrl.u32 920167782, %v2525
      %v2538 = vor.u32 %v2536, %v2537
      %v2539 = vshll.u32 920167782, %v2524
      %v2540 = vshrl.u32 1326507024, %v2525
      %v2541 = vor.u32 %v2539, %v2540
      %vm2542 = vcmp.lt.s32.totalorder %v2523, 1
      %vm2543 = vcmp.lt.s32.totalorder %v2523, 2
      %vm2544 = vcmp.lt.s32.totalorder %v2523, 3
      %vm2545 = vcmp.lt.s32.totalorder %v2523, 4
      %v2546 = vsel %vm2542, %v2526, %v2529
      %v2547 = vsel %vm2545, %v2535, 2102212464
      %v2548 = vsel %vm2544, %v2532, %v2547
      %v2549 = vsel %vm2543, %v2546, %v2548
      %v2550 = vsel %vm2542, %v2529, %v2532
      %v2551 = vsel %vm2545, %v2538, 920167782
      %v2552 = vsel %vm2544, %v2535, %v2551
      %v2553 = vsel %vm2543, %v2550, %v2552
      %v2554 = vsel %vm2542, %v2532, %v2535
      %v2555 = vsel %vm2545, %v2541, 1326507024
      %v2556 = vsel %vm2544, %v2538, %v2555
      %v2557 = vsel %vm2543, %v2554, %v2556
      %v2558 = vshll.u32 %v2518, 8
      %v2559 = vmul.u32.u64.compose %v2558, %v2557
      %v2560 = vextract.low.u32 %v2559
      %v2561 = vextract.high.u32 %v2559
      %v2562 = vmul.u32.u64.compose %v2558, %v2553
      %v2563 = vextract.low.u32 %v2562
      %v2564 = vextract.high.u32 %v2562
      %v2565 = vmul.u32 %v2558, %v2549
      %v2566 = vadd.s32 %v2561, %v2563
      %vm2567 = vc.u32 %v2561, %v2563
      %v2568 = vadd.s32 %v2564, 1
      %v2569 = vsel %vm2567, %v2568, %v2564
      %v2570 = vadd.s32 %v2565, %v2569
      %v2571 = vadd.s32 %v2570, 536870912
      %v2572 = vshrl.u32 %v2571, 30
      %v2573 = vshll.u32 %v2572, 30
      %v2574 = vsub.s32 %v2570, %v2573
      %vm2575 = vcmp.lt.s32.totalorder %v2574, 0
      %v2576 = vsub.s32 0, %v2574
      %v2577 = vsel %vm2575, %v2576, %v2574
      %v2578 = vclz %v2577
      %v2579 = vsub.s32 %v2578, 2
      %vm2580 = vcmp.gt.s32.totalorder 0, %v2579
      %v2581 = vsel %vm2580, 0, %v2579
      %v2582 = vsub.s32 32, %v2581
      %v2583 = vshll.u32 %v2574, %v2581
      %v2584 = vshrl.u32 %v2566, %v2582
      %v2585 = vor.u32 %v2583, %v2584
      %v2586 = vsub.s32 4294967266, %v2581
      %v2587 = vadd.s32 %v2586, 127
      %v2588 = vshll.u32 %v2587, 23
      %v2589 = vor.u32 4788187, %v2588
      %v2590 = vand.u32 2147483647, %v2589
      %v2592 = vcvt.s32.f32 %v2585
      %v2593 = vmul.f32 %v2592, %v2590
      %v2594 = vxor.u32 %v2593, 2147483648
      %v2595 = vsel %vm2512, %v2594, %v2593
      %v2596 = vsub.s32 4, %v2572
      %v2597 = vsel %vm2512, %v2596, %v2572
      %v2598 = vsel %vm2511, %v437, %v2595
      %v2599 = vsel %vm2511, 0, %v2597
      %v2600 = vcosq.f32.pop %v2598
      %v2601 = vsinq.f32.pop %v2598
      %vm2602 = vweird.f32 %v437
      %v2603 = vand.u32 %v2599, 3
      %vm2604 = vcmp.lt.s32.totalorder %v2603, 2
      %vm2605 = vcmp.eq.s32.totalorder %v2603, 0
      %v2606 = vxor.u32 %v2601, 2147483648
      %v2607 = vsel %vm2605, %v2600, %v2606
      %vm2608 = vcmp.eq.s32.totalorder %v2603, 2
      %v2609 = vxor.u32 %v2600, 2147483648
      %v2610 = vsel %vm2608, %v2609, %v2601
      %v2611 = vsel %vm2604, %v2607, %v2610
      %v2612 = vsel %vm2602, nan, %v2611
      %v2613 = vand.u32 2147483647, %v438
      %vm2614 = vcmp.le.f32.partialorder %v2613, 0.7853982
      %vm2615 = vcmp.lt.s32.totalorder %v438, 0
      %v2616 = vand.u32 %v438, 2139095040
      %v2617 = vshrl.u32 %v2616, 23
      %v2618 = vsub.s32 %v2617, 127
      %v2619 = vand.u32 2147483647, %v438
      %v2620 = vand.u32 %v2619, 8388607
      %v2621 = vor.u32 %v2620, 8388608
      %v2622 = vsub.s32 0, %v2621
      %v2623 = vadd.s32 %v2618, 1
      %vm2624 = vcmp.gt.s32.totalorder %v2623, 0
      %v2625 = vsel %vm2624, %v2623, 0
      %v2626 = vshrl.u32 %v2625, 5
      %v2627 = vand.u32 %v2625, 31
      %v2628 = vsub.s32 32, %v2627
      %v2629 = vshrl.u32 683565275, %v2628
      %v2630 = vshll.u32 683565275, %v2627
      %v2631 = vshrl.u32 2475754826, %v2628
      %v2632 = vor.u32 %v2630, %v2631
      %v2633 = vshll.u32 2475754826, %v2627
      %v2634 = vshrl.u32 2131351028, %v2628
      %v2635 = vor.u32 %v2633, %v2634
      %v2636 = vshll.u32 2131351028, %v2627
      %v2637 = vshrl.u32 2102212464, %v2628
      %v2638 = vor.u32 %v2636, %v2637
      %v2639 = vshll.u32 2102212464, %v2627
      %v2640 = vshrl.u32 920167782, %v2628
      %v2641 = vor.u32 %v2639, %v2640
      %v2642 = vshll.u32 920167782, %v2627
      %v2643 = vshrl.u32 1326507024, %v2628
      %v2644 = vor.u32 %v2642, %v2643
      %vm2645 = vcmp.lt.s32.totalorder %v2626, 1
      %vm2646 = vcmp.lt.s32.totalorder %v2626, 2
      %vm2647 = vcmp.lt.s32.totalorder %v2626, 3
      %vm2648 = vcmp.lt.s32.totalorder %v2626, 4
      %v2649 = vsel %vm2645, %v2629, %v2632
      %v2650 = vsel %vm2648, %v2638, 2102212464
      %v2651 = vsel %vm2647, %v2635, %v2650
      %v2652 = vsel %vm2646, %v2649, %v2651
      %v2653 = vsel %vm2645, %v2632, %v2635
      %v2654 = vsel %vm2648, %v2641, 920167782
      %v2655 = vsel %vm2647, %v2638, %v2654
      %v2656 = vsel %vm2646, %v2653, %v2655
      %v2657 = vsel %vm2645, %v2635, %v2638
      %v2658 = vsel %vm2648, %v2644, 1326507024
      %v2659 = vsel %vm2647, %v2641, %v2658
      %v2660 = vsel %vm2646, %v2657, %v2659
      %v2661 = vshll.u32 %v2621, 8
      %v2662 = vmul.u32.u64.compose %v2661, %v2660
      %v2663 = vextract.low.u32 %v2662
      %v2664 = vextract.high.u32 %v2662
      %v2665 = vmul.u32.u64.compose %v2661, %v2656
      %v2666 = vextract.low.u32 %v2665
      %v2667 = vextract.high.u32 %v2665
      %v2668 = vmul.u32 %v2661, %v2652
      %v2669 = vadd.s32 %v2664, %v2666
      %vm2670 = vc.u32 %v2664, %v2666
      %v2671 = vadd.s32 %v2667, 1
      %v2672 = vsel %vm2670, %v2671, %v2667
      %v2673 = vadd.s32 %v2668, %v2672
      %v2674 = vadd.s32 %v2673, 536870912
      %v2675 = vshrl.u32 %v2674, 30
      %v2676 = vshll.u32 %v2675, 30
      %v2677 = vsub.s32 %v2673, %v2676
      %vm2678 = vcmp.lt.s32.totalorder %v2677, 0
      %v2679 = vsub.s32 0, %v2677
      %v2680 = vsel %vm2678, %v2679, %v2677
      %v2681 = vclz %v2680
      %v2682 = vsub.s32 %v2681, 2
      %vm2683 = vcmp.gt.s32.totalorder 0, %v2682
      %v2684 = vsel %vm2683, 0, %v2682
      %v2685 = vsub.s32 32, %v2684
      %v2686 = vshll.u32 %v2677, %v2684
      %v2687 = vshrl.u32 %v2669, %v2685
      %v2688 = vor.u32 %v2686, %v2687
      %v2689 = vsub.s32 4294967266, %v2684
      %v2690 = vadd.s32 %v2689, 127
      %v2691 = vshll.u32 %v2690, 23
      %v2692 = vor.u32 4788187, %v2691
      %v2693 = vand.u32 2147483647, %v2692
      %v2695 = vcvt.s32.f32 %v2688
      %v2696 = vmul.f32 %v2695, %v2693
      %v2697 = vxor.u32 %v2696, 2147483648
      %v2698 = vsel %vm2615, %v2697, %v2696
      %v2699 = vsub.s32 4, %v2675
      %v2700 = vsel %vm2615, %v2699, %v2675
      %v2701 = vsel %vm2614, %v438, %v2698
      %v2702 = vsel %vm2614, 0, %v2700
      %v2703 = vcosq.f32.pop %v2701
      %v2704 = vsinq.f32.pop %v2701
      %vm2705 = vweird.f32 %v438
      %v2706 = vand.u32 %v2702, 3
      %vm2707 = vcmp.lt.s32.totalorder %v2706, 2
      %vm2708 = vcmp.eq.s32.totalorder %v2706, 0
      %v2709 = vxor.u32 %v2704, 2147483648
      %v2710 = vsel %vm2708, %v2703, %v2709
      %vm2711 = vcmp.eq.s32.totalorder %v2706, 2
      %v2712 = vxor.u32 %v2703, 2147483648
      %v2713 = vsel %vm2711, %v2712, %v2704
      %v2714 = vsel %vm2707, %v2710, %v2713
      %v2715 = vsel %vm2705, nan, %v2714
      %v2716 = vand.u32 2147483647, %v439
      %vm2717 = vcmp.le.f32.partialorder %v2716, 0.7853982
      %vm2718 = vcmp.lt.s32.totalorder %v439, 0
      %v2719 = vand.u32 %v439, 2139095040
      %v2720 = vshrl.u32 %v2719, 23
      %v2721 = vsub.s32 %v2720, 127
      %v2722 = vand.u32 2147483647, %v439
      %v2723 = vand.u32 %v2722, 8388607
      %v2724 = vor.u32 %v2723, 8388608
      %v2725 = vsub.s32 0, %v2724
      %v2726 = vadd.s32 %v2721, 1
      %vm2727 = vcmp.gt.s32.totalorder %v2726, 0
      %v2728 = vsel %vm2727, %v2726, 0
      %v2729 = vshrl.u32 %v2728, 5
      %v2730 = vand.u32 %v2728, 31
      %v2731 = vsub.s32 32, %v2730
      %v2732 = vshrl.u32 683565275, %v2731
      %v2733 = vshll.u32 683565275, %v2730
      %v2734 = vshrl.u32 2475754826, %v2731
      %v2735 = vor.u32 %v2733, %v2734
      %v2736 = vshll.u32 2475754826, %v2730
      %v2737 = vshrl.u32 2131351028, %v2731
      %v2738 = vor.u32 %v2736, %v2737
      %v2739 = vshll.u32 2131351028, %v2730
      %v2740 = vshrl.u32 2102212464, %v2731
      %v2741 = vor.u32 %v2739, %v2740
      %v2742 = vshll.u32 2102212464, %v2730
      %v2743 = vshrl.u32 920167782, %v2731
      %v2744 = vor.u32 %v2742, %v2743
      %v2745 = vshll.u32 920167782, %v2730
      %v2746 = vshrl.u32 1326507024, %v2731
      %v2747 = vor.u32 %v2745, %v2746
      %vm2748 = vcmp.lt.s32.totalorder %v2729, 1
      %vm2749 = vcmp.lt.s32.totalorder %v2729, 2
      %vm2750 = vcmp.lt.s32.totalorder %v2729, 3
      %vm2751 = vcmp.lt.s32.totalorder %v2729, 4
      %v2752 = vsel %vm2748, %v2732, %v2735
      %v2753 = vsel %vm2751, %v2741, 2102212464
      %v2754 = vsel %vm2750, %v2738, %v2753
      %v2755 = vsel %vm2749, %v2752, %v2754
      %v2756 = vsel %vm2748, %v2735, %v2738
      %v2757 = vsel %vm2751, %v2744, 920167782
      %v2758 = vsel %vm2750, %v2741, %v2757
      %v2759 = vsel %vm2749, %v2756, %v2758
      %v2760 = vsel %vm2748, %v2738, %v2741
      %v2761 = vsel %vm2751, %v2747, 1326507024
      %v2762 = vsel %vm2750, %v2744, %v2761
      %v2763 = vsel %vm2749, %v2760, %v2762
      %v2764 = vshll.u32 %v2724, 8
      %v2765 = vmul.u32.u64.compose %v2764, %v2763
      %v2766 = vextract.low.u32 %v2765
      %v2767 = vextract.high.u32 %v2765
      %v2768 = vmul.u32.u64.compose %v2764, %v2759
      %v2769 = vextract.low.u32 %v2768
      %v2770 = vextract.high.u32 %v2768
      %v2771 = vmul.u32 %v2764, %v2755
      %v2772 = vadd.s32 %v2767, %v2769
      %vm2773 = vc.u32 %v2767, %v2769
      %v2774 = vadd.s32 %v2770, 1
      %v2775 = vsel %vm2773, %v2774, %v2770
      %v2776 = vadd.s32 %v2771, %v2775
      %v2777 = vadd.s32 %v2776, 536870912
      %v2778 = vshrl.u32 %v2777, 30
      %v2779 = vshll.u32 %v2778, 30
      %v2780 = vsub.s32 %v2776, %v2779
      %vm2781 = vcmp.lt.s32.totalorder %v2780, 0
      %v2782 = vsub.s32 0, %v2780
      %v2783 = vsel %vm2781, %v2782, %v2780
      %v2784 = vclz %v2783
      %v2785 = vsub.s32 %v2784, 2
      %vm2786 = vcmp.gt.s32.totalorder 0, %v2785
      %v2787 = vsel %vm2786, 0, %v2785
      %v2788 = vsub.s32 32, %v2787
      %v2789 = vshll.u32 %v2780, %v2787
      %v2790 = vshrl.u32 %v2772, %v2788
      %v2791 = vor.u32 %v2789, %v2790
      %v2792 = vsub.s32 4294967266, %v2787
      %v2793 = vadd.s32 %v2792, 127
      %v2794 = vshll.u32 %v2793, 23
      %v2795 = vor.u32 4788187, %v2794
      %v2796 = vand.u32 2147483647, %v2795
      %v2798 = vcvt.s32.f32 %v2791
      %v2799 = vmul.f32 %v2798, %v2796
      %v2800 = vxor.u32 %v2799, 2147483648
      %v2801 = vsel %vm2718, %v2800, %v2799
      %v2802 = vsub.s32 4, %v2778
      %v2803 = vsel %vm2718, %v2802, %v2778
      %v2804 = vsel %vm2717, %v439, %v2801
      %v2805 = vsel %vm2717, 0, %v2803
      %v2806 = vcosq.f32.pop %v2804
      %v2807 = vsinq.f32.pop %v2804
      %vm2808 = vweird.f32 %v439
      %v2809 = vand.u32 %v2805, 3
      %vm2810 = vcmp.lt.s32.totalorder %v2809, 2
      %vm2811 = vcmp.eq.s32.totalorder %v2809, 0
      %v2812 = vxor.u32 %v2807, 2147483648
      %v2813 = vsel %vm2811, %v2806, %v2812
      %vm2814 = vcmp.eq.s32.totalorder %v2809, 2
      %v2815 = vxor.u32 %v2806, 2147483648
      %v2816 = vsel %vm2814, %v2815, %v2807
      %v2817 = vsel %vm2810, %v2813, %v2816
      %v2818 = vsel %vm2808, nan, %v2817
      %v2819 = vand.u32 2147483647, %v440
      %vm2820 = vcmp.le.f32.partialorder %v2819, 0.7853982
      %vm2821 = vcmp.lt.s32.totalorder %v440, 0
      %v2822 = vand.u32 %v440, 2139095040
      %v2823 = vshrl.u32 %v2822, 23
      %v2824 = vsub.s32 %v2823, 127
      %v2825 = vand.u32 2147483647, %v440
      %v2826 = vand.u32 %v2825, 8388607
      %v2827 = vor.u32 %v2826, 8388608
      %v2828 = vsub.s32 0, %v2827
      %v2829 = vadd.s32 %v2824, 1
      %vm2830 = vcmp.gt.s32.totalorder %v2829, 0
      %v2831 = vsel %vm2830, %v2829, 0
      %v2832 = vshrl.u32 %v2831, 5
      %v2833 = vand.u32 %v2831, 31
      %v2834 = vsub.s32 32, %v2833
      %v2835 = vshrl.u32 683565275, %v2834
      %v2836 = vshll.u32 683565275, %v2833
      %v2837 = vshrl.u32 2475754826, %v2834
      %v2838 = vor.u32 %v2836, %v2837
      %v2839 = vshll.u32 2475754826, %v2833
      %v2840 = vshrl.u32 2131351028, %v2834
      %v2841 = vor.u32 %v2839, %v2840
      %v2842 = vshll.u32 2131351028, %v2833
      %v2843 = vshrl.u32 2102212464, %v2834
      %v2844 = vor.u32 %v2842, %v2843
      %v2845 = vshll.u32 2102212464, %v2833
      %v2846 = vshrl.u32 920167782, %v2834
      %v2847 = vor.u32 %v2845, %v2846
      %v2848 = vshll.u32 920167782, %v2833
      %v2849 = vshrl.u32 1326507024, %v2834
      %v2850 = vor.u32 %v2848, %v2849
      %vm2851 = vcmp.lt.s32.totalorder %v2832, 1
      %vm2852 = vcmp.lt.s32.totalorder %v2832, 2
      %vm2853 = vcmp.lt.s32.totalorder %v2832, 3
      %vm2854 = vcmp.lt.s32.totalorder %v2832, 4
      %v2855 = vsel %vm2851, %v2835, %v2838
      %v2856 = vsel %vm2854, %v2844, 2102212464
      %v2857 = vsel %vm2853, %v2841, %v2856
      %v2858 = vsel %vm2852, %v2855, %v2857
      %v2859 = vsel %vm2851, %v2838, %v2841
      %v2860 = vsel %vm2854, %v2847, 920167782
      %v2861 = vsel %vm2853, %v2844, %v2860
      %v2862 = vsel %vm2852, %v2859, %v2861
      %v2863 = vsel %vm2851, %v2841, %v2844
      %v2864 = vsel %vm2854, %v2850, 1326507024
      %v2865 = vsel %vm2853, %v2847, %v2864
      %v2866 = vsel %vm2852, %v2863, %v2865
      %v2867 = vshll.u32 %v2827, 8
      %v2868 = vmul.u32.u64.compose %v2867, %v2866
      %v2869 = vextract.low.u32 %v2868
      %v2870 = vextract.high.u32 %v2868
      %v2871 = vmul.u32.u64.compose %v2867, %v2862
      %v2872 = vextract.low.u32 %v2871
      %v2873 = vextract.high.u32 %v2871
      %v2874 = vmul.u32 %v2867, %v2858
      %v2875 = vadd.s32 %v2870, %v2872
      %vm2876 = vc.u32 %v2870, %v2872
      %v2877 = vadd.s32 %v2873, 1
      %v2878 = vsel %vm2876, %v2877, %v2873
      %v2879 = vadd.s32 %v2874, %v2878
      %v2880 = vadd.s32 %v2879, 536870912
      %v2881 = vshrl.u32 %v2880, 30
      %v2882 = vshll.u32 %v2881, 30
      %v2883 = vsub.s32 %v2879, %v2882
      %vm2884 = vcmp.lt.s32.totalorder %v2883, 0
      %v2885 = vsub.s32 0, %v2883
      %v2886 = vsel %vm2884, %v2885, %v2883
      %v2887 = vclz %v2886
      %v2888 = vsub.s32 %v2887, 2
      %vm2889 = vcmp.gt.s32.totalorder 0, %v2888
      %v2890 = vsel %vm2889, 0, %v2888
      %v2891 = vsub.s32 32, %v2890
      %v2892 = vshll.u32 %v2883, %v2890
      %v2893 = vshrl.u32 %v2875, %v2891
      %v2894 = vor.u32 %v2892, %v2893
      %v2895 = vsub.s32 4294967266, %v2890
      %v2896 = vadd.s32 %v2895, 127
      %v2897 = vshll.u32 %v2896, 23
      %v2898 = vor.u32 4788187, %v2897
      %v2899 = vand.u32 2147483647, %v2898
      %v2901 = vcvt.s32.f32 %v2894
      %v2902 = vmul.f32 %v2901, %v2899
      %v2903 = vxor.u32 %v2902, 2147483648
      %v2904 = vsel %vm2821, %v2903, %v2902
      %v2905 = vsub.s32 4, %v2881
      %v2906 = vsel %vm2821, %v2905, %v2881
      %v2907 = vsel %vm2820, %v440, %v2904
      %v2908 = vsel %vm2820, 0, %v2906
      %v2909 = vcosq.f32.pop %v2907
      %v2910 = vsinq.f32.pop %v2907
      %vm2911 = vweird.f32 %v440
      %v2912 = vand.u32 %v2908, 3
      %vm2913 = vcmp.lt.s32.totalorder %v2912, 2
      %vm2914 = vcmp.eq.s32.totalorder %v2912, 0
      %v2915 = vxor.u32 %v2910, 2147483648
      %v2916 = vsel %vm2914, %v2909, %v2915
      %vm2917 = vcmp.eq.s32.totalorder %v2912, 2
      %v2918 = vxor.u32 %v2909, 2147483648
      %v2919 = vsel %vm2917, %v2918, %v2910
      %v2920 = vsel %vm2913, %v2916, %v2919
      %v2921 = vsel %vm2911, nan, %v2920
      %v2922 = vand.u32 2147483647, %v441
      %vm2923 = vcmp.le.f32.partialorder %v2922, 0.7853982
      %vm2924 = vcmp.lt.s32.totalorder %v441, 0
      %v2925 = vand.u32 %v441, 2139095040
      %v2926 = vshrl.u32 %v2925, 23
      %v2927 = vsub.s32 %v2926, 127
      %v2928 = vand.u32 2147483647, %v441
      %v2929 = vand.u32 %v2928, 8388607
      %v2930 = vor.u32 %v2929, 8388608
      %v2931 = vsub.s32 0, %v2930
      %v2932 = vadd.s32 %v2927, 1
      %vm2933 = vcmp.gt.s32.totalorder %v2932, 0
      %v2934 = vsel %vm2933, %v2932, 0
      %v2935 = vshrl.u32 %v2934, 5
      %v2936 = vand.u32 %v2934, 31
      %v2937 = vsub.s32 32, %v2936
      %v2938 = vshrl.u32 683565275, %v2937
      %v2939 = vshll.u32 683565275, %v2936
      %v2940 = vshrl.u32 2475754826, %v2937
      %v2941 = vor.u32 %v2939, %v2940
      %v2942 = vshll.u32 2475754826, %v2936
      %v2943 = vshrl.u32 2131351028, %v2937
      %v2944 = vor.u32 %v2942, %v2943
      %v2945 = vshll.u32 2131351028, %v2936
      %v2946 = vshrl.u32 2102212464, %v2937
      %v2947 = vor.u32 %v2945, %v2946
      %v2948 = vshll.u32 2102212464, %v2936
      %v2949 = vshrl.u32 920167782, %v2937
      %v2950 = vor.u32 %v2948, %v2949
      %v2951 = vshll.u32 920167782, %v2936
      %v2952 = vshrl.u32 1326507024, %v2937
      %v2953 = vor.u32 %v2951, %v2952
      %vm2954 = vcmp.lt.s32.totalorder %v2935, 1
      %vm2955 = vcmp.lt.s32.totalorder %v2935, 2
      %vm2956 = vcmp.lt.s32.totalorder %v2935, 3
      %vm2957 = vcmp.lt.s32.totalorder %v2935, 4
      %v2958 = vsel %vm2954, %v2938, %v2941
      %v2959 = vsel %vm2957, %v2947, 2102212464
      %v2960 = vsel %vm2956, %v2944, %v2959
      %v2961 = vsel %vm2955, %v2958, %v2960
      %v2962 = vsel %vm2954, %v2941, %v2944
      %v2963 = vsel %vm2957, %v2950, 920167782
      %v2964 = vsel %vm2956, %v2947, %v2963
      %v2965 = vsel %vm2955, %v2962, %v2964
      %v2966 = vsel %vm2954, %v2944, %v2947
      %v2967 = vsel %vm2957, %v2953, 1326507024
      %v2968 = vsel %vm2956, %v2950, %v2967
      %v2969 = vsel %vm2955, %v2966, %v2968
      %v2970 = vshll.u32 %v2930, 8
      %v2971 = vmul.u32.u64.compose %v2970, %v2969
      %v2972 = vextract.low.u32 %v2971
      %v2973 = vextract.high.u32 %v2971
      %v2974 = vmul.u32.u64.compose %v2970, %v2965
      %v2975 = vextract.low.u32 %v2974
      %v2976 = vextract.high.u32 %v2974
      %v2977 = vmul.u32 %v2970, %v2961
      %v2978 = vadd.s32 %v2973, %v2975
      %vm2979 = vc.u32 %v2973, %v2975
      %v2980 = vadd.s32 %v2976, 1
      %v2981 = vsel %vm2979, %v2980, %v2976
      %v2982 = vadd.s32 %v2977, %v2981
      %v2983 = vadd.s32 %v2982, 536870912
      %v2984 = vshrl.u32 %v2983, 30
      %v2985 = vshll.u32 %v2984, 30
      %v2986 = vsub.s32 %v2982, %v2985
      %vm2987 = vcmp.lt.s32.totalorder %v2986, 0
      %v2988 = vsub.s32 0, %v2986
      %v2989 = vsel %vm2987, %v2988, %v2986
      %v2990 = vclz %v2989
      %v2991 = vsub.s32 %v2990, 2
      %vm2992 = vcmp.gt.s32.totalorder 0, %v2991
      %v2993 = vsel %vm2992, 0, %v2991
      %v2994 = vsub.s32 32, %v2993
      %v2995 = vshll.u32 %v2986, %v2993
      %v2996 = vshrl.u32 %v2978, %v2994
      %v2997 = vor.u32 %v2995, %v2996
      %v2998 = vsub.s32 4294967266, %v2993
      %v2999 = vadd.s32 %v2998, 127
      %v3000 = vshll.u32 %v2999, 23
      %v3001 = vor.u32 4788187, %v3000
      %v3002 = vand.u32 2147483647, %v3001
      %v3004 = vcvt.s32.f32 %v2997
      %v3005 = vmul.f32 %v3004, %v3002
      %v3006 = vxor.u32 %v3005, 2147483648
      %v3007 = vsel %vm2924, %v3006, %v3005
      %v3008 = vsub.s32 4, %v2984
      %v3009 = vsel %vm2924, %v3008, %v2984
      %v3010 = vsel %vm2923, %v441, %v3007
      %v3011 = vsel %vm2923, 0, %v3009
      %v3012 = vcosq.f32.pop %v3010
      %v3013 = vsinq.f32.pop %v3010
      %vm3014 = vweird.f32 %v441
      %v3015 = vand.u32 %v3011, 3
      %vm3016 = vcmp.lt.s32.totalorder %v3015, 2
      %vm3017 = vcmp.eq.s32.totalorder %v3015, 0
      %v3018 = vxor.u32 %v3013, 2147483648
      %v3019 = vsel %vm3017, %v3012, %v3018
      %vm3020 = vcmp.eq.s32.totalorder %v3015, 2
      %v3021 = vxor.u32 %v3012, 2147483648
      %v3022 = vsel %vm3020, %v3021, %v3013
      %v3023 = vsel %vm3016, %v3019, %v3022
      %v3024 = vsel %vm3014, nan, %v3023
      %v3025 = vand.u32 2147483647, %v442
      %vm3026 = vcmp.le.f32.partialorder %v3025, 0.7853982
      %vm3027 = vcmp.lt.s32.totalorder %v442, 0
      %v3028 = vand.u32 %v442, 2139095040
      %v3029 = vshrl.u32 %v3028, 23
      %v3030 = vsub.s32 %v3029, 127
      %v3031 = vand.u32 2147483647, %v442
      %v3032 = vand.u32 %v3031, 8388607
      %v3033 = vor.u32 %v3032, 8388608
      %v3034 = vsub.s32 0, %v3033
      %v3035 = vadd.s32 %v3030, 1
      %vm3036 = vcmp.gt.s32.totalorder %v3035, 0
      %v3037 = vsel %vm3036, %v3035, 0
      %v3038 = vshrl.u32 %v3037, 5
      %v3039 = vand.u32 %v3037, 31
      %v3040 = vsub.s32 32, %v3039
      %v3041 = vshrl.u32 683565275, %v3040
      %v3042 = vshll.u32 683565275, %v3039
      %v3043 = vshrl.u32 2475754826, %v3040
      %v3044 = vor.u32 %v3042, %v3043
      %v3045 = vshll.u32 2475754826, %v3039
      %v3046 = vshrl.u32 2131351028, %v3040
      %v3047 = vor.u32 %v3045, %v3046
      %v3048 = vshll.u32 2131351028, %v3039
      %v3049 = vshrl.u32 2102212464, %v3040
      %v3050 = vor.u32 %v3048, %v3049
      %v3051 = vshll.u32 2102212464, %v3039
      %v3052 = vshrl.u32 920167782, %v3040
      %v3053 = vor.u32 %v3051, %v3052
      %v3054 = vshll.u32 920167782, %v3039
      %v3055 = vshrl.u32 1326507024, %v3040
      %v3056 = vor.u32 %v3054, %v3055
      %vm3057 = vcmp.lt.s32.totalorder %v3038, 1
      %vm3058 = vcmp.lt.s32.totalorder %v3038, 2
      %vm3059 = vcmp.lt.s32.totalorder %v3038, 3
      %vm3060 = vcmp.lt.s32.totalorder %v3038, 4
      %v3061 = vsel %vm3057, %v3041, %v3044
      %v3062 = vsel %vm3060, %v3050, 2102212464
      %v3063 = vsel %vm3059, %v3047, %v3062
      %v3064 = vsel %vm3058, %v3061, %v3063
      %v3065 = vsel %vm3057, %v3044, %v3047
      %v3066 = vsel %vm3060, %v3053, 920167782
      %v3067 = vsel %vm3059, %v3050, %v3066
      %v3068 = vsel %vm3058, %v3065, %v3067
      %v3069 = vsel %vm3057, %v3047, %v3050
      %v3070 = vsel %vm3060, %v3056, 1326507024
      %v3071 = vsel %vm3059, %v3053, %v3070
      %v3072 = vsel %vm3058, %v3069, %v3071
      %v3073 = vshll.u32 %v3033, 8
      %v3074 = vmul.u32.u64.compose %v3073, %v3072
      %v3075 = vextract.low.u32 %v3074
      %v3076 = vextract.high.u32 %v3074
      %v3077 = vmul.u32.u64.compose %v3073, %v3068
      %v3078 = vextract.low.u32 %v3077
      %v3079 = vextract.high.u32 %v3077
      %v3080 = vmul.u32 %v3073, %v3064
      %v3081 = vadd.s32 %v3076, %v3078
      %vm3082 = vc.u32 %v3076, %v3078
      %v3083 = vadd.s32 %v3079, 1
      %v3084 = vsel %vm3082, %v3083, %v3079
      %v3085 = vadd.s32 %v3080, %v3084
      %v3086 = vadd.s32 %v3085, 536870912
      %v3087 = vshrl.u32 %v3086, 30
      %v3088 = vshll.u32 %v3087, 30
      %v3089 = vsub.s32 %v3085, %v3088
      %vm3090 = vcmp.lt.s32.totalorder %v3089, 0
      %v3091 = vsub.s32 0, %v3089
      %v3092 = vsel %vm3090, %v3091, %v3089
      %v3093 = vclz %v3092
      %v3094 = vsub.s32 %v3093, 2
      %vm3095 = vcmp.gt.s32.totalorder 0, %v3094
      %v3096 = vsel %vm3095, 0, %v3094
      %v3097 = vsub.s32 32, %v3096
      %v3098 = vshll.u32 %v3089, %v3096
      %v3099 = vshrl.u32 %v3081, %v3097
      %v3100 = vor.u32 %v3098, %v3099
      %v3101 = vsub.s32 4294967266, %v3096
      %v3102 = vadd.s32 %v3101, 127
      %v3103 = vshll.u32 %v3102, 23
      %v3104 = vor.u32 4788187, %v3103
      %v3105 = vand.u32 2147483647, %v3104
      %v3107 = vcvt.s32.f32 %v3100
      %v3108 = vmul.f32 %v3107, %v3105
      %v3109 = vxor.u32 %v3108, 2147483648
      %v3110 = vsel %vm3027, %v3109, %v3108
      %v3111 = vsub.s32 4, %v3087
      %v3112 = vsel %vm3027, %v3111, %v3087
      %v3113 = vsel %vm3026, %v442, %v3110
      %v3114 = vsel %vm3026, 0, %v3112
      %v3115 = vcosq.f32.pop %v3113
      %v3116 = vsinq.f32.pop %v3113
      %vm3117 = vweird.f32 %v442
      %v3118 = vand.u32 %v3114, 3
      %vm3119 = vcmp.lt.s32.totalorder %v3118, 2
      %vm3120 = vcmp.eq.s32.totalorder %v3118, 0
      %v3121 = vxor.u32 %v3116, 2147483648
      %v3122 = vsel %vm3120, %v3115, %v3121
      %vm3123 = vcmp.eq.s32.totalorder %v3118, 2
      %v3124 = vxor.u32 %v3115, 2147483648
      %v3125 = vsel %vm3123, %v3124, %v3116
      %v3126 = vsel %vm3119, %v3122, %v3125
      %v3127 = vsel %vm3117, nan, %v3126
      %v3128 = vand.u32 2147483647, %v443
      %vm3129 = vcmp.le.f32.partialorder %v3128, 0.7853982
      %vm3130 = vcmp.lt.s32.totalorder %v443, 0
      %v3131 = vand.u32 %v443, 2139095040
      %v3132 = vshrl.u32 %v3131, 23
      %v3133 = vsub.s32 %v3132, 127
      %v3134 = vand.u32 2147483647, %v443
      %v3135 = vand.u32 %v3134, 8388607
      %v3136 = vor.u32 %v3135, 8388608
      %v3137 = vsub.s32 0, %v3136
      %v3138 = vadd.s32 %v3133, 1
      %vm3139 = vcmp.gt.s32.totalorder %v3138, 0
      %v3140 = vsel %vm3139, %v3138, 0
      %v3141 = vshrl.u32 %v3140, 5
      %v3142 = vand.u32 %v3140, 31
      %v3143 = vsub.s32 32, %v3142
      %v3144 = vshrl.u32 683565275, %v3143
      %v3145 = vshll.u32 683565275, %v3142
      %v3146 = vshrl.u32 2475754826, %v3143
      %v3147 = vor.u32 %v3145, %v3146
      %v3148 = vshll.u32 2475754826, %v3142
      %v3149 = vshrl.u32 2131351028, %v3143
      %v3150 = vor.u32 %v3148, %v3149
      %v3151 = vshll.u32 2131351028, %v3142
      %v3152 = vshrl.u32 2102212464, %v3143
      %v3153 = vor.u32 %v3151, %v3152
      %v3154 = vshll.u32 2102212464, %v3142
      %v3155 = vshrl.u32 920167782, %v3143
      %v3156 = vor.u32 %v3154, %v3155
      %v3157 = vshll.u32 920167782, %v3142
      %v3158 = vshrl.u32 1326507024, %v3143
      %v3159 = vor.u32 %v3157, %v3158
      %vm3160 = vcmp.lt.s32.totalorder %v3141, 1
      %vm3161 = vcmp.lt.s32.totalorder %v3141, 2
      %vm3162 = vcmp.lt.s32.totalorder %v3141, 3
      %vm3163 = vcmp.lt.s32.totalorder %v3141, 4
      %v3164 = vsel %vm3160, %v3144, %v3147
      %v3165 = vsel %vm3163, %v3153, 2102212464
      %v3166 = vsel %vm3162, %v3150, %v3165
      %v3167 = vsel %vm3161, %v3164, %v3166
      %v3168 = vsel %vm3160, %v3147, %v3150
      %v3169 = vsel %vm3163, %v3156, 920167782
      %v3170 = vsel %vm3162, %v3153, %v3169
      %v3171 = vsel %vm3161, %v3168, %v3170
      %v3172 = vsel %vm3160, %v3150, %v3153
      %v3173 = vsel %vm3163, %v3159, 1326507024
      %v3174 = vsel %vm3162, %v3156, %v3173
      %v3175 = vsel %vm3161, %v3172, %v3174
      %v3176 = vshll.u32 %v3136, 8
      %v3177 = vmul.u32.u64.compose %v3176, %v3175
      %v3178 = vextract.low.u32 %v3177
      %v3179 = vextract.high.u32 %v3177
      %v3180 = vmul.u32.u64.compose %v3176, %v3171
      %v3181 = vextract.low.u32 %v3180
      %v3182 = vextract.high.u32 %v3180
      %v3183 = vmul.u32 %v3176, %v3167
      %v3184 = vadd.s32 %v3179, %v3181
      %vm3185 = vc.u32 %v3179, %v3181
      %v3186 = vadd.s32 %v3182, 1
      %v3187 = vsel %vm3185, %v3186, %v3182
      %v3188 = vadd.s32 %v3183, %v3187
      %v3189 = vadd.s32 %v3188, 536870912
      %v3190 = vshrl.u32 %v3189, 30
      %v3191 = vshll.u32 %v3190, 30
      %v3192 = vsub.s32 %v3188, %v3191
      %vm3193 = vcmp.lt.s32.totalorder %v3192, 0
      %v3194 = vsub.s32 0, %v3192
      %v3195 = vsel %vm3193, %v3194, %v3192
      %v3196 = vclz %v3195
      %v3197 = vsub.s32 %v3196, 2
      %vm3198 = vcmp.gt.s32.totalorder 0, %v3197
      %v3199 = vsel %vm3198, 0, %v3197
      %v3200 = vsub.s32 32, %v3199
      %v3201 = vshll.u32 %v3192, %v3199
      %v3202 = vshrl.u32 %v3184, %v3200
      %v3203 = vor.u32 %v3201, %v3202
      %v3204 = vsub.s32 4294967266, %v3199
      %v3205 = vadd.s32 %v3204, 127
      %v3206 = vshll.u32 %v3205, 23
      %v3207 = vor.u32 4788187, %v3206
      %v3208 = vand.u32 2147483647, %v3207
      %v3210 = vcvt.s32.f32 %v3203
      %v3211 = vmul.f32 %v3210, %v3208
      %v3212 = vxor.u32 %v3211, 2147483648
      %v3213 = vsel %vm3130, %v3212, %v3211
      %v3214 = vsub.s32 4, %v3190
      %v3215 = vsel %vm3130, %v3214, %v3190
      %v3216 = vsel %vm3129, %v443, %v3213
      %v3217 = vsel %vm3129, 0, %v3215
      %v3218 = vcosq.f32.pop %v3216
      %v3219 = vsinq.f32.pop %v3216
      %vm3220 = vweird.f32 %v443
      %v3221 = vand.u32 %v3217, 3
      %vm3222 = vcmp.lt.s32.totalorder %v3221, 2
      %vm3223 = vcmp.eq.s32.totalorder %v3221, 0
      %v3224 = vxor.u32 %v3219, 2147483648
      %v3225 = vsel %vm3223, %v3218, %v3224
      %vm3226 = vcmp.eq.s32.totalorder %v3221, 2
      %v3227 = vxor.u32 %v3218, 2147483648
      %v3228 = vsel %vm3226, %v3227, %v3219
      %v3229 = vsel %vm3222, %v3225, %v3228
      %v3230 = vsel %vm3220, nan, %v3229
      %v3231 = vand.u32 2147483647, %v444
      %vm3232 = vcmp.le.f32.partialorder %v3231, 0.7853982
      %vm3233 = vcmp.lt.s32.totalorder %v444, 0
      %v3234 = vand.u32 %v444, 2139095040
      %v3235 = vshrl.u32 %v3234, 23
      %v3236 = vsub.s32 %v3235, 127
      %v3237 = vand.u32 2147483647, %v444
      %v3238 = vand.u32 %v3237, 8388607
      %v3239 = vor.u32 %v3238, 8388608
      %v3240 = vsub.s32 0, %v3239
      %v3241 = vadd.s32 %v3236, 1
      %vm3242 = vcmp.gt.s32.totalorder %v3241, 0
      %v3243 = vsel %vm3242, %v3241, 0
      %v3244 = vshrl.u32 %v3243, 5
      %v3245 = vand.u32 %v3243, 31
      %v3246 = vsub.s32 32, %v3245
      %v3247 = vshrl.u32 683565275, %v3246
      %v3248 = vshll.u32 683565275, %v3245
      %v3249 = vshrl.u32 2475754826, %v3246
      %v3250 = vor.u32 %v3248, %v3249
      %v3251 = vshll.u32 2475754826, %v3245
      %v3252 = vshrl.u32 2131351028, %v3246
      %v3253 = vor.u32 %v3251, %v3252
      %v3254 = vshll.u32 2131351028, %v3245
      %v3255 = vshrl.u32 2102212464, %v3246
      %v3256 = vor.u32 %v3254, %v3255
      %v3257 = vshll.u32 2102212464, %v3245
      %v3258 = vshrl.u32 920167782, %v3246
      %v3259 = vor.u32 %v3257, %v3258
      %v3260 = vshll.u32 920167782, %v3245
      %v3261 = vshrl.u32 1326507024, %v3246
      %v3262 = vor.u32 %v3260, %v3261
      %vm3263 = vcmp.lt.s32.totalorder %v3244, 1
      %vm3264 = vcmp.lt.s32.totalorder %v3244, 2
      %vm3265 = vcmp.lt.s32.totalorder %v3244, 3
      %vm3266 = vcmp.lt.s32.totalorder %v3244, 4
      %v3267 = vsel %vm3263, %v3247, %v3250
      %v3268 = vsel %vm3266, %v3256, 2102212464
      %v3269 = vsel %vm3265, %v3253, %v3268
      %v3270 = vsel %vm3264, %v3267, %v3269
      %v3271 = vsel %vm3263, %v3250, %v3253
      %v3272 = vsel %vm3266, %v3259, 920167782
      %v3273 = vsel %vm3265, %v3256, %v3272
      %v3274 = vsel %vm3264, %v3271, %v3273
      %v3275 = vsel %vm3263, %v3253, %v3256
      %v3276 = vsel %vm3266, %v3262, 1326507024
      %v3277 = vsel %vm3265, %v3259, %v3276
      %v3278 = vsel %vm3264, %v3275, %v3277
      %v3279 = vshll.u32 %v3239, 8
      %v3280 = vmul.u32.u64.compose %v3279, %v3278
      %v3281 = vextract.low.u32 %v3280
      %v3282 = vextract.high.u32 %v3280
      %v3283 = vmul.u32.u64.compose %v3279, %v3274
      %v3284 = vextract.low.u32 %v3283
      %v3285 = vextract.high.u32 %v3283
      %v3286 = vmul.u32 %v3279, %v3270
      %v3287 = vadd.s32 %v3282, %v3284
      %vm3288 = vc.u32 %v3282, %v3284
      %v3289 = vadd.s32 %v3285, 1
      %v3290 = vsel %vm3288, %v3289, %v3285
      %v3291 = vadd.s32 %v3286, %v3290
      %v3292 = vadd.s32 %v3291, 536870912
      %v3293 = vshrl.u32 %v3292, 30
      %v3294 = vshll.u32 %v3293, 30
      %v3295 = vsub.s32 %v3291, %v3294
      %vm3296 = vcmp.lt.s32.totalorder %v3295, 0
      %v3297 = vsub.s32 0, %v3295
      %v3298 = vsel %vm3296, %v3297, %v3295
      %v3299 = vclz %v3298
      %v3300 = vsub.s32 %v3299, 2
      %vm3301 = vcmp.gt.s32.totalorder 0, %v3300
      %v3302 = vsel %vm3301, 0, %v3300
      %v3303 = vsub.s32 32, %v3302
      %v3304 = vshll.u32 %v3295, %v3302
      %v3305 = vshrl.u32 %v3287, %v3303
      %v3306 = vor.u32 %v3304, %v3305
      %v3307 = vsub.s32 4294967266, %v3302
      %v3308 = vadd.s32 %v3307, 127
      %v3309 = vshll.u32 %v3308, 23
      %v3310 = vor.u32 4788187, %v3309
      %v3311 = vand.u32 2147483647, %v3310
      %v3313 = vcvt.s32.f32 %v3306
      %v3314 = vmul.f32 %v3313, %v3311
      %v3315 = vxor.u32 %v3314, 2147483648
      %v3316 = vsel %vm3233, %v3315, %v3314
      %v3317 = vsub.s32 4, %v3293
      %v3318 = vsel %vm3233, %v3317, %v3293
      %v3319 = vsel %vm3232, %v444, %v3316
      %v3320 = vsel %vm3232, 0, %v3318
      %v3321 = vcosq.f32.pop %v3319
      %v3322 = vsinq.f32.pop %v3319
      %vm3323 = vweird.f32 %v444
      %v3324 = vand.u32 %v3320, 3
      %vm3325 = vcmp.lt.s32.totalorder %v3324, 2
      %vm3326 = vcmp.eq.s32.totalorder %v3324, 0
      %v3327 = vxor.u32 %v3322, 2147483648
      %v3328 = vsel %vm3326, %v3321, %v3327
      %vm3329 = vcmp.eq.s32.totalorder %v3324, 2
      %v3330 = vxor.u32 %v3321, 2147483648
      %v3331 = vsel %vm3329, %v3330, %v3322
      %v3332 = vsel %vm3325, %v3328, %v3331
      %v3333 = vsel %vm3323, nan, %v3332
      %v3334 = vand.u32 2147483647, %v445
      %vm3335 = vcmp.le.f32.partialorder %v3334, 0.7853982
      %vm3336 = vcmp.lt.s32.totalorder %v445, 0
      %v3337 = vand.u32 %v445, 2139095040
      %v3338 = vshrl.u32 %v3337, 23
      %v3339 = vsub.s32 %v3338, 127
      %v3340 = vand.u32 2147483647, %v445
      %v3341 = vand.u32 %v3340, 8388607
      %v3342 = vor.u32 %v3341, 8388608
      %v3343 = vsub.s32 0, %v3342
      %v3344 = vadd.s32 %v3339, 1
      %vm3345 = vcmp.gt.s32.totalorder %v3344, 0
      %v3346 = vsel %vm3345, %v3344, 0
      %v3347 = vshrl.u32 %v3346, 5
      %v3348 = vand.u32 %v3346, 31
      %v3349 = vsub.s32 32, %v3348
      %v3350 = vshrl.u32 683565275, %v3349
      %v3351 = vshll.u32 683565275, %v3348
      %v3352 = vshrl.u32 2475754826, %v3349
      %v3353 = vor.u32 %v3351, %v3352
      %v3354 = vshll.u32 2475754826, %v3348
      %v3355 = vshrl.u32 2131351028, %v3349
      %v3356 = vor.u32 %v3354, %v3355
      %v3357 = vshll.u32 2131351028, %v3348
      %v3358 = vshrl.u32 2102212464, %v3349
      %v3359 = vor.u32 %v3357, %v3358
      %v3360 = vshll.u32 2102212464, %v3348
      %v3361 = vshrl.u32 920167782, %v3349
      %v3362 = vor.u32 %v3360, %v3361
      %v3363 = vshll.u32 920167782, %v3348
      %v3364 = vshrl.u32 1326507024, %v3349
      %v3365 = vor.u32 %v3363, %v3364
      %vm3366 = vcmp.lt.s32.totalorder %v3347, 1
      %vm3367 = vcmp.lt.s32.totalorder %v3347, 2
      %vm3368 = vcmp.lt.s32.totalorder %v3347, 3
      %vm3369 = vcmp.lt.s32.totalorder %v3347, 4
      %v3370 = vsel %vm3366, %v3350, %v3353
      %v3371 = vsel %vm3369, %v3359, 2102212464
      %v3372 = vsel %vm3368, %v3356, %v3371
      %v3373 = vsel %vm3367, %v3370, %v3372
      %v3374 = vsel %vm3366, %v3353, %v3356
      %v3375 = vsel %vm3369, %v3362, 920167782
      %v3376 = vsel %vm3368, %v3359, %v3375
      %v3377 = vsel %vm3367, %v3374, %v3376
      %v3378 = vsel %vm3366, %v3356, %v3359
      %v3379 = vsel %vm3369, %v3365, 1326507024
      %v3380 = vsel %vm3368, %v3362, %v3379
      %v3381 = vsel %vm3367, %v3378, %v3380
      %v3382 = vshll.u32 %v3342, 8
      %v3383 = vmul.u32.u64.compose %v3382, %v3381
      %v3384 = vextract.low.u32 %v3383
      %v3385 = vextract.high.u32 %v3383
      %v3386 = vmul.u32.u64.compose %v3382, %v3377
      %v3387 = vextract.low.u32 %v3386
      %v3388 = vextract.high.u32 %v3386
      %v3389 = vmul.u32 %v3382, %v3373
      %v3390 = vadd.s32 %v3385, %v3387
      %vm3391 = vc.u32 %v3385, %v3387
      %v3392 = vadd.s32 %v3388, 1
      %v3393 = vsel %vm3391, %v3392, %v3388
      %v3394 = vadd.s32 %v3389, %v3393
      %v3395 = vadd.s32 %v3394, 536870912
      %v3396 = vshrl.u32 %v3395, 30
      %v3397 = vshll.u32 %v3396, 30
      %v3398 = vsub.s32 %v3394, %v3397
      %vm3399 = vcmp.lt.s32.totalorder %v3398, 0
      %v3400 = vsub.s32 0, %v3398
      %v3401 = vsel %vm3399, %v3400, %v3398
      %v3402 = vclz %v3401
      %v3403 = vsub.s32 %v3402, 2
      %vm3404 = vcmp.gt.s32.totalorder 0, %v3403
      %v3405 = vsel %vm3404, 0, %v3403
      %v3406 = vsub.s32 32, %v3405
      %v3407 = vshll.u32 %v3398, %v3405
      %v3408 = vshrl.u32 %v3390, %v3406
      %v3409 = vor.u32 %v3407, %v3408
      %v3410 = vsub.s32 4294967266, %v3405
      %v3411 = vadd.s32 %v3410, 127
      %v3412 = vshll.u32 %v3411, 23
      %v3413 = vor.u32 4788187, %v3412
      %v3414 = vand.u32 2147483647, %v3413
      %v3416 = vcvt.s32.f32 %v3409
      %v3417 = vmul.f32 %v3416, %v3414
      %v3418 = vxor.u32 %v3417, 2147483648
      %v3419 = vsel %vm3336, %v3418, %v3417
      %v3420 = vsub.s32 4, %v3396
      %v3421 = vsel %vm3336, %v3420, %v3396
      %v3422 = vsel %vm3335, %v445, %v3419
      %v3423 = vsel %vm3335, 0, %v3421
      %v3424 = vcosq.f32.pop %v3422
      %v3425 = vsinq.f32.pop %v3422
      %vm3426 = vweird.f32 %v445
      %v3427 = vand.u32 %v3423, 3
      %vm3428 = vcmp.lt.s32.totalorder %v3427, 2
      %vm3429 = vcmp.eq.s32.totalorder %v3427, 0
      %v3430 = vxor.u32 %v3425, 2147483648
      %v3431 = vsel %vm3429, %v3424, %v3430
      %vm3432 = vcmp.eq.s32.totalorder %v3427, 2
      %v3433 = vxor.u32 %v3424, 2147483648
      %v3434 = vsel %vm3432, %v3433, %v3425
      %v3435 = vsel %vm3428, %v3431, %v3434
      %v3436 = vsel %vm3426, nan, %v3435
      %v3437 = vand.u32 2147483647, %v446
      %vm3438 = vcmp.le.f32.partialorder %v3437, 0.7853982
      %vm3439 = vcmp.lt.s32.totalorder %v446, 0
      %v3440 = vand.u32 %v446, 2139095040
      %v3441 = vshrl.u32 %v3440, 23
      %v3442 = vsub.s32 %v3441, 127
      %v3443 = vand.u32 2147483647, %v446
      %v3444 = vand.u32 %v3443, 8388607
      %v3445 = vor.u32 %v3444, 8388608
      %v3446 = vsub.s32 0, %v3445
      %v3447 = vadd.s32 %v3442, 1
      %vm3448 = vcmp.gt.s32.totalorder %v3447, 0
      %v3449 = vsel %vm3448, %v3447, 0
      %v3450 = vshrl.u32 %v3449, 5
      %v3451 = vand.u32 %v3449, 31
      %v3452 = vsub.s32 32, %v3451
      %v3453 = vshrl.u32 683565275, %v3452
      %v3454 = vshll.u32 683565275, %v3451
      %v3455 = vshrl.u32 2475754826, %v3452
      %v3456 = vor.u32 %v3454, %v3455
      %v3457 = vshll.u32 2475754826, %v3451
      %v3458 = vshrl.u32 2131351028, %v3452
      %v3459 = vor.u32 %v3457, %v3458
      %v3460 = vshll.u32 2131351028, %v3451
      %v3461 = vshrl.u32 2102212464, %v3452
      %v3462 = vor.u32 %v3460, %v3461
      %v3463 = vshll.u32 2102212464, %v3451
      %v3464 = vshrl.u32 920167782, %v3452
      %v3465 = vor.u32 %v3463, %v3464
      %v3466 = vshll.u32 920167782, %v3451
      %v3467 = vshrl.u32 1326507024, %v3452
      %v3468 = vor.u32 %v3466, %v3467
      %vm3469 = vcmp.lt.s32.totalorder %v3450, 1
      %vm3470 = vcmp.lt.s32.totalorder %v3450, 2
      %vm3471 = vcmp.lt.s32.totalorder %v3450, 3
      %vm3472 = vcmp.lt.s32.totalorder %v3450, 4
      %v3473 = vsel %vm3469, %v3453, %v3456
      %v3474 = vsel %vm3472, %v3462, 2102212464
      %v3475 = vsel %vm3471, %v3459, %v3474
      %v3476 = vsel %vm3470, %v3473, %v3475
      %v3477 = vsel %vm3469, %v3456, %v3459
      %v3478 = vsel %vm3472, %v3465, 920167782
      %v3479 = vsel %vm3471, %v3462, %v3478
      %v3480 = vsel %vm3470, %v3477, %v3479
      %v3481 = vsel %vm3469, %v3459, %v3462
      %v3482 = vsel %vm3472, %v3468, 1326507024
      %v3483 = vsel %vm3471, %v3465, %v3482
      %v3484 = vsel %vm3470, %v3481, %v3483
      %v3485 = vshll.u32 %v3445, 8
      %v3486 = vmul.u32.u64.compose %v3485, %v3484
      %v3487 = vextract.low.u32 %v3486
      %v3488 = vextract.high.u32 %v3486
      %v3489 = vmul.u32.u64.compose %v3485, %v3480
      %v3490 = vextract.low.u32 %v3489
      %v3491 = vextract.high.u32 %v3489
      %v3492 = vmul.u32 %v3485, %v3476
      %v3493 = vadd.s32 %v3488, %v3490
      %vm3494 = vc.u32 %v3488, %v3490
      %v3495 = vadd.s32 %v3491, 1
      %v3496 = vsel %vm3494, %v3495, %v3491
      %v3497 = vadd.s32 %v3492, %v3496
      %v3498 = vadd.s32 %v3497, 536870912
      %v3499 = vshrl.u32 %v3498, 30
      %v3500 = vshll.u32 %v3499, 30
      %v3501 = vsub.s32 %v3497, %v3500
      %vm3502 = vcmp.lt.s32.totalorder %v3501, 0
      %v3503 = vsub.s32 0, %v3501
      %v3504 = vsel %vm3502, %v3503, %v3501
      %v3505 = vclz %v3504
      %v3506 = vsub.s32 %v3505, 2
      %vm3507 = vcmp.gt.s32.totalorder 0, %v3506
      %v3508 = vsel %vm3507, 0, %v3506
      %v3509 = vsub.s32 32, %v3508
      %v3510 = vshll.u32 %v3501, %v3508
      %v3511 = vshrl.u32 %v3493, %v3509
      %v3512 = vor.u32 %v3510, %v3511
      %v3513 = vsub.s32 4294967266, %v3508
      %v3514 = vadd.s32 %v3513, 127
      %v3515 = vshll.u32 %v3514, 23
      %v3516 = vor.u32 4788187, %v3515
      %v3517 = vand.u32 2147483647, %v3516
      %v3519 = vcvt.s32.f32 %v3512
      %v3520 = vmul.f32 %v3519, %v3517
      %v3521 = vxor.u32 %v3520, 2147483648
      %v3522 = vsel %vm3439, %v3521, %v3520
      %v3523 = vsub.s32 4, %v3499
      %v3524 = vsel %vm3439, %v3523, %v3499
      %v3525 = vsel %vm3438, %v446, %v3522
      %v3526 = vsel %vm3438, 0, %v3524
      %v3527 = vcosq.f32.pop %v3525
      %v3528 = vsinq.f32.pop %v3525
      %vm3529 = vweird.f32 %v446
      %v3530 = vand.u32 %v3526, 3
      %vm3531 = vcmp.lt.s32.totalorder %v3530, 2
      %vm3532 = vcmp.eq.s32.totalorder %v3530, 0
      %v3533 = vxor.u32 %v3528, 2147483648
      %v3534 = vsel %vm3532, %v3527, %v3533
      %vm3535 = vcmp.eq.s32.totalorder %v3530, 2
      %v3536 = vxor.u32 %v3527, 2147483648
      %v3537 = vsel %vm3535, %v3536, %v3528
      %v3538 = vsel %vm3531, %v3534, %v3537
      %v3539 = vsel %vm3529, nan, %v3538
      %v3540 = vand.u32 2147483647, %v447
      %vm3541 = vcmp.le.f32.partialorder %v3540, 0.7853982
      %vm3542 = vcmp.lt.s32.totalorder %v447, 0
      %v3543 = vand.u32 %v447, 2139095040
      %v3544 = vshrl.u32 %v3543, 23
      %v3545 = vsub.s32 %v3544, 127
      %v3546 = vand.u32 2147483647, %v447
      %v3547 = vand.u32 %v3546, 8388607
      %v3548 = vor.u32 %v3547, 8388608
      %v3549 = vsub.s32 0, %v3548
      %v3550 = vadd.s32 %v3545, 1
      %vm3551 = vcmp.gt.s32.totalorder %v3550, 0
      %v3552 = vsel %vm3551, %v3550, 0
      %v3553 = vshrl.u32 %v3552, 5
      %v3554 = vand.u32 %v3552, 31
      %v3555 = vsub.s32 32, %v3554
      %v3556 = vshrl.u32 683565275, %v3555
      %v3557 = vshll.u32 683565275, %v3554
      %v3558 = vshrl.u32 2475754826, %v3555
      %v3559 = vor.u32 %v3557, %v3558
      %v3560 = vshll.u32 2475754826, %v3554
      %v3561 = vshrl.u32 2131351028, %v3555
      %v3562 = vor.u32 %v3560, %v3561
      %v3563 = vshll.u32 2131351028, %v3554
      %v3564 = vshrl.u32 2102212464, %v3555
      %v3565 = vor.u32 %v3563, %v3564
      %v3566 = vshll.u32 2102212464, %v3554
      %v3567 = vshrl.u32 920167782, %v3555
      %v3568 = vor.u32 %v3566, %v3567
      %v3569 = vshll.u32 920167782, %v3554
      %v3570 = vshrl.u32 1326507024, %v3555
      %v3571 = vor.u32 %v3569, %v3570
      %vm3572 = vcmp.lt.s32.totalorder %v3553, 1
      %vm3573 = vcmp.lt.s32.totalorder %v3553, 2
      %vm3574 = vcmp.lt.s32.totalorder %v3553, 3
      %vm3575 = vcmp.lt.s32.totalorder %v3553, 4
      %v3576 = vsel %vm3572, %v3556, %v3559
      %v3577 = vsel %vm3575, %v3565, 2102212464
      %v3578 = vsel %vm3574, %v3562, %v3577
      %v3579 = vsel %vm3573, %v3576, %v3578
      %v3580 = vsel %vm3572, %v3559, %v3562
      %v3581 = vsel %vm3575, %v3568, 920167782
      %v3582 = vsel %vm3574, %v3565, %v3581
      %v3583 = vsel %vm3573, %v3580, %v3582
      %v3584 = vsel %vm3572, %v3562, %v3565
      %v3585 = vsel %vm3575, %v3571, 1326507024
      %v3586 = vsel %vm3574, %v3568, %v3585
      %v3587 = vsel %vm3573, %v3584, %v3586
      %v3588 = vshll.u32 %v3548, 8
      %v3589 = vmul.u32.u64.compose %v3588, %v3587
      %v3590 = vextract.low.u32 %v3589
      %v3591 = vextract.high.u32 %v3589
      %v3592 = vmul.u32.u64.compose %v3588, %v3583
      %v3593 = vextract.low.u32 %v3592
      %v3594 = vextract.high.u32 %v3592
      %v3595 = vmul.u32 %v3588, %v3579
      %v3596 = vadd.s32 %v3591, %v3593
      %vm3597 = vc.u32 %v3591, %v3593
      %v3598 = vadd.s32 %v3594, 1
      %v3599 = vsel %vm3597, %v3598, %v3594
      %v3600 = vadd.s32 %v3595, %v3599
      %v3601 = vadd.s32 %v3600, 536870912
      %v3602 = vshrl.u32 %v3601, 30
      %v3603 = vshll.u32 %v3602, 30
      %v3604 = vsub.s32 %v3600, %v3603
      %vm3605 = vcmp.lt.s32.totalorder %v3604, 0
      %v3606 = vsub.s32 0, %v3604
      %v3607 = vsel %vm3605, %v3606, %v3604
      %v3608 = vclz %v3607
      %v3609 = vsub.s32 %v3608, 2
      %vm3610 = vcmp.gt.s32.totalorder 0, %v3609
      %v3611 = vsel %vm3610, 0, %v3609
      %v3612 = vsub.s32 32, %v3611
      %v3613 = vshll.u32 %v3604, %v3611
      %v3614 = vshrl.u32 %v3596, %v3612
      %v3615 = vor.u32 %v3613, %v3614
      %v3616 = vsub.s32 4294967266, %v3611
      %v3617 = vadd.s32 %v3616, 127
      %v3618 = vshll.u32 %v3617, 23
      %v3619 = vor.u32 4788187, %v3618
      %v3620 = vand.u32 2147483647, %v3619
      %v3622 = vcvt.s32.f32 %v3615
      %v3623 = vmul.f32 %v3622, %v3620
      %v3624 = vxor.u32 %v3623, 2147483648
      %v3625 = vsel %vm3542, %v3624, %v3623
      %v3626 = vsub.s32 4, %v3602
      %v3627 = vsel %vm3542, %v3626, %v3602
      %v3628 = vsel %vm3541, %v447, %v3625
      %v3629 = vsel %vm3541, 0, %v3627
      %v3630 = vcosq.f32.pop %v3628
      %v3631 = vsinq.f32.pop %v3628
      %vm3632 = vweird.f32 %v447
      %v3633 = vand.u32 %v3629, 3
      %vm3634 = vcmp.lt.s32.totalorder %v3633, 2
      %vm3635 = vcmp.eq.s32.totalorder %v3633, 0
      %v3636 = vxor.u32 %v3631, 2147483648
      %v3637 = vsel %vm3635, %v3630, %v3636
      %vm3638 = vcmp.eq.s32.totalorder %v3633, 2
      %v3639 = vxor.u32 %v3630, 2147483648
      %v3640 = vsel %vm3638, %v3639, %v3631
      %v3641 = vsel %vm3634, %v3637, %v3640
      %v3642 = vsel %vm3632, nan, %v3641
      %v3643 = vand.u32 2147483647, %v448
      %vm3644 = vcmp.le.f32.partialorder %v3643, 0.7853982
      %vm3645 = vcmp.lt.s32.totalorder %v448, 0
      %v3646 = vand.u32 %v448, 2139095040
      %v3647 = vshrl.u32 %v3646, 23
      %v3648 = vsub.s32 %v3647, 127
      %v3649 = vand.u32 2147483647, %v448
      %v3650 = vand.u32 %v3649, 8388607
      %v3651 = vor.u32 %v3650, 8388608
      %v3652 = vsub.s32 0, %v3651
      %v3653 = vadd.s32 %v3648, 1
      %vm3654 = vcmp.gt.s32.totalorder %v3653, 0
      %v3655 = vsel %vm3654, %v3653, 0
      %v3656 = vshrl.u32 %v3655, 5
      %v3657 = vand.u32 %v3655, 31
      %v3658 = vsub.s32 32, %v3657
      %v3659 = vshrl.u32 683565275, %v3658
      %v3660 = vshll.u32 683565275, %v3657
      %v3661 = vshrl.u32 2475754826, %v3658
      %v3662 = vor.u32 %v3660, %v3661
      %v3663 = vshll.u32 2475754826, %v3657
      %v3664 = vshrl.u32 2131351028, %v3658
      %v3665 = vor.u32 %v3663, %v3664
      %v3666 = vshll.u32 2131351028, %v3657
      %v3667 = vshrl.u32 2102212464, %v3658
      %v3668 = vor.u32 %v3666, %v3667
      %v3669 = vshll.u32 2102212464, %v3657
      %v3670 = vshrl.u32 920167782, %v3658
      %v3671 = vor.u32 %v3669, %v3670
      %v3672 = vshll.u32 920167782, %v3657
      %v3673 = vshrl.u32 1326507024, %v3658
      %v3674 = vor.u32 %v3672, %v3673
      %vm3675 = vcmp.lt.s32.totalorder %v3656, 1
      %vm3676 = vcmp.lt.s32.totalorder %v3656, 2
      %vm3677 = vcmp.lt.s32.totalorder %v3656, 3
      %vm3678 = vcmp.lt.s32.totalorder %v3656, 4
      %v3679 = vsel %vm3675, %v3659, %v3662
      %v3680 = vsel %vm3678, %v3668, 2102212464
      %v3681 = vsel %vm3677, %v3665, %v3680
      %v3682 = vsel %vm3676, %v3679, %v3681
      %v3683 = vsel %vm3675, %v3662, %v3665
      %v3684 = vsel %vm3678, %v3671, 920167782
      %v3685 = vsel %vm3677, %v3668, %v3684
      %v3686 = vsel %vm3676, %v3683, %v3685
      %v3687 = vsel %vm3675, %v3665, %v3668
      %v3688 = vsel %vm3678, %v3674, 1326507024
      %v3689 = vsel %vm3677, %v3671, %v3688
      %v3690 = vsel %vm3676, %v3687, %v3689
      %v3691 = vshll.u32 %v3651, 8
      %v3692 = vmul.u32.u64.compose %v3691, %v3690
      %v3693 = vextract.low.u32 %v3692
      %v3694 = vextract.high.u32 %v3692
      %v3695 = vmul.u32.u64.compose %v3691, %v3686
      %v3696 = vextract.low.u32 %v3695
      %v3697 = vextract.high.u32 %v3695
      %v3698 = vmul.u32 %v3691, %v3682
      %v3699 = vadd.s32 %v3694, %v3696
      %vm3700 = vc.u32 %v3694, %v3696
      %v3701 = vadd.s32 %v3697, 1
      %v3702 = vsel %vm3700, %v3701, %v3697
      %v3703 = vadd.s32 %v3698, %v3702
      %v3704 = vadd.s32 %v3703, 536870912
      %v3705 = vshrl.u32 %v3704, 30
      %v3706 = vshll.u32 %v3705, 30
      %v3707 = vsub.s32 %v3703, %v3706
      %vm3708 = vcmp.lt.s32.totalorder %v3707, 0
      %v3709 = vsub.s32 0, %v3707
      %v3710 = vsel %vm3708, %v3709, %v3707
      %v3711 = vclz %v3710
      %v3712 = vsub.s32 %v3711, 2
      %vm3713 = vcmp.gt.s32.totalorder 0, %v3712
      %v3714 = vsel %vm3713, 0, %v3712
      %v3715 = vsub.s32 32, %v3714
      %v3716 = vshll.u32 %v3707, %v3714
      %v3717 = vshrl.u32 %v3699, %v3715
      %v3718 = vor.u32 %v3716, %v3717
      %v3719 = vsub.s32 4294967266, %v3714
      %v3720 = vadd.s32 %v3719, 127
      %v3721 = vshll.u32 %v3720, 23
      %v3722 = vor.u32 4788187, %v3721
      %v3723 = vand.u32 2147483647, %v3722
      %v3725 = vcvt.s32.f32 %v3718
      %v3726 = vmul.f32 %v3725, %v3723
      %v3727 = vxor.u32 %v3726, 2147483648
      %v3728 = vsel %vm3645, %v3727, %v3726
      %v3729 = vsub.s32 4, %v3705
      %v3730 = vsel %vm3645, %v3729, %v3705
      %v3731 = vsel %vm3644, %v448, %v3728
      %v3732 = vsel %vm3644, 0, %v3730
      %v3733 = vcosq.f32.pop %v3731
      %v3734 = vsinq.f32.pop %v3731
      %vm3735 = vweird.f32 %v448
      %v3736 = vand.u32 %v3732, 3
      %vm3737 = vcmp.lt.s32.totalorder %v3736, 2
      %vm3738 = vcmp.eq.s32.totalorder %v3736, 0
      %v3739 = vxor.u32 %v3734, 2147483648
      %v3740 = vsel %vm3738, %v3733, %v3739
      %vm3741 = vcmp.eq.s32.totalorder %v3736, 2
      %v3742 = vxor.u32 %v3733, 2147483648
      %v3743 = vsel %vm3741, %v3742, %v3734
      %v3744 = vsel %vm3737, %v3740, %v3743
      %v3745 = vsel %vm3735, nan, %v3744
      %v3746 = vand.u32 2147483647, %v449
      %vm3747 = vcmp.le.f32.partialorder %v3746, 0.7853982
      %vm3748 = vcmp.lt.s32.totalorder %v449, 0
      %v3749 = vand.u32 %v449, 2139095040
      %v3750 = vshrl.u32 %v3749, 23
      %v3751 = vsub.s32 %v3750, 127
      %v3752 = vand.u32 2147483647, %v449
      %v3753 = vand.u32 %v3752, 8388607
      %v3754 = vor.u32 %v3753, 8388608
      %v3755 = vsub.s32 0, %v3754
      %v3756 = vadd.s32 %v3751, 1
      %vm3757 = vcmp.gt.s32.totalorder %v3756, 0
      %v3758 = vsel %vm3757, %v3756, 0
      %v3759 = vshrl.u32 %v3758, 5
      %v3760 = vand.u32 %v3758, 31
      %v3761 = vsub.s32 32, %v3760
      %v3762 = vshrl.u32 683565275, %v3761
      %v3763 = vshll.u32 683565275, %v3760
      %v3764 = vshrl.u32 2475754826, %v3761
      %v3765 = vor.u32 %v3763, %v3764
      %v3766 = vshll.u32 2475754826, %v3760
      %v3767 = vshrl.u32 2131351028, %v3761
      %v3768 = vor.u32 %v3766, %v3767
      %v3769 = vshll.u32 2131351028, %v3760
      %v3770 = vshrl.u32 2102212464, %v3761
      %v3771 = vor.u32 %v3769, %v3770
      %v3772 = vshll.u32 2102212464, %v3760
      %v3773 = vshrl.u32 920167782, %v3761
      %v3774 = vor.u32 %v3772, %v3773
      %v3775 = vshll.u32 920167782, %v3760
      %v3776 = vshrl.u32 1326507024, %v3761
      %v3777 = vor.u32 %v3775, %v3776
      %vm3778 = vcmp.lt.s32.totalorder %v3759, 1
      %vm3779 = vcmp.lt.s32.totalorder %v3759, 2
      %vm3780 = vcmp.lt.s32.totalorder %v3759, 3
      %vm3781 = vcmp.lt.s32.totalorder %v3759, 4
      %v3782 = vsel %vm3778, %v3762, %v3765
      %v3783 = vsel %vm3781, %v3771, 2102212464
      %v3784 = vsel %vm3780, %v3768, %v3783
      %v3785 = vsel %vm3779, %v3782, %v3784
      %v3786 = vsel %vm3778, %v3765, %v3768
      %v3787 = vsel %vm3781, %v3774, 920167782
      %v3788 = vsel %vm3780, %v3771, %v3787
      %v3789 = vsel %vm3779, %v3786, %v3788
      %v3790 = vsel %vm3778, %v3768, %v3771
      %v3791 = vsel %vm3781, %v3777, 1326507024
      %v3792 = vsel %vm3780, %v3774, %v3791
      %v3793 = vsel %vm3779, %v3790, %v3792
      %v3794 = vshll.u32 %v3754, 8
      %v3795 = vmul.u32.u64.compose %v3794, %v3793
      %v3796 = vextract.low.u32 %v3795
      %v3797 = vextract.high.u32 %v3795
      %v3798 = vmul.u32.u64.compose %v3794, %v3789
      %v3799 = vextract.low.u32 %v3798
      %v3800 = vextract.high.u32 %v3798
      %v3801 = vmul.u32 %v3794, %v3785
      %v3802 = vadd.s32 %v3797, %v3799
      %vm3803 = vc.u32 %v3797, %v3799
      %v3804 = vadd.s32 %v3800, 1
      %v3805 = vsel %vm3803, %v3804, %v3800
      %v3806 = vadd.s32 %v3801, %v3805
      %v3807 = vadd.s32 %v3806, 536870912
      %v3808 = vshrl.u32 %v3807, 30
      %v3809 = vshll.u32 %v3808, 30
      %v3810 = vsub.s32 %v3806, %v3809
      %vm3811 = vcmp.lt.s32.totalorder %v3810, 0
      %v3812 = vsub.s32 0, %v3810
      %v3813 = vsel %vm3811, %v3812, %v3810
      %v3814 = vclz %v3813
      %v3815 = vsub.s32 %v3814, 2
      %vm3816 = vcmp.gt.s32.totalorder 0, %v3815
      %v3817 = vsel %vm3816, 0, %v3815
      %v3818 = vsub.s32 32, %v3817
      %v3819 = vshll.u32 %v3810, %v3817
      %v3820 = vshrl.u32 %v3802, %v3818
      %v3821 = vor.u32 %v3819, %v3820
      %v3822 = vsub.s32 4294967266, %v3817
      %v3823 = vadd.s32 %v3822, 127
      %v3824 = vshll.u32 %v3823, 23
      %v3825 = vor.u32 4788187, %v3824
      %v3826 = vand.u32 2147483647, %v3825
      %v3828 = vcvt.s32.f32 %v3821
      %v3829 = vmul.f32 %v3828, %v3826
      %v3830 = vxor.u32 %v3829, 2147483648
      %v3831 = vsel %vm3748, %v3830, %v3829
      %v3832 = vsub.s32 4, %v3808
      %v3833 = vsel %vm3748, %v3832, %v3808
      %v3834 = vsel %vm3747, %v449, %v3831
      %v3835 = vsel %vm3747, 0, %v3833
      %v3836 = vcosq.f32.pop %v3834
      %v3837 = vsinq.f32.pop %v3834
      %vm3838 = vweird.f32 %v449
      %v3839 = vand.u32 %v3835, 3
      %vm3840 = vcmp.lt.s32.totalorder %v3839, 2
      %vm3841 = vcmp.eq.s32.totalorder %v3839, 0
      %v3842 = vxor.u32 %v3837, 2147483648
      %v3843 = vsel %vm3841, %v3836, %v3842
      %vm3844 = vcmp.eq.s32.totalorder %v3839, 2
      %v3845 = vxor.u32 %v3836, 2147483648
      %v3846 = vsel %vm3844, %v3845, %v3837
      %v3847 = vsel %vm3840, %v3843, %v3846
      %v3848 = vsel %vm3838, nan, %v3847
      %v3849 = vld [vmem:[%s1] sm:$0xf]
      %v3850 = vld [vmem:[%s1 + $0x4] sm:$0xf]
      %v3851 = vld [vmem:[%s1 + $0x8] sm:$0xf]
      %v3852 = vld [vmem:[%s1 + $0xc] sm:$0xf]
      %v3853 = vld [vmem:[%s1 + $0x10] sm:$0xf]
      %v3854 = vld [vmem:[%s1 + $0x14] sm:$0xf]
      %v3855 = vld [vmem:[%s1 + $0x18] sm:$0xf]
      %v3856 = vld [vmem:[%s1 + $0x1c] sm:$0xf]
      %v3857 = vld [vmem:[%s1 + $0x20] sm:$0xf]
      %v3858 = vld [vmem:[%s1 + $0x24] sm:$0xf]
      %v3859 = vld [vmem:[%s1 + $0x28] sm:$0xf]
      %v3860 = vld [vmem:[%s1 + $0x2c] sm:$0xf]
      %v3861 = vld [vmem:[%s1 + $0x30] sm:$0xf]
      %v3862 = vld [vmem:[%s1 + $0x34] sm:$0xf]
      %v3863 = vld [vmem:[%s1 + $0x38] sm:$0xf]
      %v3864 = vld [vmem:[%s1 + $0x3c] sm:$0xf]
      %v3865 = vpack.c.bf16 %v655, %v552
      %v3866 = vpack.c.bf16 %v861, %v758
      %v3867 = vpack.c.bf16 %v1067, %v964
      %v3868 = vpack.c.bf16 %v1273, %v1170
      %v3869 = vpack.c.bf16 %v1479, %v1376
      %v3870 = vpack.c.bf16 %v1685, %v1582
      %v3871 = vpack.c.bf16 %v1891, %v1788
      %v3872 = vpack.c.bf16 %v2097, %v1994
      %v3873 = vpack.c.bf16 %v2303, %v2200
      %v3874 = vpack.c.bf16 %v2509, %v2406
      %v3875 = vpack.c.bf16 %v2715, %v2612
      %v3876 = vpack.c.bf16 %v2921, %v2818
      %v3877 = vpack.c.bf16 %v3127, %v3024
      %v3878 = vpack.c.bf16 %v3333, %v3230
      %v3879 = vpack.c.bf16 %v3539, %v3436
      %v3880 = vpack.c.bf16 %v3745, %v3642
      %v3881 = vpack.c.bf16 %v3848, %v3848
      %v3882 = vld [vmem:[%s2 + $0x2] sm:$0x1]
      %v3883 = vlaneseq
      %v3884 = vshrl.u32 %v3883, 7
      %v3885 = vsub.s32 0, %v3884
      %v3886 = vrot.slane %v3882, %v3885
      %v3903 = vunpack.c.l.b16 %v3849
      %v3904 = vunpack.c.l.b16 %v3850
      %v3905 = vunpack.c.l.b16 %v3851
      %v3906 = vunpack.c.l.b16 %v3852
      %v3907 = vunpack.c.l.b16 %v3853
      %v3908 = vunpack.c.l.b16 %v3854
      %v3909 = vunpack.c.l.b16 %v3855
      %v3910 = vunpack.c.l.b16 %v3856
      %v3911 = vunpack.c.l.b16 %v3857
      %v3912 = vunpack.c.l.b16 %v3858
      %v3913 = vunpack.c.l.b16 %v3859
      %v3914 = vunpack.c.l.b16 %v3860
      %v3915 = vunpack.c.l.b16 %v3861
      %v3916 = vunpack.c.l.b16 %v3862
      %v3917 = vunpack.c.l.b16 %v3863
      %v3918 = vunpack.c.l.b16 %v3864
      %v3919 = vpack.c.b16 %v3904, %v3903
      %v3920 = vpack.c.b16 %v3906, %v3905
      %v3921 = vpack.c.b16 %v3908, %v3907
      %v3922 = vpack.c.b16 %v3910, %v3909
      %v3923 = vpack.c.b16 %v3912, %v3911
      %v3924 = vpack.c.b16 %v3914, %v3913
      %v3925 = vpack.c.b16 %v3916, %v3915
      %v3926 = vpack.c.b16 %v3918, %v3917
      %3935 = vmatprep.subr.bf16.mxu0 0
      %3936 = vmatpush1.bf16.msra.mxu0 %v3926
      %3937 = vmatprep.subr.bf16.mxu0 0
      %3938 = vmatpush1.bf16.msra.mxu0 %v3925
      %3939 = vmatprep.subr.bf16.mxu0 0
      %3940 = vmatpush1.bf16.msra.mxu0 %v3924
      %3941 = vmatprep.subr.bf16.mxu0 0
      %3942 = vmatpush1.bf16.msra.mxu0 %v3923
      %3943 = vmatprep.subr.bf16.mxu0 0
      %3944 = vmatpush1.bf16.msra.mxu0 %v3922
      %3945 = vmatprep.subr.bf16.mxu0 0
      %3946 = vmatpush1.bf16.msra.mxu0 %v3921
      %3947 = vmatprep.subr.bf16.mxu0 0
      %3948 = vmatpush1.bf16.msra.mxu0 %v3920
      %3949 = vmatprep.subr.bf16.mxu0 0
      %3950 = vmatpush1.bf16.msra.mxu0 %v3919
      %3951 = vmatprep.subr.bf16.mxu0 0
      %3952 = vmatpush2.bf16.msra.mxu0 0
      %3953 = vmatprep.subr.bf16.mxu0 0
      %3954 = vmatpush2.bf16.msra.mxu0 0
      %3955 = vmatprep.subr.bf16.mxu0 0
      %3956 = vmatpush2.bf16.msra.mxu0 0
      %3957 = vmatprep.subr.bf16.mxu0 0
      %3958 = vmatpush2.bf16.msra.mxu0 0
      %3959 = vmatprep.subr.bf16.mxu0 0
      %3960 = vmatpush2.bf16.msra.mxu0 0
      %3961 = vmatprep.subr.bf16.mxu0 0
      %3962 = vmatpush2.bf16.msra.mxu0 0
      %3963 = vmatprep.subr.bf16.mxu0 0
      %3964 = vmatpush2.bf16.msra.mxu0 0
      %3965 = vmatprep.subr.bf16.mxu0 0
      %3966 = vmatpush2.bf16.msra.mxu0 0
      %3967 = vmatprep.mubr.bf16.mxu0 0
      %3968 = vmatmul.mubr.bf16.gmra.mxu0 %v3865
      %v3969 = vpop.f32.mrf.mxu0
      %v3970 = vadd.f32 %v3886, %v3969
      %v3971 = vpop.f32.mrf.mxu0
      %v3972 = vpop.f32.mrf.mxu0
      %v3973 = vadd.f32 %v3886, %v3972
      %v3974 = vpop.f32.mrf.mxu0
      %3975 = vmatprep.mubr.bf16.mxu0 0
      %3976 = vmatmul.mubr.bf16.gmra.mxu0 %v3866
      %v3977 = vpop.f32.mrf.mxu0
      %v3978 = vadd.f32 %v3886, %v3977
      %v3979 = vpop.f32.mrf.mxu0
      %v3980 = vpop.f32.mrf.mxu0
      %v3981 = vadd.f32 %v3886, %v3980
      %v3982 = vpop.f32.mrf.mxu0
      %3983 = vmatprep.mubr.bf16.mxu0 0
      %3984 = vmatmul.mubr.bf16.gmra.mxu0 %v3867
      %v3985 = vpop.f32.mrf.mxu0
      %v3986 = vadd.f32 %v3886, %v3985
      %v3987 = vpop.f32.mrf.mxu0
      %v3988 = vpop.f32.mrf.mxu0
      %v3989 = vadd.f32 %v3886, %v3988
      %v3990 = vpop.f32.mrf.mxu0
      %3991 = vmatprep.mubr.bf16.mxu0 0
      %3992 = vmatmul.mubr.bf16.gmra.mxu0 %v3868
      %v3993 = vpop.f32.mrf.mxu0
      %v3994 = vadd.f32 %v3886, %v3993
      %v3995 = vpop.f32.mrf.mxu0
      %v3996 = vpop.f32.mrf.mxu0
      %v3997 = vadd.f32 %v3886, %v3996
      %v3998 = vpop.f32.mrf.mxu0
      %3999 = vmatprep.mubr.bf16.mxu0 0
      %4000 = vmatmul.mubr.bf16.gmra.mxu0 %v3869
      %v4001 = vpop.f32.mrf.mxu0
      %v4002 = vadd.f32 %v3886, %v4001
      %v4003 = vpop.f32.mrf.mxu0
      %v4004 = vpop.f32.mrf.mxu0
      %v4005 = vadd.f32 %v3886, %v4004
      %v4006 = vpop.f32.mrf.mxu0
      %4007 = vmatprep.mubr.bf16.mxu0 0
      %4008 = vmatmul.mubr.bf16.gmra.mxu0 %v3870
      %v4009 = vpop.f32.mrf.mxu0
      %v4010 = vadd.f32 %v3886, %v4009
      %v4011 = vpop.f32.mrf.mxu0
      %v4012 = vpop.f32.mrf.mxu0
      %v4013 = vadd.f32 %v3886, %v4012
      %v4014 = vpop.f32.mrf.mxu0
      %4015 = vmatprep.mubr.bf16.mxu0 0
      %4016 = vmatmul.mubr.bf16.gmra.mxu0 %v3871
      %v4017 = vpop.f32.mrf.mxu0
      %v4018 = vadd.f32 %v3886, %v4017
      %v4019 = vpop.f32.mrf.mxu0
      %v4020 = vpop.f32.mrf.mxu0
      %v4021 = vadd.f32 %v3886, %v4020
      %v4022 = vpop.f32.mrf.mxu0
      %4023 = vmatprep.mubr.bf16.mxu0 0
      %4024 = vmatmul.mubr.bf16.gmra.mxu0 %v3872
      %v4025 = vpop.f32.mrf.mxu0
      %v4026 = vadd.f32 %v3886, %v4025
      %v4027 = vpop.f32.mrf.mxu0
      %v4028 = vpop.f32.mrf.mxu0
      %v4029 = vadd.f32 %v3886, %v4028
      %v4030 = vpop.f32.mrf.mxu0
      %4031 = vmatprep.mubr.bf16.mxu0 0
      %4032 = vmatmul.mubr.bf16.gmra.mxu0 %v3873
      %v4033 = vpop.f32.mrf.mxu0
      %v4034 = vadd.f32 %v3886, %v4033
      %v4035 = vpop.f32.mrf.mxu0
      %v4036 = vpop.f32.mrf.mxu0
      %v4037 = vadd.f32 %v3886, %v4036
      %v4038 = vpop.f32.mrf.mxu0
      %4039 = vmatprep.mubr.bf16.mxu0 0
      %4040 = vmatmul.mubr.bf16.gmra.mxu0 %v3874
      %v4041 = vpop.f32.mrf.mxu0
      %v4042 = vadd.f32 %v3886, %v4041
      %v4043 = vpop.f32.mrf.mxu0
      %v4044 = vpop.f32.mrf.mxu0
      %v4045 = vadd.f32 %v3886, %v4044
      %v4046 = vpop.f32.mrf.mxu0
      %4047 = vmatprep.mubr.bf16.mxu0 0
      %4048 = vmatmul.mubr.bf16.gmra.mxu0 %v3875
      %v4049 = vpop.f32.mrf.mxu0
      %v4050 = vadd.f32 %v3886, %v4049
      %v4051 = vpop.f32.mrf.mxu0
      %v4052 = vpop.f32.mrf.mxu0
      %v4053 = vadd.f32 %v3886, %v4052
      %v4054 = vpop.f32.mrf.mxu0
      %4055 = vmatprep.mubr.bf16.mxu0 0
      %4056 = vmatmul.mubr.bf16.gmra.mxu0 %v3876
      %v4057 = vpop.f32.mrf.mxu0
      %v4058 = vadd.f32 %v3886, %v4057
      %v4059 = vpop.f32.mrf.mxu0
      %v4060 = vpop.f32.mrf.mxu0
      %v4061 = vadd.f32 %v3886, %v4060
      %v4062 = vpop.f32.mrf.mxu0
      %4063 = vmatprep.mubr.bf16.mxu0 0
      %4064 = vmatmul.mubr.bf16.gmra.mxu0 %v3877
      %v4065 = vpop.f32.mrf.mxu0
      %v4066 = vadd.f32 %v3886, %v4065
      %v4067 = vpop.f32.mrf.mxu0
      %v4068 = vpop.f32.mrf.mxu0
      %v4069 = vadd.f32 %v3886, %v4068
      %v4070 = vpop.f32.mrf.mxu0
      %4071 = vmatprep.mubr.bf16.mxu0 0
      %4072 = vmatmul.mubr.bf16.gmra.mxu0 %v3878
      %v4073 = vpop.f32.mrf.mxu0
      %v4074 = vadd.f32 %v3886, %v4073
      %v4075 = vpop.f32.mrf.mxu0
      %v4076 = vpop.f32.mrf.mxu0
      %v4077 = vadd.f32 %v3886, %v4076
      %v4078 = vpop.f32.mrf.mxu0
      %4079 = vmatprep.mubr.bf16.mxu0 0
      %4080 = vmatmul.mubr.bf16.gmra.mxu0 %v3879
      %v4081 = vpop.f32.mrf.mxu0
      %v4082 = vadd.f32 %v3886, %v4081
      %v4083 = vpop.f32.mrf.mxu0
      %v4084 = vpop.f32.mrf.mxu0
      %v4085 = vadd.f32 %v3886, %v4084
      %v4086 = vpop.f32.mrf.mxu0
      %4087 = vmatprep.mubr.bf16.mxu0 0
      %4088 = vmatmul.mubr.bf16.gmra.mxu0 %v3880
      %v4089 = vpop.f32.mrf.mxu0
      %v4090 = vadd.f32 %v3886, %v4089
      %v4091 = vpop.f32.mrf.mxu0
      %v4092 = vpop.f32.mrf.mxu0
      %v4093 = vadd.f32 %v3886, %v4092
      %v4094 = vpop.f32.mrf.mxu0
      %4095 = vmatprep.mubr.bf16.mxu0 0
      %4096 = vmatmul.mubr.bf16.gmra.mxu0 %v3881
      %v4097 = vpop.f32.mrf.mxu0
      %v4098 = vadd.f32 %v3886, %v4097
      %v4099 = vpop.f32.mrf.mxu0
      %v4100 = vpop.f32.mrf.mxu0
      %v4101 = vpop.f32.mrf.mxu0
      %4102 = vdwg.mxu0
      %v4103 = vpack.c.bf16 %v3973, %v3970
      %v4104 = vpack.c.bf16 %v3981, %v3978
      %v4105 = vpack.c.bf16 %v3989, %v3986
      %v4106 = vpack.c.bf16 %v3997, %v3994
      %v4107 = vpack.c.bf16 %v4005, %v4002
      %v4108 = vpack.c.bf16 %v4013, %v4010
      %v4109 = vpack.c.bf16 %v4021, %v4018
      %v4110 = vpack.c.bf16 %v4029, %v4026
      %v4111 = vpack.c.bf16 %v4037, %v4034
      %v4112 = vpack.c.bf16 %v4045, %v4042
      %v4113 = vpack.c.bf16 %v4053, %v4050
      %v4114 = vpack.c.bf16 %v4061, %v4058
      %v4115 = vpack.c.bf16 %v4069, %v4066
      %v4116 = vpack.c.bf16 %v4077, %v4074
      %v4117 = vpack.c.bf16 %v4085, %v4082
      %v4118 = vpack.c.bf16 %v4093, %v4090
      %v4119 = vpack.c.bf16 %v4098, %v4098
      %v4120 = vxor.u32 %v4103, 2147516416
      %v4121 = vxor.u32 %v4104, 2147516416
      %v4122 = vxor.u32 %v4105, 2147516416
      %v4123 = vxor.u32 %v4106, 2147516416
      %v4124 = vxor.u32 %v4107, 2147516416
      %v4125 = vxor.u32 %v4108, 2147516416
      %v4126 = vxor.u32 %v4109, 2147516416
      %v4127 = vxor.u32 %v4110, 2147516416
      %v4128 = vxor.u32 %v4111, 2147516416
      %v4129 = vxor.u32 %v4112, 2147516416
      %v4130 = vxor.u32 %v4113, 2147516416
      %v4131 = vxor.u32 %v4114, 2147516416
      %v4132 = vxor.u32 %v4115, 2147516416
      %v4133 = vxor.u32 %v4116, 2147516416
      %v4134 = vxor.u32 %v4117, 2147516416
      %v4135 = vxor.u32 %v4118, 2147516416
      %v4136 = vxor.u32 %v4119, 2147516416
      %v4138 = vmul.bf16 %v4120, 1069105081
      %v4139 = vpow.bf16.pop %v4138
      %v4141 = vmul.bf16 %v4121, 1069105081
      %v4142 = vpow.bf16.pop %v4141
      %v4144 = vmul.bf16 %v4122, 1069105081
      %v4145 = vpow.bf16.pop %v4144
      %v4147 = vmul.bf16 %v4123, 1069105081
      %v4148 = vpow.bf16.pop %v4147
      %v4150 = vmul.bf16 %v4124, 1069105081
      %v4151 = vpow.bf16.pop %v4150
      %v4153 = vmul.bf16 %v4125, 1069105081
      %v4154 = vpow.bf16.pop %v4153
      %v4156 = vmul.bf16 %v4126, 1069105081
      %v4157 = vpow.bf16.pop %v4156
      %v4159 = vmul.bf16 %v4127, 1069105081
      %v4160 = vpow.bf16.pop %v4159
      %v4162 = vmul.bf16 %v4128, 1069105081
      %v4163 = vpow.bf16.pop %v4162
      %v4165 = vmul.bf16 %v4129, 1069105081
      %v4166 = vpow.bf16.pop %v4165
      %v4168 = vmul.bf16 %v4130, 1069105081
      %v4169 = vpow.bf16.pop %v4168
      %v4171 = vmul.bf16 %v4131, 1069105081
      %v4172 = vpow.bf16.pop %v4171
      %v4174 = vmul.bf16 %v4132, 1069105081
      %v4175 = vpow.bf16.pop %v4174
      %v4177 = vmul.bf16 %v4133, 1069105081
      %v4178 = vpow.bf16.pop %v4177
      %v4180 = vmul.bf16 %v4134, 1069105081
      %v4181 = vpow.bf16.pop %v4180
      %v4183 = vmul.bf16 %v4135, 1069105081
      %v4184 = vpow.bf16.pop %v4183
      %v4186 = vmul.bf16 %v4136, 1069105081
      %v4187 = vpow.bf16.pop %v4186
      %v4188 = vadd.bf16 %v4139, 1065369472
      %v4189 = vadd.bf16 %v4142, 1065369472
      %v4190 = vadd.bf16 %v4145, 1065369472
      %v4191 = vadd.bf16 %v4148, 1065369472
      %v4192 = vadd.bf16 %v4151, 1065369472
      %v4193 = vadd.bf16 %v4154, 1065369472
      %v4194 = vadd.bf16 %v4157, 1065369472
      %v4195 = vadd.bf16 %v4160, 1065369472
      %v4196 = vadd.bf16 %v4163, 1065369472
      %v4197 = vadd.bf16 %v4166, 1065369472
      %v4198 = vadd.bf16 %v4169, 1065369472
      %v4199 = vadd.bf16 %v4172, 1065369472
      %v4200 = vadd.bf16 %v4175, 1065369472
      %v4201 = vadd.bf16 %v4178, 1065369472
      %v4202 = vadd.bf16 %v4181, 1065369472
      %v4203 = vadd.bf16 %v4184, 1065369472
      %v4204 = vadd.bf16 %v4187, 1065369472
      %v4205 = vrcp.bf16.pop %v4188
      %v4206 = vmul.bf16 1065369472, %v4205
      %v4207 = vrcp.bf16.pop %v4189
      %v4208 = vmul.bf16 1065369472, %v4207
      %v4209 = vrcp.bf16.pop %v4190
      %v4210 = vmul.bf16 1065369472, %v4209
      %v4211 = vrcp.bf16.pop %v4191
      %v4212 = vmul.bf16 1065369472, %v4211
      %v4213 = vrcp.bf16.pop %v4192
      %v4214 = vmul.bf16 1065369472, %v4213
      %v4215 = vrcp.bf16.pop %v4193
      %v4216 = vmul.bf16 1065369472, %v4215
      %v4217 = vrcp.bf16.pop %v4194
      %v4218 = vmul.bf16 1065369472, %v4217
      %v4219 = vrcp.bf16.pop %v4195
      %v4220 = vmul.bf16 1065369472, %v4219
      %v4221 = vrcp.bf16.pop %v4196
      %v4222 = vmul.bf16 1065369472, %v4221
      %v4223 = vrcp.bf16.pop %v4197
      %v4224 = vmul.bf16 1065369472, %v4223
      %v4225 = vrcp.bf16.pop %v4198
      %v4226 = vmul.bf16 1065369472, %v4225
      %v4227 = vrcp.bf16.pop %v4199
      %v4228 = vmul.bf16 1065369472, %v4227
      %v4229 = vrcp.bf16.pop %v4200
      %v4230 = vmul.bf16 1065369472, %v4229
      %v4231 = vrcp.bf16.pop %v4201
      %v4232 = vmul.bf16 1065369472, %v4231
      %v4233 = vrcp.bf16.pop %v4202
      %v4234 = vmul.bf16 1065369472, %v4233
      %v4235 = vrcp.bf16.pop %v4203
      %v4236 = vmul.bf16 1065369472, %v4235
      %v4237 = vrcp.bf16.pop %v4204
      %v4238 = vmul.bf16 1065369472, %v4237
      %v4239 = vmul.bf16 %v4103, %v4206
      %v4240 = vmul.bf16 %v4104, %v4208
      %v4241 = vmul.bf16 %v4105, %v4210
      %v4242 = vmul.bf16 %v4106, %v4212
      %v4243 = vmul.bf16 %v4107, %v4214
      %v4244 = vmul.bf16 %v4108, %v4216
      %v4245 = vmul.bf16 %v4109, %v4218
      %v4246 = vmul.bf16 %v4110, %v4220
      %v4247 = vmul.bf16 %v4111, %v4222
      %v4248 = vmul.bf16 %v4112, %v4224
      %v4249 = vmul.bf16 %v4113, %v4226
      %v4250 = vmul.bf16 %v4114, %v4228
      %v4251 = vmul.bf16 %v4115, %v4230
      %v4252 = vmul.bf16 %v4116, %v4232
      %v4253 = vmul.bf16 %v4117, %v4234
      %v4254 = vmul.bf16 %v4118, %v4236
      %v4255 = vmul.bf16 %v4119, %v4238
      %v4256 = vld [vmem:[%s2 + $0x8] sm:$0x1]
      %4257 = vset.pattern.permute.xlu0 0
      %4258 = vperm.xlu0 %4257, %v176
      %v4259 = vpop.permute.xlu0 %4258
      %4261 = vset.pattern.permute.xlu0 0
      %4262 = vperm.xlu0 %4261, %v177
      %v4263 = vpop.permute.xlu0 %4262
      %4265 = vset.pattern.permute.xlu0 0
      %4266 = vperm.xlu0 %4265, %v178
      %v4267 = vpop.permute.xlu0 %4266
      %4269 = vset.pattern.permute.xlu0 0
      %4270 = vperm.xlu0 %4269, %v179
      %v4271 = vpop.permute.xlu0 %4270
      %4273 = vset.pattern.permute.xlu0 0
      %4274 = vperm.xlu0 %4273, %v180
      %v4275 = vpop.permute.xlu0 %4274
      %4277 = vset.pattern.permute.xlu0 0
      %4278 = vperm.xlu0 %4277, %v181
      %v4279 = vpop.permute.xlu0 %4278
      %4281 = vset.pattern.permute.xlu0 0
      %4282 = vperm.xlu0 %4281, %v182
      %v4283 = vpop.permute.xlu0 %4282
      %4285 = vset.pattern.permute.xlu0 0
      %4286 = vperm.xlu0 %4285, %v183
      %v4287 = vpop.permute.xlu0 %4286
      %4289 = vset.pattern.permute.xlu0 0
      %4290 = vperm.xlu0 %4289, %v184
      %v4291 = vpop.permute.xlu0 %4290
      %4293 = vset.pattern.permute.xlu0 0
      %4294 = vperm.xlu0 %4293, %v185
      %v4295 = vpop.permute.xlu0 %4294
      %4297 = vset.pattern.permute.xlu0 0
      %4298 = vperm.xlu0 %4297, %v186
      %v4299 = vpop.permute.xlu0 %4298
      %4301 = vset.pattern.permute.xlu0 0
      %4302 = vperm.xlu0 %4301, %v187
      %v4303 = vpop.permute.xlu0 %4302
      %4305 = vset.pattern.permute.xlu0 0
      %4306 = vperm.xlu0 %4305, %v188
      %v4307 = vpop.permute.xlu0 %4306
      %4309 = vset.pattern.permute.xlu0 0
      %4310 = vperm.xlu0 %4309, %v189
      %v4311 = vpop.permute.xlu0 %4310
      %4313 = vset.pattern.permute.xlu0 0
      %4314 = vperm.xlu0 %4313, %v190
      %v4315 = vpop.permute.xlu0 %4314
      %4317 = vset.pattern.permute.xlu0 0
      %4318 = vperm.xlu0 %4317, %v191
      %v4319 = vpop.permute.xlu0 %4318
      %4321 = vset.pattern.permute.xlu0 0
      %4322 = vperm.xlu0 %4321, %v192
      %v4323 = vpop.permute.xlu0 %4322
      %4325 = vset.pattern.permute.xlu0 0
      %4326 = vperm.xlu0 %4325, %v193
      %v4327 = vpop.permute.xlu0 %4326
      %4329 = vset.pattern.permute.xlu0 0
      %4330 = vperm.xlu0 %4329, %v194
      %v4331 = vpop.permute.xlu0 %4330
      %4333 = vset.pattern.permute.xlu0 0
      %4334 = vperm.xlu0 %4333, %v195
      %v4335 = vpop.permute.xlu0 %4334
      %4337 = vset.pattern.permute.xlu0 0
      %4338 = vperm.xlu0 %4337, %v196
      %v4339 = vpop.permute.xlu0 %4338
      %4341 = vset.pattern.permute.xlu0 0
      %4342 = vperm.xlu0 %4341, %v197
      %v4343 = vpop.permute.xlu0 %4342
      %4345 = vset.pattern.permute.xlu0 0
      %4346 = vperm.xlu0 %4345, %v198
      %v4347 = vpop.permute.xlu0 %4346
      %4349 = vset.pattern.permute.xlu0 0
      %4350 = vperm.xlu0 %4349, %v199
      %v4351 = vpop.permute.xlu0 %4350
      %4353 = vset.pattern.permute.xlu0 0
      %4354 = vperm.xlu0 %4353, %v200
      %v4355 = vpop.permute.xlu0 %4354
      %4357 = vset.pattern.permute.xlu0 0
      %4358 = vperm.xlu0 %4357, %v201
      %v4359 = vpop.permute.xlu0 %4358
      %4361 = vset.pattern.permute.xlu0 0
      %4362 = vperm.xlu0 %4361, %v202
      %v4363 = vpop.permute.xlu0 %4362
      %4365 = vset.pattern.permute.xlu0 0
      %4366 = vperm.xlu0 %4365, %v203
      %v4367 = vpop.permute.xlu0 %4366
      %4369 = vset.pattern.permute.xlu0 0
      %4370 = vperm.xlu0 %4369, %v204
      %v4371 = vpop.permute.xlu0 %4370
      %4373 = vset.pattern.permute.xlu0 0
      %4374 = vperm.xlu0 %4373, %v205
      %v4375 = vpop.permute.xlu0 %4374
      %4377 = vset.pattern.permute.xlu0 0
      %4378 = vperm.xlu0 %4377, %v206
      %v4379 = vpop.permute.xlu0 %4378
      %4381 = vset.pattern.permute.xlu0 0
      %4382 = vperm.xlu0 %4381, %v207
      %v4383 = vpop.permute.xlu0 %4382
      %4385 = vset.pattern.permute.xlu0 0
      %4386 = vperm.xlu0 %4385, %v208
      %v4387 = vpop.permute.xlu0 %4386
      %v4389 = vlaneseq
      %v4390 = vshrl.u32 %v4389, 7
      %v4391 = vsub.s32 0, %v4390
      %v4392 = vrot.slane %v4256, %v4391
      %v4393 = vmul.f32 %v4259, %v4392
      %v4394 = vmul.f32 %v4263, %v4392
      %v4395 = vmul.f32 %v4267, %v4392
      %v4396 = vmul.f32 %v4271, %v4392
      %v4397 = vmul.f32 %v4275, %v4392
      %v4398 = vmul.f32 %v4279, %v4392
      %v4399 = vmul.f32 %v4283, %v4392
      %v4400 = vmul.f32 %v4287, %v4392
      %v4401 = vmul.f32 %v4291, %v4392
      %v4402 = vmul.f32 %v4295, %v4392
      %v4403 = vmul.f32 %v4299, %v4392
      %v4404 = vmul.f32 %v4303, %v4392
      %v4405 = vmul.f32 %v4307, %v4392
      %v4406 = vmul.f32 %v4311, %v4392
      %v4407 = vmul.f32 %v4315, %v4392
      %v4408 = vmul.f32 %v4319, %v4392
      %v4409 = vmul.f32 %v4323, %v4392
      %v4410 = vmul.f32 %v4327, %v4392
      %v4411 = vmul.f32 %v4331, %v4392
      %v4412 = vmul.f32 %v4335, %v4392
      %v4413 = vmul.f32 %v4339, %v4392
      %v4414 = vmul.f32 %v4343, %v4392
      %v4415 = vmul.f32 %v4347, %v4392
      %v4416 = vmul.f32 %v4351, %v4392
      %v4417 = vmul.f32 %v4355, %v4392
      %v4418 = vmul.f32 %v4359, %v4392
      %v4419 = vmul.f32 %v4363, %v4392
      %v4420 = vmul.f32 %v4367, %v4392
      %v4421 = vmul.f32 %v4371, %v4392
      %v4422 = vmul.f32 %v4375, %v4392
      %v4423 = vmul.f32 %v4379, %v4392
      %v4424 = vmul.f32 %v4383, %v4392
      %v4425 = vmul.f32 %v4387, %v4392
      %v4426 = vld [vmem:[%s2 + $0x9] sm:$0x1]
      %4427 = vset.pattern.permute.xlu0 1
      %4428 = vperm.xlu0 %4427, %v176
      %v4429 = vpop.permute.xlu0 %4428
      %4431 = vset.pattern.permute.xlu0 1
      %4432 = vperm.xlu0 %4431, %v177
      %v4433 = vpop.permute.xlu0 %4432
      %4435 = vset.pattern.permute.xlu0 1
      %4436 = vperm.xlu0 %4435, %v178
      %v4437 = vpop.permute.xlu0 %4436
      %4439 = vset.pattern.permute.xlu0 1
      %4440 = vperm.xlu0 %4439, %v179
      %v4441 = vpop.permute.xlu0 %4440
      %4443 = vset.pattern.permute.xlu0 1
      %4444 = vperm.xlu0 %4443, %v180
      %v4445 = vpop.permute.xlu0 %4444
      %4447 = vset.pattern.permute.xlu0 1
      %4448 = vperm.xlu0 %4447, %v181
      %v4449 = vpop.permute.xlu0 %4448
      %4451 = vset.pattern.permute.xlu0 1
      %4452 = vperm.xlu0 %4451, %v182
      %v4453 = vpop.permute.xlu0 %4452
      %4455 = vset.pattern.permute.xlu0 1
      %4456 = vperm.xlu0 %4455, %v183
      %v4457 = vpop.permute.xlu0 %4456
      %4459 = vset.pattern.permute.xlu0 1
      %4460 = vperm.xlu0 %4459, %v184
      %v4461 = vpop.permute.xlu0 %4460
      %4463 = vset.pattern.permute.xlu0 1
      %4464 = vperm.xlu0 %4463, %v185
      %v4465 = vpop.permute.xlu0 %4464
      %4467 = vset.pattern.permute.xlu0 1
      %4468 = vperm.xlu0 %4467, %v186
      %v4469 = vpop.permute.xlu0 %4468
      %4471 = vset.pattern.permute.xlu0 1
      %4472 = vperm.xlu0 %4471, %v187
      %v4473 = vpop.permute.xlu0 %4472
      %4475 = vset.pattern.permute.xlu0 1
      %4476 = vperm.xlu0 %4475, %v188
      %v4477 = vpop.permute.xlu0 %4476
      %4479 = vset.pattern.permute.xlu0 1
      %4480 = vperm.xlu0 %4479, %v189
      %v4481 = vpop.permute.xlu0 %4480
      %4483 = vset.pattern.permute.xlu0 1
      %4484 = vperm.xlu0 %4483, %v190
      %v4485 = vpop.permute.xlu0 %4484
      %4487 = vset.pattern.permute.xlu0 1
      %4488 = vperm.xlu0 %4487, %v191
      %v4489 = vpop.permute.xlu0 %4488
      %4491 = vset.pattern.permute.xlu0 1
      %4492 = vperm.xlu0 %4491, %v192
      %v4493 = vpop.permute.xlu0 %4492
      %4495 = vset.pattern.permute.xlu0 1
      %4496 = vperm.xlu0 %4495, %v193
      %v4497 = vpop.permute.xlu0 %4496
      %4499 = vset.pattern.permute.xlu0 1
      %4500 = vperm.xlu0 %4499, %v194
      %v4501 = vpop.permute.xlu0 %4500
      %4503 = vset.pattern.permute.xlu0 1
      %4504 = vperm.xlu0 %4503, %v195
      %v4505 = vpop.permute.xlu0 %4504
      %4507 = vset.pattern.permute.xlu0 1
      %4508 = vperm.xlu0 %4507, %v196
      %v4509 = vpop.permute.xlu0 %4508
      %4511 = vset.pattern.permute.xlu0 1
      %4512 = vperm.xlu0 %4511, %v197
      %v4513 = vpop.permute.xlu0 %4512
      %4515 = vset.pattern.permute.xlu0 1
      %4516 = vperm.xlu0 %4515, %v198
      %v4517 = vpop.permute.xlu0 %4516
      %4519 = vset.pattern.permute.xlu0 1
      %4520 = vperm.xlu0 %4519, %v199
      %v4521 = vpop.permute.xlu0 %4520
      %4523 = vset.pattern.permute.xlu0 1
      %4524 = vperm.xlu0 %4523, %v200
      %v4525 = vpop.permute.xlu0 %4524
      %4527 = vset.pattern.permute.xlu0 1
      %4528 = vperm.xlu0 %4527, %v201
      %v4529 = vpop.permute.xlu0 %4528
      %4531 = vset.pattern.permute.xlu0 1
      %4532 = vperm.xlu0 %4531, %v202
      %v4533 = vpop.permute.xlu0 %4532
      %4535 = vset.pattern.permute.xlu0 1
      %4536 = vperm.xlu0 %4535, %v203
      %v4537 = vpop.permute.xlu0 %4536
      %4539 = vset.pattern.permute.xlu0 1
      %4540 = vperm.xlu0 %4539, %v204
      %v4541 = vpop.permute.xlu0 %4540
      %4543 = vset.pattern.permute.xlu0 1
      %4544 = vperm.xlu0 %4543, %v205
      %v4545 = vpop.permute.xlu0 %4544
      %4547 = vset.pattern.permute.xlu0 1
      %4548 = vperm.xlu0 %4547, %v206
      %v4549 = vpop.permute.xlu0 %4548
      %4551 = vset.pattern.permute.xlu0 1
      %4552 = vperm.xlu0 %4551, %v207
      %v4553 = vpop.permute.xlu0 %4552
      %4555 = vset.pattern.permute.xlu0 1
      %4556 = vperm.xlu0 %4555, %v208
      %v4557 = vpop.permute.xlu0 %4556
      %v4559 = vlaneseq
      %v4560 = vshrl.u32 %v4559, 7
      %v4561 = vsub.s32 0, %v4560
      %v4562 = vrot.slane %v4426, %v4561
      %v4563 = vmul.f32 %v4429, %v4562
      %v4564 = vmul.f32 %v4433, %v4562
      %v4565 = vmul.f32 %v4437, %v4562
      %v4566 = vmul.f32 %v4441, %v4562
      %v4567 = vmul.f32 %v4445, %v4562
      %v4568 = vmul.f32 %v4449, %v4562
      %v4569 = vmul.f32 %v4453, %v4562
      %v4570 = vmul.f32 %v4457, %v4562
      %v4571 = vmul.f32 %v4461, %v4562
      %v4572 = vmul.f32 %v4465, %v4562
      %v4573 = vmul.f32 %v4469, %v4562
      %v4574 = vmul.f32 %v4473, %v4562
      %v4575 = vmul.f32 %v4477, %v4562
      %v4576 = vmul.f32 %v4481, %v4562
      %v4577 = vmul.f32 %v4485, %v4562
      %v4578 = vmul.f32 %v4489, %v4562
      %v4579 = vmul.f32 %v4493, %v4562
      %v4580 = vmul.f32 %v4497, %v4562
      %v4581 = vmul.f32 %v4501, %v4562
      %v4582 = vmul.f32 %v4505, %v4562
      %v4583 = vmul.f32 %v4509, %v4562
      %v4584 = vmul.f32 %v4513, %v4562
      %v4585 = vmul.f32 %v4517, %v4562
      %v4586 = vmul.f32 %v4521, %v4562
      %v4587 = vmul.f32 %v4525, %v4562
      %v4588 = vmul.f32 %v4529, %v4562
      %v4589 = vmul.f32 %v4533, %v4562
      %v4590 = vmul.f32 %v4537, %v4562
      %v4591 = vmul.f32 %v4541, %v4562
      %v4592 = vmul.f32 %v4545, %v4562
      %v4593 = vmul.f32 %v4549, %v4562
      %v4594 = vmul.f32 %v4553, %v4562
      %v4595 = vmul.f32 %v4557, %v4562
      %v4596 = vadd.f32 %v4393, %v4563
      %v4597 = vadd.f32 %v4394, %v4564
      %v4598 = vadd.f32 %v4395, %v4565
      %v4599 = vadd.f32 %v4396, %v4566
      %v4600 = vadd.f32 %v4397, %v4567
      %v4601 = vadd.f32 %v4398, %v4568
      %v4602 = vadd.f32 %v4399, %v4569
      %v4603 = vadd.f32 %v4400, %v4570
      %v4604 = vadd.f32 %v4401, %v4571
      %v4605 = vadd.f32 %v4402, %v4572
      %v4606 = vadd.f32 %v4403, %v4573
      %v4607 = vadd.f32 %v4404, %v4574
      %v4608 = vadd.f32 %v4405, %v4575
      %v4609 = vadd.f32 %v4406, %v4576
      %v4610 = vadd.f32 %v4407, %v4577
      %v4611 = vadd.f32 %v4408, %v4578
      %v4612 = vadd.f32 %v4409, %v4579
      %v4613 = vadd.f32 %v4410, %v4580
      %v4614 = vadd.f32 %v4411, %v4581
      %v4615 = vadd.f32 %v4412, %v4582
      %v4616 = vadd.f32 %v4413, %v4583
      %v4617 = vadd.f32 %v4414, %v4584
      %v4618 = vadd.f32 %v4415, %v4585
      %v4619 = vadd.f32 %v4416, %v4586
      %v4620 = vadd.f32 %v4417, %v4587
      %v4621 = vadd.f32 %v4418, %v4588
      %v4622 = vadd.f32 %v4419, %v4589
      %v4623 = vadd.f32 %v4420, %v4590
      %v4624 = vadd.f32 %v4421, %v4591
      %v4625 = vadd.f32 %v4422, %v4592
      %v4626 = vadd.f32 %v4423, %v4593
      %v4627 = vadd.f32 %v4424, %v4594
      %v4628 = vadd.f32 %v4425, %v4595
      %v4629 = vld [vmem:[%s1 + $0x40] sm:$0xf]
      %v4630 = vld [vmem:[%s1 + $0x44] sm:$0xf]
      %v4631 = vld [vmem:[%s1 + $0x48] sm:$0xf]
      %v4632 = vld [vmem:[%s1 + $0x4c] sm:$0xf]
      %v4633 = vld [vmem:[%s1 + $0x50] sm:$0xf]
      %v4634 = vld [vmem:[%s1 + $0x54] sm:$0xf]
      %v4635 = vld [vmem:[%s1 + $0x58] sm:$0xf]
      %v4636 = vld [vmem:[%s1 + $0x5c] sm:$0xf]
      %v4637 = vld [vmem:[%s1 + $0x60] sm:$0xf]
      %v4638 = vld [vmem:[%s1 + $0x64] sm:$0xf]
      %v4639 = vld [vmem:[%s1 + $0x68] sm:$0xf]
      %v4640 = vld [vmem:[%s1 + $0x6c] sm:$0xf]
      %v4641 = vld [vmem:[%s1 + $0x70] sm:$0xf]
      %v4642 = vld [vmem:[%s1 + $0x74] sm:$0xf]
      %v4643 = vld [vmem:[%s1 + $0x78] sm:$0xf]
      %v4644 = vld [vmem:[%s1 + $0x7c] sm:$0xf]
      %v4661 = vunpack.c.l.b16 %v4629
      %v4662 = vunpack.c.l.b16 %v4630
      %v4663 = vunpack.c.l.b16 %v4631
      %v4664 = vunpack.c.l.b16 %v4632
      %v4665 = vunpack.c.l.b16 %v4633
      %v4666 = vunpack.c.l.b16 %v4634
      %v4667 = vunpack.c.l.b16 %v4635
      %v4668 = vunpack.c.l.b16 %v4636
      %v4669 = vunpack.c.l.b16 %v4637
      %v4670 = vunpack.c.l.b16 %v4638
      %v4671 = vunpack.c.l.b16 %v4639
      %v4672 = vunpack.c.l.b16 %v4640
      %v4673 = vunpack.c.l.b16 %v4641
      %v4674 = vunpack.c.l.b16 %v4642
      %v4675 = vunpack.c.l.b16 %v4643
      %v4676 = vunpack.c.l.b16 %v4644
      %v4677 = vpack.c.b16 %v4662, %v4661
      %v4678 = vpack.c.b16 %v4664, %v4663
      %v4679 = vpack.c.b16 %v4666, %v4665
      %v4680 = vpack.c.b16 %v4668, %v4667
      %v4681 = vpack.c.b16 %v4670, %v4669
      %v4682 = vpack.c.b16 %v4672, %v4671
      %v4683 = vpack.c.b16 %v4674, %v4673
      %v4684 = vpack.c.b16 %v4676, %v4675
      %4693 = vmatprep.subr.bf16.mxu0 0
      %4694 = vmatpush1.bf16.msra.mxu0 %v4684
      %4695 = vmatprep.subr.bf16.mxu0 0
      %4696 = vmatpush1.bf16.msra.mxu0 %v4683
      %4697 = vmatprep.subr.bf16.mxu0 0
      %4698 = vmatpush1.bf16.msra.mxu0 %v4682
      %4699 = vmatprep.subr.bf16.mxu0 0
      %4700 = vmatpush1.bf16.msra.mxu0 %v4681
      %4701 = vmatprep.subr.bf16.mxu0 0
      %4702 = vmatpush1.bf16.msra.mxu0 %v4680
      %4703 = vmatprep.subr.bf16.mxu0 0
      %4704 = vmatpush1.bf16.msra.mxu0 %v4679
      %4705 = vmatprep.subr.bf16.mxu0 0
      %4706 = vmatpush1.bf16.msra.mxu0 %v4678
      %4707 = vmatprep.subr.bf16.mxu0 0
      %4708 = vmatpush1.bf16.msra.mxu0 %v4677
      %4709 = vmatprep.subr.bf16.mxu0 0
      %4710 = vmatpush2.bf16.msra.mxu0 0
      %4711 = vmatprep.subr.bf16.mxu0 0
      %4712 = vmatpush2.bf16.msra.mxu0 0
      %4713 = vmatprep.subr.bf16.mxu0 0
      %4714 = vmatpush2.bf16.msra.mxu0 0
      %4715 = vmatprep.subr.bf16.mxu0 0
      %4716 = vmatpush2.bf16.msra.mxu0 0
      %4717 = vmatprep.subr.bf16.mxu0 0
      %4718 = vmatpush2.bf16.msra.mxu0 0
      %4719 = vmatprep.subr.bf16.mxu0 0
      %4720 = vmatpush2.bf16.msra.mxu0 0
      %4721 = vmatprep.subr.bf16.mxu0 0
      %4722 = vmatpush2.bf16.msra.mxu0 0
      %4723 = vmatprep.subr.bf16.mxu0 0
      %4724 = vmatpush2.bf16.msra.mxu0 0
      %4725 = vmatprep.mubr.bf16.mxu0 0
      %4726 = vmatmul.mubr.bf16.gmra.mxu0 %v4239
      %v4727 = vpop.f32.mrf.mxu0
      %v4728 = vadd.f32 %v4596, %v4727
      %v4729 = vpop.f32.mrf.mxu0
      %v4730 = vpop.f32.mrf.mxu0
      %v4731 = vadd.f32 %v4597, %v4730
      %v4732 = vpop.f32.mrf.mxu0
      %4733 = vmatprep.mubr.bf16.mxu0 0
      %4734 = vmatmul.mubr.bf16.gmra.mxu0 %v4240
      %v4735 = vpop.f32.mrf.mxu0
      %v4736 = vadd.f32 %v4598, %v4735
      %v4737 = vpop.f32.mrf.mxu0
      %v4738 = vpop.f32.mrf.mxu0
      %v4739 = vadd.f32 %v4599, %v4738
      %v4740 = vpop.f32.mrf.mxu0
      %4741 = vmatprep.mubr.bf16.mxu0 0
      %4742 = vmatmul.mubr.bf16.gmra.mxu0 %v4241
      %v4743 = vpop.f32.mrf.mxu0
      %v4744 = vadd.f32 %v4600, %v4743
      %v4745 = vpop.f32.mrf.mxu0
      %v4746 = vpop.f32.mrf.mxu0
      %v4747 = vadd.f32 %v4601, %v4746
      %v4748 = vpop.f32.mrf.mxu0
      %4749 = vmatprep.mubr.bf16.mxu0 0
      %4750 = vmatmul.mubr.bf16.gmra.mxu0 %v4242
      %v4751 = vpop.f32.mrf.mxu0
      %v4752 = vadd.f32 %v4602, %v4751
      %v4753 = vpop.f32.mrf.mxu0
      %v4754 = vpop.f32.mrf.mxu0
      %v4755 = vadd.f32 %v4603, %v4754
      %v4756 = vpop.f32.mrf.mxu0
      %4757 = vmatprep.mubr.bf16.mxu0 0
      %4758 = vmatmul.mubr.bf16.gmra.mxu0 %v4243
      %v4759 = vpop.f32.mrf.mxu0
      %v4760 = vadd.f32 %v4604, %v4759
      %v4761 = vpop.f32.mrf.mxu0
      %v4762 = vpop.f32.mrf.mxu0
      %v4763 = vadd.f32 %v4605, %v4762
      %v4764 = vpop.f32.mrf.mxu0
      %4765 = vmatprep.mubr.bf16.mxu0 0
      %4766 = vmatmul.mubr.bf16.gmra.mxu0 %v4244
      %v4767 = vpop.f32.mrf.mxu0
      %v4768 = vadd.f32 %v4606, %v4767
      %v4769 = vpop.f32.mrf.mxu0
      %v4770 = vpop.f32.mrf.mxu0
      %v4771 = vadd.f32 %v4607, %v4770
      %v4772 = vpop.f32.mrf.mxu0
      %4773 = vmatprep.mubr.bf16.mxu0 0
      %4774 = vmatmul.mubr.bf16.gmra.mxu0 %v4245
      %v4775 = vpop.f32.mrf.mxu0
      %v4776 = vadd.f32 %v4608, %v4775
      %v4777 = vpop.f32.mrf.mxu0
      %v4778 = vpop.f32.mrf.mxu0
      %v4779 = vadd.f32 %v4609, %v4778
      %v4780 = vpop.f32.mrf.mxu0
      %4781 = vmatprep.mubr.bf16.mxu0 0
      %4782 = vmatmul.mubr.bf16.gmra.mxu0 %v4246
      %v4783 = vpop.f32.mrf.mxu0
      %v4784 = vadd.f32 %v4610, %v4783
      %v4785 = vpop.f32.mrf.mxu0
      %v4786 = vpop.f32.mrf.mxu0
      %v4787 = vadd.f32 %v4611, %v4786
      %v4788 = vpop.f32.mrf.mxu0
      %4789 = vmatprep.mubr.bf16.mxu0 0
      %4790 = vmatmul.mubr.bf16.gmra.mxu0 %v4247
      %v4791 = vpop.f32.mrf.mxu0
      %v4792 = vadd.f32 %v4612, %v4791
      %v4793 = vpop.f32.mrf.mxu0
      %v4794 = vpop.f32.mrf.mxu0
      %v4795 = vadd.f32 %v4613, %v4794
      %v4796 = vpop.f32.mrf.mxu0
      %4797 = vmatprep.mubr.bf16.mxu0 0
      %4798 = vmatmul.mubr.bf16.gmra.mxu0 %v4248
      %v4799 = vpop.f32.mrf.mxu0
      %v4800 = vadd.f32 %v4614, %v4799
      %v4801 = vpop.f32.mrf.mxu0
      %v4802 = vpop.f32.mrf.mxu0
      %v4803 = vadd.f32 %v4615, %v4802
      %v4804 = vpop.f32.mrf.mxu0
      %4805 = vmatprep.mubr.bf16.mxu0 0
      %4806 = vmatmul.mubr.bf16.gmra.mxu0 %v4249
      %v4807 = vpop.f32.mrf.mxu0
      %v4808 = vadd.f32 %v4616, %v4807
      %v4809 = vpop.f32.mrf.mxu0
      %v4810 = vpop.f32.mrf.mxu0
      %v4811 = vadd.f32 %v4617, %v4810
      %v4812 = vpop.f32.mrf.mxu0
      %4813 = vmatprep.mubr.bf16.mxu0 0
      %4814 = vmatmul.mubr.bf16.gmra.mxu0 %v4250
      %v4815 = vpop.f32.mrf.mxu0
      %v4816 = vadd.f32 %v4618, %v4815
      %v4817 = vpop.f32.mrf.mxu0
      %v4818 = vpop.f32.mrf.mxu0
      %v4819 = vadd.f32 %v4619, %v4818
      %v4820 = vpop.f32.mrf.mxu0
      %4821 = vmatprep.mubr.bf16.mxu0 0
      %4822 = vmatmul.mubr.bf16.gmra.mxu0 %v4251
      %v4823 = vpop.f32.mrf.mxu0
      %v4824 = vadd.f32 %v4620, %v4823
      %v4825 = vpop.f32.mrf.mxu0
      %v4826 = vpop.f32.mrf.mxu0
      %v4827 = vadd.f32 %v4621, %v4826
      %v4828 = vpop.f32.mrf.mxu0
      %4829 = vmatprep.mubr.bf16.mxu0 0
      %4830 = vmatmul.mubr.bf16.gmra.mxu0 %v4252
      %v4831 = vpop.f32.mrf.mxu0
      %v4832 = vadd.f32 %v4622, %v4831
      %v4833 = vpop.f32.mrf.mxu0
      %v4834 = vpop.f32.mrf.mxu0
      %v4835 = vadd.f32 %v4623, %v4834
      %v4836 = vpop.f32.mrf.mxu0
      %4837 = vmatprep.mubr.bf16.mxu0 0
      %4838 = vmatmul.mubr.bf16.gmra.mxu0 %v4253
      %v4839 = vpop.f32.mrf.mxu0
      %v4840 = vadd.f32 %v4624, %v4839
      %v4841 = vpop.f32.mrf.mxu0
      %v4842 = vpop.f32.mrf.mxu0
      %v4843 = vadd.f32 %v4625, %v4842
      %v4844 = vpop.f32.mrf.mxu0
      %4845 = vmatprep.mubr.bf16.mxu0 0
      %4846 = vmatmul.mubr.bf16.gmra.mxu0 %v4254
      %v4847 = vpop.f32.mrf.mxu0
      %v4848 = vadd.f32 %v4626, %v4847
      %v4849 = vpop.f32.mrf.mxu0
      %v4850 = vpop.f32.mrf.mxu0
      %v4851 = vadd.f32 %v4627, %v4850
      %v4852 = vpop.f32.mrf.mxu0
      %4853 = vmatprep.mubr.bf16.mxu0 0
      %4854 = vmatmul.mubr.bf16.gmra.mxu0 %v4255
      %v4855 = vpop.f32.mrf.mxu0
      %v4856 = vadd.f32 %v4628, %v4855
      %v4857 = vpop.f32.mrf.mxu0
      %v4858 = vpop.f32.mrf.mxu0
      %v4859 = vpop.f32.mrf.mxu0
      %4860 = vdwg.mxu0
      %v4861 = vld [vmem:[%s2 + $0x3] sm:$0x1]
      %v4862 = vlaneseq
      %v4863 = vshrl.u32 %v4862, 7
      %v4864 = vsub.s32 0, %v4863
      %v4865 = vrot.slane %v4861, %v4864
      %v4866 = vadd.f32 %v4728, %v4865
      %v4867 = vadd.f32 %v4731, %v4865
      %v4868 = vadd.f32 %v4736, %v4865
      %v4869 = vadd.f32 %v4739, %v4865
      %v4870 = vadd.f32 %v4744, %v4865
      %v4871 = vadd.f32 %v4747, %v4865
      %v4872 = vadd.f32 %v4752, %v4865
      %v4873 = vadd.f32 %v4755, %v4865
      %v4874 = vadd.f32 %v4760, %v4865
      %v4875 = vadd.f32 %v4763, %v4865
      %v4876 = vadd.f32 %v4768, %v4865
      %v4877 = vadd.f32 %v4771, %v4865
      %v4878 = vadd.f32 %v4776, %v4865
      %v4879 = vadd.f32 %v4779, %v4865
      %v4880 = vadd.f32 %v4784, %v4865
      %v4881 = vadd.f32 %v4787, %v4865
      %v4882 = vadd.f32 %v4792, %v4865
      %v4883 = vadd.f32 %v4795, %v4865
      %v4884 = vadd.f32 %v4800, %v4865
      %v4885 = vadd.f32 %v4803, %v4865
      %v4886 = vadd.f32 %v4808, %v4865
      %v4887 = vadd.f32 %v4811, %v4865
      %v4888 = vadd.f32 %v4816, %v4865
      %v4889 = vadd.f32 %v4819, %v4865
      %v4890 = vadd.f32 %v4824, %v4865
      %v4891 = vadd.f32 %v4827, %v4865
      %v4892 = vadd.f32 %v4832, %v4865
      %v4893 = vadd.f32 %v4835, %v4865
      %v4894 = vadd.f32 %v4840, %v4865
      %v4895 = vadd.f32 %v4843, %v4865
      %v4896 = vadd.f32 %v4848, %v4865
      %v4897 = vadd.f32 %v4851, %v4865
      %v4898 = vadd.f32 %v4856, %v4865
      %v4899 = vpack.c.bf16 %v4867, %v4866
      %v4900 = vpack.c.bf16 %v4869, %v4868
      %v4901 = vpack.c.bf16 %v4871, %v4870
      %v4902 = vpack.c.bf16 %v4873, %v4872
      %v4903 = vpack.c.bf16 %v4875, %v4874
      %v4904 = vpack.c.bf16 %v4877, %v4876
      %v4905 = vpack.c.bf16 %v4879, %v4878
      %v4906 = vpack.c.bf16 %v4881, %v4880
      %v4907 = vpack.c.bf16 %v4883, %v4882
      %v4908 = vpack.c.bf16 %v4885, %v4884
      %v4909 = vpack.c.bf16 %v4887, %v4886
      %v4910 = vpack.c.bf16 %v4889, %v4888
      %v4911 = vpack.c.bf16 %v4891, %v4890
      %v4912 = vpack.c.bf16 %v4893, %v4892
      %v4913 = vpack.c.bf16 %v4895, %v4894
      %v4914 = vpack.c.bf16 %v4897, %v4896
      %v4915 = vpack.c.bf16 %v4898, %v4898
      %v4916 = vxor.u32 %v4899, 2147516416
      %v4917 = vxor.u32 %v4900, 2147516416
      %v4918 = vxor.u32 %v4901, 2147516416
      %v4919 = vxor.u32 %v4902, 2147516416
      %v4920 = vxor.u32 %v4903, 2147516416
      %v4921 = vxor.u32 %v4904, 2147516416
      %v4922 = vxor.u32 %v4905, 2147516416
      %v4923 = vxor.u32 %v4906, 2147516416
      %v4924 = vxor.u32 %v4907, 2147516416
      %v4925 = vxor.u32 %v4908, 2147516416
      %v4926 = vxor.u32 %v4909, 2147516416
      %v4927 = vxor.u32 %v4910, 2147516416
      %v4928 = vxor.u32 %v4911, 2147516416
      %v4929 = vxor.u32 %v4912, 2147516416
      %v4930 = vxor.u32 %v4913, 2147516416
      %v4931 = vxor.u32 %v4914, 2147516416
      %v4932 = vxor.u32 %v4915, 2147516416
      %v4934 = vmul.bf16 %v4916, 1069105081
      %v4935 = vpow.bf16.pop %v4934
      %v4937 = vmul.bf16 %v4917, 1069105081
      %v4938 = vpow.bf16.pop %v4937
      %v4940 = vmul.bf16 %v4918, 1069105081
      %v4941 = vpow.bf16.pop %v4940
      %v4943 = vmul.bf16 %v4919, 1069105081
      %v4944 = vpow.bf16.pop %v4943
      %v4946 = vmul.bf16 %v4920, 1069105081
      %v4947 = vpow.bf16.pop %v4946
      %v4949 = vmul.bf16 %v4921, 1069105081
      %v4950 = vpow.bf16.pop %v4949
      %v4952 = vmul.bf16 %v4922, 1069105081
      %v4953 = vpow.bf16.pop %v4952
      %v4955 = vmul.bf16 %v4923, 1069105081
      %v4956 = vpow.bf16.pop %v4955
      %v4958 = vmul.bf16 %v4924, 1069105081
      %v4959 = vpow.bf16.pop %v4958
      %v4961 = vmul.bf16 %v4925, 1069105081
      %v4962 = vpow.bf16.pop %v4961
      %v4964 = vmul.bf16 %v4926, 1069105081
      %v4965 = vpow.bf16.pop %v4964
      %v4967 = vmul.bf16 %v4927, 1069105081
      %v4968 = vpow.bf16.pop %v4967
      %v4970 = vmul.bf16 %v4928, 1069105081
      %v4971 = vpow.bf16.pop %v4970
      %v4973 = vmul.bf16 %v4929, 1069105081
      %v4974 = vpow.bf16.pop %v4973
      %v4976 = vmul.bf16 %v4930, 1069105081
      %v4977 = vpow.bf16.pop %v4976
      %v4979 = vmul.bf16 %v4931, 1069105081
      %v4980 = vpow.bf16.pop %v4979
      %v4982 = vmul.bf16 %v4932, 1069105081
      %v4983 = vpow.bf16.pop %v4982
      %v4984 = vadd.bf16 %v4935, 1065369472
      %v4985 = vadd.bf16 %v4938, 1065369472
      %v4986 = vadd.bf16 %v4941, 1065369472
      %v4987 = vadd.bf16 %v4944, 1065369472
      %v4988 = vadd.bf16 %v4947, 1065369472
      %v4989 = vadd.bf16 %v4950, 1065369472
      %v4990 = vadd.bf16 %v4953, 1065369472
      %v4991 = vadd.bf16 %v4956, 1065369472
      %v4992 = vadd.bf16 %v4959, 1065369472
      %v4993 = vadd.bf16 %v4962, 1065369472
      %v4994 = vadd.bf16 %v4965, 1065369472
      %v4995 = vadd.bf16 %v4968, 1065369472
      %v4996 = vadd.bf16 %v4971, 1065369472
      %v4997 = vadd.bf16 %v4974, 1065369472
      %v4998 = vadd.bf16 %v4977, 1065369472
      %v4999 = vadd.bf16 %v4980, 1065369472
      %v5000 = vadd.bf16 %v4983, 1065369472
      %v5001 = vrcp.bf16.pop %v4984
      %v5002 = vmul.bf16 1065369472, %v5001
      %v5003 = vrcp.bf16.pop %v4985
      %v5004 = vmul.bf16 1065369472, %v5003
      %v5005 = vrcp.bf16.pop %v4986
      %v5006 = vmul.bf16 1065369472, %v5005
      %v5007 = vrcp.bf16.pop %v4987
      %v5008 = vmul.bf16 1065369472, %v5007
      %v5009 = vrcp.bf16.pop %v4988
      %v5010 = vmul.bf16 1065369472, %v5009
      %v5011 = vrcp.bf16.pop %v4989
      %v5012 = vmul.bf16 1065369472, %v5011
      %v5013 = vrcp.bf16.pop %v4990
      %v5014 = vmul.bf16 1065369472, %v5013
      %v5015 = vrcp.bf16.pop %v4991
      %v5016 = vmul.bf16 1065369472, %v5015
      %v5017 = vrcp.bf16.pop %v4992
      %v5018 = vmul.bf16 1065369472, %v5017
      %v5019 = vrcp.bf16.pop %v4993
      %v5020 = vmul.bf16 1065369472, %v5019
      %v5021 = vrcp.bf16.pop %v4994
      %v5022 = vmul.bf16 1065369472, %v5021
      %v5023 = vrcp.bf16.pop %v4995
      %v5024 = vmul.bf16 1065369472, %v5023
      %v5025 = vrcp.bf16.pop %v4996
      %v5026 = vmul.bf16 1065369472, %v5025
      %v5027 = vrcp.bf16.pop %v4997
      %v5028 = vmul.bf16 1065369472, %v5027
      %v5029 = vrcp.bf16.pop %v4998
      %v5030 = vmul.bf16 1065369472, %v5029
      %v5031 = vrcp.bf16.pop %v4999
      %v5032 = vmul.bf16 1065369472, %v5031
      %v5033 = vrcp.bf16.pop %v5000
      %v5034 = vmul.bf16 1065369472, %v5033
      %v5035 = vmul.bf16 %v4899, %v5002
      %v5036 = vmul.bf16 %v4900, %v5004
      %v5037 = vmul.bf16 %v4901, %v5006
      %v5038 = vmul.bf16 %v4902, %v5008
      %v5039 = vmul.bf16 %v4903, %v5010
      %v5040 = vmul.bf16 %v4904, %v5012
      %v5041 = vmul.bf16 %v4905, %v5014
      %v5042 = vmul.bf16 %v4906, %v5016
      %v5043 = vmul.bf16 %v4907, %v5018
      %v5044 = vmul.bf16 %v4908, %v5020
      %v5045 = vmul.bf16 %v4909, %v5022
      %v5046 = vmul.bf16 %v4910, %v5024
      %v5047 = vmul.bf16 %v4911, %v5026
      %v5048 = vmul.bf16 %v4912, %v5028
      %v5049 = vmul.bf16 %v4913, %v5030
      %v5050 = vmul.bf16 %v4914, %v5032
      %v5051 = vmul.bf16 %v4915, %v5034
      %v5052 = vld [vmem:[%s1 + $0x80] sm:$0xf]
      %v5053 = vld [vmem:[%s1 + $0x84] sm:$0xf]
      %v5054 = vld [vmem:[%s1 + $0x88] sm:$0xf]
      %v5055 = vld [vmem:[%s1 + $0x8c] sm:$0xf]
      %v5056 = vld [vmem:[%s1 + $0x90] sm:$0xf]
      %v5057 = vld [vmem:[%s1 + $0x94] sm:$0xf]
      %v5058 = vld [vmem:[%s1 + $0x98] sm:$0xf]
      %v5059 = vld [vmem:[%s1 + $0x9c] sm:$0xf]
      %v5060 = vld [vmem:[%s1 + $0xa0] sm:$0xf]
      %v5061 = vld [vmem:[%s1 + $0xa4] sm:$0xf]
      %v5062 = vld [vmem:[%s1 + $0xa8] sm:$0xf]
      %v5063 = vld [vmem:[%s1 + $0xac] sm:$0xf]
      %v5064 = vld [vmem:[%s1 + $0xb0] sm:$0xf]
      %v5065 = vld [vmem:[%s1 + $0xb4] sm:$0xf]
      %v5066 = vld [vmem:[%s1 + $0xb8] sm:$0xf]
      %v5067 = vld [vmem:[%s1 + $0xbc] sm:$0xf]
      %v5068 = vld [vmem:[%s2 + $0x4] sm:$0x1]
      %v5069 = vlaneseq
      %v5070 = vshrl.u32 %v5069, 7
      %v5071 = vsub.s32 0, %v5070
      %v5072 = vrot.slane %v5068, %v5071
      %v5089 = vunpack.c.l.b16 %v5052
      %v5090 = vunpack.c.l.b16 %v5053
      %v5091 = vunpack.c.l.b16 %v5054
      %v5092 = vunpack.c.l.b16 %v5055
      %v5093 = vunpack.c.l.b16 %v5056
      %v5094 = vunpack.c.l.b16 %v5057
      %v5095 = vunpack.c.l.b16 %v5058
      %v5096 = vunpack.c.l.b16 %v5059
      %v5097 = vunpack.c.l.b16 %v5060
      %v5098 = vunpack.c.l.b16 %v5061
      %v5099 = vunpack.c.l.b16 %v5062
      %v5100 = vunpack.c.l.b16 %v5063
      %v5101 = vunpack.c.l.b16 %v5064
      %v5102 = vunpack.c.l.b16 %v5065
      %v5103 = vunpack.c.l.b16 %v5066
      %v5104 = vunpack.c.l.b16 %v5067
      %v5105 = vpack.c.b16 %v5090, %v5089
      %v5106 = vpack.c.b16 %v5092, %v5091
      %v5107 = vpack.c.b16 %v5094, %v5093
      %v5108 = vpack.c.b16 %v5096, %v5095
      %v5109 = vpack.c.b16 %v5098, %v5097
      %v5110 = vpack.c.b16 %v5100, %v5099
      %v5111 = vpack.c.b16 %v5102, %v5101
      %v5112 = vpack.c.b16 %v5104, %v5103
      %5121 = vmatprep.subr.bf16.mxu0 0
      %5122 = vmatpush1.bf16.msra.mxu0 %v5112
      %5123 = vmatprep.subr.bf16.mxu0 0
      %5124 = vmatpush1.bf16.msra.mxu0 %v5111
      %5125 = vmatprep.subr.bf16.mxu0 0
      %5126 = vmatpush1.bf16.msra.mxu0 %v5110
      %5127 = vmatprep.subr.bf16.mxu0 0
      %5128 = vmatpush1.bf16.msra.mxu0 %v5109
      %5129 = vmatprep.subr.bf16.mxu0 0
      %5130 = vmatpush1.bf16.msra.mxu0 %v5108
      %5131 = vmatprep.subr.bf16.mxu0 0
      %5132 = vmatpush1.bf16.msra.mxu0 %v5107
      %5133 = vmatprep.subr.bf16.mxu0 0
      %5134 = vmatpush1.bf16.msra.mxu0 %v5106
      %5135 = vmatprep.subr.bf16.mxu0 0
      %5136 = vmatpush1.bf16.msra.mxu0 %v5105
      %5137 = vmatprep.subr.bf16.mxu0 0
      %5138 = vmatpush2.bf16.msra.mxu0 0
      %5139 = vmatprep.subr.bf16.mxu0 0
      %5140 = vmatpush2.bf16.msra.mxu0 0
      %5141 = vmatprep.subr.bf16.mxu0 0
      %5142 = vmatpush2.bf16.msra.mxu0 0
      %5143 = vmatprep.subr.bf16.mxu0 0
      %5144 = vmatpush2.bf16.msra.mxu0 0
      %5145 = vmatprep.subr.bf16.mxu0 0
      %5146 = vmatpush2.bf16.msra.mxu0 0
      %5147 = vmatprep.subr.bf16.mxu0 0
      %5148 = vmatpush2.bf16.msra.mxu0 0
      %5149 = vmatprep.subr.bf16.mxu0 0
      %5150 = vmatpush2.bf16.msra.mxu0 0
      %5151 = vmatprep.subr.bf16.mxu0 0
      %5152 = vmatpush2.bf16.msra.mxu0 0
      %5153 = vmatprep.mubr.bf16.mxu0 0
      %5154 = vmatmul.mubr.bf16.gmra.mxu0 %v5035
      %v5155 = vpop.f32.mrf.mxu0
      %v5156 = vadd.f32 %v5072, %v5155
      %v5157 = vpop.f32.mrf.mxu0
      %v5158 = vpop.f32.mrf.mxu0
      %v5159 = vadd.f32 %v5072, %v5158
      %v5160 = vpop.f32.mrf.mxu0
      %5161 = vmatprep.mubr.bf16.mxu0 0
      %5162 = vmatmul.mubr.bf16.gmra.mxu0 %v5036
      %v5163 = vpop.f32.mrf.mxu0
      %v5164 = vadd.f32 %v5072, %v5163
      %v5165 = vpop.f32.mrf.mxu0
      %v5166 = vpop.f32.mrf.mxu0
      %v5167 = vadd.f32 %v5072, %v5166
      %v5168 = vpop.f32.mrf.mxu0
      %5169 = vmatprep.mubr.bf16.mxu0 0
      %5170 = vmatmul.mubr.bf16.gmra.mxu0 %v5037
      %v5171 = vpop.f32.mrf.mxu0
      %v5172 = vadd.f32 %v5072, %v5171
      %v5173 = vpop.f32.mrf.mxu0
      %v5174 = vpop.f32.mrf.mxu0
      %v5175 = vadd.f32 %v5072, %v5174
      %v5176 = vpop.f32.mrf.mxu0
      %5177 = vmatprep.mubr.bf16.mxu0 0
      %5178 = vmatmul.mubr.bf16.gmra.mxu0 %v5038
      %v5179 = vpop.f32.mrf.mxu0
      %v5180 = vadd.f32 %v5072, %v5179
      %v5181 = vpop.f32.mrf.mxu0
      %v5182 = vpop.f32.mrf.mxu0
      %v5183 = vadd.f32 %v5072, %v5182
      %v5184 = vpop.f32.mrf.mxu0
      %5185 = vmatprep.mubr.bf16.mxu0 0
      %5186 = vmatmul.mubr.bf16.gmra.mxu0 %v5039
      %v5187 = vpop.f32.mrf.mxu0
      %v5188 = vadd.f32 %v5072, %v5187
      %v5189 = vpop.f32.mrf.mxu0
      %v5190 = vpop.f32.mrf.mxu0
      %v5191 = vadd.f32 %v5072, %v5190
      %v5192 = vpop.f32.mrf.mxu0
      %5193 = vmatprep.mubr.bf16.mxu0 0
      %5194 = vmatmul.mubr.bf16.gmra.mxu0 %v5040
      %v5195 = vpop.f32.mrf.mxu0
      %v5196 = vadd.f32 %v5072, %v5195
      %v5197 = vpop.f32.mrf.mxu0
      %v5198 = vpop.f32.mrf.mxu0
      %v5199 = vadd.f32 %v5072, %v5198
      %v5200 = vpop.f32.mrf.mxu0
      %5201 = vmatprep.mubr.bf16.mxu0 0
      %5202 = vmatmul.mubr.bf16.gmra.mxu0 %v5041
      %v5203 = vpop.f32.mrf.mxu0
      %v5204 = vadd.f32 %v5072, %v5203
      %v5205 = vpop.f32.mrf.mxu0
      %v5206 = vpop.f32.mrf.mxu0
      %v5207 = vadd.f32 %v5072, %v5206
      %v5208 = vpop.f32.mrf.mxu0
      %5209 = vmatprep.mubr.bf16.mxu0 0
      %5210 = vmatmul.mubr.bf16.gmra.mxu0 %v5042
      %v5211 = vpop.f32.mrf.mxu0
      %v5212 = vadd.f32 %v5072, %v5211
      %v5213 = vpop.f32.mrf.mxu0
      %v5214 = vpop.f32.mrf.mxu0
      %v5215 = vadd.f32 %v5072, %v5214
      %v5216 = vpop.f32.mrf.mxu0
      %5217 = vmatprep.mubr.bf16.mxu0 0
      %5218 = vmatmul.mubr.bf16.gmra.mxu0 %v5043
      %v5219 = vpop.f32.mrf.mxu0
      %v5220 = vadd.f32 %v5072, %v5219
      %v5221 = vpop.f32.mrf.mxu0
      %v5222 = vpop.f32.mrf.mxu0
      %v5223 = vadd.f32 %v5072, %v5222
      %v5224 = vpop.f32.mrf.mxu0
      %5225 = vmatprep.mubr.bf16.mxu0 0
      %5226 = vmatmul.mubr.bf16.gmra.mxu0 %v5044
      %v5227 = vpop.f32.mrf.mxu0
      %v5228 = vadd.f32 %v5072, %v5227
      %v5229 = vpop.f32.mrf.mxu0
      %v5230 = vpop.f32.mrf.mxu0
      %v5231 = vadd.f32 %v5072, %v5230
      %v5232 = vpop.f32.mrf.mxu0
      %5233 = vmatprep.mubr.bf16.mxu0 0
      %5234 = vmatmul.mubr.bf16.gmra.mxu0 %v5045
      %v5235 = vpop.f32.mrf.mxu0
      %v5236 = vadd.f32 %v5072, %v5235
      %v5237 = vpop.f32.mrf.mxu0
      %v5238 = vpop.f32.mrf.mxu0
      %v5239 = vadd.f32 %v5072, %v5238
      %v5240 = vpop.f32.mrf.mxu0
      %5241 = vmatprep.mubr.bf16.mxu0 0
      %5242 = vmatmul.mubr.bf16.gmra.mxu0 %v5046
      %v5243 = vpop.f32.mrf.mxu0
      %v5244 = vadd.f32 %v5072, %v5243
      %v5245 = vpop.f32.mrf.mxu0
      %v5246 = vpop.f32.mrf.mxu0
      %v5247 = vadd.f32 %v5072, %v5246
      %v5248 = vpop.f32.mrf.mxu0
      %5249 = vmatprep.mubr.bf16.mxu0 0
      %5250 = vmatmul.mubr.bf16.gmra.mxu0 %v5047
      %v5251 = vpop.f32.mrf.mxu0
      %v5252 = vadd.f32 %v5072, %v5251
      %v5253 = vpop.f32.mrf.mxu0
      %v5254 = vpop.f32.mrf.mxu0
      %v5255 = vadd.f32 %v5072, %v5254
      %v5256 = vpop.f32.mrf.mxu0
      %5257 = vmatprep.mubr.bf16.mxu0 0
      %5258 = vmatmul.mubr.bf16.gmra.mxu0 %v5048
      %v5259 = vpop.f32.mrf.mxu0
      %v5260 = vadd.f32 %v5072, %v5259
      %v5261 = vpop.f32.mrf.mxu0
      %v5262 = vpop.f32.mrf.mxu0
      %v5263 = vadd.f32 %v5072, %v5262
      %v5264 = vpop.f32.mrf.mxu0
      %5265 = vmatprep.mubr.bf16.mxu0 0
      %5266 = vmatmul.mubr.bf16.gmra.mxu0 %v5049
      %v5267 = vpop.f32.mrf.mxu0
      %v5268 = vadd.f32 %v5072, %v5267
      %v5269 = vpop.f32.mrf.mxu0
      %v5270 = vpop.f32.mrf.mxu0
      %v5271 = vadd.f32 %v5072, %v5270
      %v5272 = vpop.f32.mrf.mxu0
      %5273 = vmatprep.mubr.bf16.mxu0 0
      %5274 = vmatmul.mubr.bf16.gmra.mxu0 %v5050
      %v5275 = vpop.f32.mrf.mxu0
      %v5276 = vadd.f32 %v5072, %v5275
      %v5277 = vpop.f32.mrf.mxu0
      %v5278 = vpop.f32.mrf.mxu0
      %v5279 = vadd.f32 %v5072, %v5278
      %v5280 = vpop.f32.mrf.mxu0
      %5281 = vmatprep.mubr.bf16.mxu0 0
      %5282 = vmatmul.mubr.bf16.gmra.mxu0 %v5051
      %v5283 = vpop.f32.mrf.mxu0
      %v5284 = vadd.f32 %v5072, %v5283
      %v5285 = vpop.f32.mrf.mxu0
      %v5286 = vpop.f32.mrf.mxu0
      %v5287 = vpop.f32.mrf.mxu0
      %5288 = vdwg.mxu0
      %v5289 = vpack.c.bf16 %v5159, %v5156
      %v5290 = vpack.c.bf16 %v5167, %v5164
      %v5291 = vpack.c.bf16 %v5175, %v5172
      %v5292 = vpack.c.bf16 %v5183, %v5180
      %v5293 = vpack.c.bf16 %v5191, %v5188
      %v5294 = vpack.c.bf16 %v5199, %v5196
      %v5295 = vpack.c.bf16 %v5207, %v5204
      %v5296 = vpack.c.bf16 %v5215, %v5212
      %v5297 = vpack.c.bf16 %v5223, %v5220
      %v5298 = vpack.c.bf16 %v5231, %v5228
      %v5299 = vpack.c.bf16 %v5239, %v5236
      %v5300 = vpack.c.bf16 %v5247, %v5244
      %v5301 = vpack.c.bf16 %v5255, %v5252
      %v5302 = vpack.c.bf16 %v5263, %v5260
      %v5303 = vpack.c.bf16 %v5271, %v5268
      %v5304 = vpack.c.bf16 %v5279, %v5276
      %v5305 = vpack.c.bf16 %v5284, %v5284
      %v5306 = vxor.u32 %v5289, 2147516416
      %v5307 = vxor.u32 %v5290, 2147516416
      %v5308 = vxor.u32 %v5291, 2147516416
      %v5309 = vxor.u32 %v5292, 2147516416
      %v5310 = vxor.u32 %v5293, 2147516416
      %v5311 = vxor.u32 %v5294, 2147516416
      %v5312 = vxor.u32 %v5295, 2147516416
      %v5313 = vxor.u32 %v5296, 2147516416
      %v5314 = vxor.u32 %v5297, 2147516416
      %v5315 = vxor.u32 %v5298, 2147516416
      %v5316 = vxor.u32 %v5299, 2147516416
      %v5317 = vxor.u32 %v5300, 2147516416
      %v5318 = vxor.u32 %v5301, 2147516416
      %v5319 = vxor.u32 %v5302, 2147516416
      %v5320 = vxor.u32 %v5303, 2147516416
      %v5321 = vxor.u32 %v5304, 2147516416
      %v5322 = vxor.u32 %v5305, 2147516416
      %v5324 = vmul.bf16 %v5306, 1069105081
      %v5325 = vpow.bf16.pop %v5324
      %v5327 = vmul.bf16 %v5307, 1069105081
      %v5328 = vpow.bf16.pop %v5327
      %v5330 = vmul.bf16 %v5308, 1069105081
      %v5331 = vpow.bf16.pop %v5330
      %v5333 = vmul.bf16 %v5309, 1069105081
      %v5334 = vpow.bf16.pop %v5333
      %v5336 = vmul.bf16 %v5310, 1069105081
      %v5337 = vpow.bf16.pop %v5336
      %v5339 = vmul.bf16 %v5311, 1069105081
      %v5340 = vpow.bf16.pop %v5339
      %v5342 = vmul.bf16 %v5312, 1069105081
      %v5343 = vpow.bf16.pop %v5342
      %v5345 = vmul.bf16 %v5313, 1069105081
      %v5346 = vpow.bf16.pop %v5345
      %v5348 = vmul.bf16 %v5314, 1069105081
      %v5349 = vpow.bf16.pop %v5348
      %v5351 = vmul.bf16 %v5315, 1069105081
      %v5352 = vpow.bf16.pop %v5351
      %v5354 = vmul.bf16 %v5316, 1069105081
      %v5355 = vpow.bf16.pop %v5354
      %v5357 = vmul.bf16 %v5317, 1069105081
      %v5358 = vpow.bf16.pop %v5357
      %v5360 = vmul.bf16 %v5318, 1069105081
      %v5361 = vpow.bf16.pop %v5360
      %v5363 = vmul.bf16 %v5319, 1069105081
      %v5364 = vpow.bf16.pop %v5363
      %v5366 = vmul.bf16 %v5320, 1069105081
      %v5367 = vpow.bf16.pop %v5366
      %v5369 = vmul.bf16 %v5321, 1069105081
      %v5370 = vpow.bf16.pop %v5369
      %v5372 = vmul.bf16 %v5322, 1069105081
      %v5373 = vpow.bf16.pop %v5372
      %v5374 = vadd.bf16 %v5325, 1065369472
      %v5375 = vadd.bf16 %v5328, 1065369472
      %v5376 = vadd.bf16 %v5331, 1065369472
      %v5377 = vadd.bf16 %v5334, 1065369472
      %v5378 = vadd.bf16 %v5337, 1065369472
      %v5379 = vadd.bf16 %v5340, 1065369472
      %v5380 = vadd.bf16 %v5343, 1065369472
      %v5381 = vadd.bf16 %v5346, 1065369472
      %v5382 = vadd.bf16 %v5349, 1065369472
      %v5383 = vadd.bf16 %v5352, 1065369472
      %v5384 = vadd.bf16 %v5355, 1065369472
      %v5385 = vadd.bf16 %v5358, 1065369472
      %v5386 = vadd.bf16 %v5361, 1065369472
      %v5387 = vadd.bf16 %v5364, 1065369472
      %v5388 = vadd.bf16 %v5367, 1065369472
      %v5389 = vadd.bf16 %v5370, 1065369472
      %v5390 = vadd.bf16 %v5373, 1065369472
      %v5391 = vrcp.bf16.pop %v5374
      %v5392 = vmul.bf16 1065369472, %v5391
      %v5393 = vrcp.bf16.pop %v5375
      %v5394 = vmul.bf16 1065369472, %v5393
      %v5395 = vrcp.bf16.pop %v5376
      %v5396 = vmul.bf16 1065369472, %v5395
      %v5397 = vrcp.bf16.pop %v5377
      %v5398 = vmul.bf16 1065369472, %v5397
      %v5399 = vrcp.bf16.pop %v5378
      %v5400 = vmul.bf16 1065369472, %v5399
      %v5401 = vrcp.bf16.pop %v5379
      %v5402 = vmul.bf16 1065369472, %v5401
      %v5403 = vrcp.bf16.pop %v5380
      %v5404 = vmul.bf16 1065369472, %v5403
      %v5405 = vrcp.bf16.pop %v5381
      %v5406 = vmul.bf16 1065369472, %v5405
      %v5407 = vrcp.bf16.pop %v5382
      %v5408 = vmul.bf16 1065369472, %v5407
      %v5409 = vrcp.bf16.pop %v5383
      %v5410 = vmul.bf16 1065369472, %v5409
      %v5411 = vrcp.bf16.pop %v5384
      %v5412 = vmul.bf16 1065369472, %v5411
      %v5413 = vrcp.bf16.pop %v5385
      %v5414 = vmul.bf16 1065369472, %v5413
      %v5415 = vrcp.bf16.pop %v5386
      %v5416 = vmul.bf16 1065369472, %v5415
      %v5417 = vrcp.bf16.pop %v5387
      %v5418 = vmul.bf16 1065369472, %v5417
      %v5419 = vrcp.bf16.pop %v5388
      %v5420 = vmul.bf16 1065369472, %v5419
      %v5421 = vrcp.bf16.pop %v5389
      %v5422 = vmul.bf16 1065369472, %v5421
      %v5423 = vrcp.bf16.pop %v5390
      %v5424 = vmul.bf16 1065369472, %v5423
      %v5425 = vmul.bf16 %v5289, %v5392
      %v5426 = vmul.bf16 %v5290, %v5394
      %v5427 = vmul.bf16 %v5291, %v5396
      %v5428 = vmul.bf16 %v5292, %v5398
      %v5429 = vmul.bf16 %v5293, %v5400
      %v5430 = vmul.bf16 %v5294, %v5402
      %v5431 = vmul.bf16 %v5295, %v5404
      %v5432 = vmul.bf16 %v5296, %v5406
      %v5433 = vmul.bf16 %v5297, %v5408
      %v5434 = vmul.bf16 %v5298, %v5410
      %v5435 = vmul.bf16 %v5299, %v5412
      %v5436 = vmul.bf16 %v5300, %v5414
      %v5437 = vmul.bf16 %v5301, %v5416
      %v5438 = vmul.bf16 %v5302, %v5418
      %v5439 = vmul.bf16 %v5303, %v5420
      %v5440 = vmul.bf16 %v5304, %v5422
      %v5441 = vmul.bf16 %v5305, %v5424
      %v5442 = vld [vmem:[%s1 + $0xc0] sm:$0xf]
      %v5443 = vld [vmem:[%s1 + $0xc4] sm:$0xf]
      %v5444 = vld [vmem:[%s1 + $0xc8] sm:$0xf]
      %v5445 = vld [vmem:[%s1 + $0xcc] sm:$0xf]
      %v5446 = vld [vmem:[%s1 + $0xd0] sm:$0xf]
      %v5447 = vld [vmem:[%s1 + $0xd4] sm:$0xf]
      %v5448 = vld [vmem:[%s1 + $0xd8] sm:$0xf]
      %v5449 = vld [vmem:[%s1 + $0xdc] sm:$0xf]
      %v5450 = vld [vmem:[%s1 + $0xe0] sm:$0xf]
      %v5451 = vld [vmem:[%s1 + $0xe4] sm:$0xf]
      %v5452 = vld [vmem:[%s1 + $0xe8] sm:$0xf]
      %v5453 = vld [vmem:[%s1 + $0xec] sm:$0xf]
      %v5454 = vld [vmem:[%s1 + $0xf0] sm:$0xf]
      %v5455 = vld [vmem:[%s1 + $0xf4] sm:$0xf]
      %v5456 = vld [vmem:[%s1 + $0xf8] sm:$0xf]
      %v5457 = vld [vmem:[%s1 + $0xfc] sm:$0xf]
      %v5458 = vld [vmem:[%s2 + $0x5] sm:$0x1]
      %v5459 = vlaneseq
      %v5460 = vshrl.u32 %v5459, 7
      %v5461 = vsub.s32 0, %v5460
      %v5462 = vrot.slane %v5458, %v5461
      %v5479 = vunpack.c.l.b16 %v5442
      %v5480 = vunpack.c.l.b16 %v5443
      %v5481 = vunpack.c.l.b16 %v5444
      %v5482 = vunpack.c.l.b16 %v5445
      %v5483 = vunpack.c.l.b16 %v5446
      %v5484 = vunpack.c.l.b16 %v5447
      %v5485 = vunpack.c.l.b16 %v5448
      %v5486 = vunpack.c.l.b16 %v5449
      %v5487 = vunpack.c.l.b16 %v5450
      %v5488 = vunpack.c.l.b16 %v5451
      %v5489 = vunpack.c.l.b16 %v5452
      %v5490 = vunpack.c.l.b16 %v5453
      %v5491 = vunpack.c.l.b16 %v5454
      %v5492 = vunpack.c.l.b16 %v5455
      %v5493 = vunpack.c.l.b16 %v5456
      %v5494 = vunpack.c.l.b16 %v5457
      %v5495 = vpack.c.b16 %v5480, %v5479
      %v5496 = vpack.c.b16 %v5482, %v5481
      %v5497 = vpack.c.b16 %v5484, %v5483
      %v5498 = vpack.c.b16 %v5486, %v5485
      %v5499 = vpack.c.b16 %v5488, %v5487
      %v5500 = vpack.c.b16 %v5490, %v5489
      %v5501 = vpack.c.b16 %v5492, %v5491
      %v5502 = vpack.c.b16 %v5494, %v5493
      %5511 = vmatprep.subr.bf16.mxu0 0
      %5512 = vmatpush1.bf16.msra.mxu0 %v5502
      %5513 = vmatprep.subr.bf16.mxu0 0
      %5514 = vmatpush1.bf16.msra.mxu0 %v5501
      %5515 = vmatprep.subr.bf16.mxu0 0
      %5516 = vmatpush1.bf16.msra.mxu0 %v5500
      %5517 = vmatprep.subr.bf16.mxu0 0
      %5518 = vmatpush1.bf16.msra.mxu0 %v5499
      %5519 = vmatprep.subr.bf16.mxu0 0
      %5520 = vmatpush1.bf16.msra.mxu0 %v5498
      %5521 = vmatprep.subr.bf16.mxu0 0
      %5522 = vmatpush1.bf16.msra.mxu0 %v5497
      %5523 = vmatprep.subr.bf16.mxu0 0
      %5524 = vmatpush1.bf16.msra.mxu0 %v5496
      %5525 = vmatprep.subr.bf16.mxu0 0
      %5526 = vmatpush1.bf16.msra.mxu0 %v5495
      %5527 = vmatprep.subr.bf16.mxu0 0
      %5528 = vmatpush2.bf16.msra.mxu0 0
      %5529 = vmatprep.subr.bf16.mxu0 0
      %5530 = vmatpush2.bf16.msra.mxu0 0
      %5531 = vmatprep.subr.bf16.mxu0 0
      %5532 = vmatpush2.bf16.msra.mxu0 0
      %5533 = vmatprep.subr.bf16.mxu0 0
      %5534 = vmatpush2.bf16.msra.mxu0 0
      %5535 = vmatprep.subr.bf16.mxu0 0
      %5536 = vmatpush2.bf16.msra.mxu0 0
      %5537 = vmatprep.subr.bf16.mxu0 0
      %5538 = vmatpush2.bf16.msra.mxu0 0
      %5539 = vmatprep.subr.bf16.mxu0 0
      %5540 = vmatpush2.bf16.msra.mxu0 0
      %5541 = vmatprep.subr.bf16.mxu0 0
      %5542 = vmatpush2.bf16.msra.mxu0 0
      %5543 = vmatprep.mubr.bf16.mxu0 0
      %5544 = vmatmul.mubr.bf16.gmra.mxu0 %v5425
      %v5545 = vpop.f32.mrf.mxu0
      %v5546 = vadd.f32 %v5462, %v5545
      %v5547 = vpop.f32.mrf.mxu0
      %v5548 = vpop.f32.mrf.mxu0
      %v5549 = vadd.f32 %v5462, %v5548
      %v5550 = vpop.f32.mrf.mxu0
      %5551 = vmatprep.mubr.bf16.mxu0 0
      %5552 = vmatmul.mubr.bf16.gmra.mxu0 %v5426
      %v5553 = vpop.f32.mrf.mxu0
      %v5554 = vadd.f32 %v5462, %v5553
      %v5555 = vpop.f32.mrf.mxu0
      %v5556 = vpop.f32.mrf.mxu0
      %v5557 = vadd.f32 %v5462, %v5556
      %v5558 = vpop.f32.mrf.mxu0
      %5559 = vmatprep.mubr.bf16.mxu0 0
      %5560 = vmatmul.mubr.bf16.gmra.mxu0 %v5427
      %v5561 = vpop.f32.mrf.mxu0
      %v5562 = vadd.f32 %v5462, %v5561
      %v5563 = vpop.f32.mrf.mxu0
      %v5564 = vpop.f32.mrf.mxu0
      %v5565 = vadd.f32 %v5462, %v5564
      %v5566 = vpop.f32.mrf.mxu0
      %5567 = vmatprep.mubr.bf16.mxu0 0
      %5568 = vmatmul.mubr.bf16.gmra.mxu0 %v5428
      %v5569 = vpop.f32.mrf.mxu0
      %v5570 = vadd.f32 %v5462, %v5569
      %v5571 = vpop.f32.mrf.mxu0
      %v5572 = vpop.f32.mrf.mxu0
      %v5573 = vadd.f32 %v5462, %v5572
      %v5574 = vpop.f32.mrf.mxu0
      %5575 = vmatprep.mubr.bf16.mxu0 0
      %5576 = vmatmul.mubr.bf16.gmra.mxu0 %v5429
      %v5577 = vpop.f32.mrf.mxu0
      %v5578 = vadd.f32 %v5462, %v5577
      %v5579 = vpop.f32.mrf.mxu0
      %v5580 = vpop.f32.mrf.mxu0
      %v5581 = vadd.f32 %v5462, %v5580
      %v5582 = vpop.f32.mrf.mxu0
      %5583 = vmatprep.mubr.bf16.mxu0 0
      %5584 = vmatmul.mubr.bf16.gmra.mxu0 %v5430
      %v5585 = vpop.f32.mrf.mxu0
      %v5586 = vadd.f32 %v5462, %v5585
      %v5587 = vpop.f32.mrf.mxu0
      %v5588 = vpop.f32.mrf.mxu0
      %v5589 = vadd.f32 %v5462, %v5588
      %v5590 = vpop.f32.mrf.mxu0
      %5591 = vmatprep.mubr.bf16.mxu0 0
      %5592 = vmatmul.mubr.bf16.gmra.mxu0 %v5431
      %v5593 = vpop.f32.mrf.mxu0
      %v5594 = vadd.f32 %v5462, %v5593
      %v5595 = vpop.f32.mrf.mxu0
      %v5596 = vpop.f32.mrf.mxu0
      %v5597 = vadd.f32 %v5462, %v5596
      %v5598 = vpop.f32.mrf.mxu0
      %5599 = vmatprep.mubr.bf16.mxu0 0
      %5600 = vmatmul.mubr.bf16.gmra.mxu0 %v5432
      %v5601 = vpop.f32.mrf.mxu0
      %v5602 = vadd.f32 %v5462, %v5601
      %v5603 = vpop.f32.mrf.mxu0
      %v5604 = vpop.f32.mrf.mxu0
      %v5605 = vadd.f32 %v5462, %v5604
      %v5606 = vpop.f32.mrf.mxu0
      %5607 = vmatprep.mubr.bf16.mxu0 0
      %5608 = vmatmul.mubr.bf16.gmra.mxu0 %v5433
      %v5609 = vpop.f32.mrf.mxu0
      %v5610 = vadd.f32 %v5462, %v5609
      %v5611 = vpop.f32.mrf.mxu0
      %v5612 = vpop.f32.mrf.mxu0
      %v5613 = vadd.f32 %v5462, %v5612
      %v5614 = vpop.f32.mrf.mxu0
      %5615 = vmatprep.mubr.bf16.mxu0 0
      %5616 = vmatmul.mubr.bf16.gmra.mxu0 %v5434
      %v5617 = vpop.f32.mrf.mxu0
      %v5618 = vadd.f32 %v5462, %v5617
      %v5619 = vpop.f32.mrf.mxu0
      %v5620 = vpop.f32.mrf.mxu0
      %v5621 = vadd.f32 %v5462, %v5620
      %v5622 = vpop.f32.mrf.mxu0
      %5623 = vmatprep.mubr.bf16.mxu0 0
      %5624 = vmatmul.mubr.bf16.gmra.mxu0 %v5435
      %v5625 = vpop.f32.mrf.mxu0
      %v5626 = vadd.f32 %v5462, %v5625
      %v5627 = vpop.f32.mrf.mxu0
      %v5628 = vpop.f32.mrf.mxu0
      %v5629 = vadd.f32 %v5462, %v5628
      %v5630 = vpop.f32.mrf.mxu0
      %5631 = vmatprep.mubr.bf16.mxu0 0
      %5632 = vmatmul.mubr.bf16.gmra.mxu0 %v5436
      %v5633 = vpop.f32.mrf.mxu0
      %v5634 = vadd.f32 %v5462, %v5633
      %v5635 = vpop.f32.mrf.mxu0
      %v5636 = vpop.f32.mrf.mxu0
      %v5637 = vadd.f32 %v5462, %v5636
      %v5638 = vpop.f32.mrf.mxu0
      %5639 = vmatprep.mubr.bf16.mxu0 0
      %5640 = vmatmul.mubr.bf16.gmra.mxu0 %v5437
      %v5641 = vpop.f32.mrf.mxu0
      %v5642 = vadd.f32 %v5462, %v5641
      %v5643 = vpop.f32.mrf.mxu0
      %v5644 = vpop.f32.mrf.mxu0
      %v5645 = vadd.f32 %v5462, %v5644
      %v5646 = vpop.f32.mrf.mxu0
      %5647 = vmatprep.mubr.bf16.mxu0 0
      %5648 = vmatmul.mubr.bf16.gmra.mxu0 %v5438
      %v5649 = vpop.f32.mrf.mxu0
      %v5650 = vadd.f32 %v5462, %v5649
      %v5651 = vpop.f32.mrf.mxu0
      %v5652 = vpop.f32.mrf.mxu0
      %v5653 = vadd.f32 %v5462, %v5652
      %v5654 = vpop.f32.mrf.mxu0
      %5655 = vmatprep.mubr.bf16.mxu0 0
      %5656 = vmatmul.mubr.bf16.gmra.mxu0 %v5439
      %v5657 = vpop.f32.mrf.mxu0
      %v5658 = vadd.f32 %v5462, %v5657
      %v5659 = vpop.f32.mrf.mxu0
      %v5660 = vpop.f32.mrf.mxu0
      %v5661 = vadd.f32 %v5462, %v5660
      %v5662 = vpop.f32.mrf.mxu0
      %5663 = vmatprep.mubr.bf16.mxu0 0
      %5664 = vmatmul.mubr.bf16.gmra.mxu0 %v5440
      %v5665 = vpop.f32.mrf.mxu0
      %v5666 = vadd.f32 %v5462, %v5665
      %v5667 = vpop.f32.mrf.mxu0
      %v5668 = vpop.f32.mrf.mxu0
      %v5669 = vadd.f32 %v5462, %v5668
      %v5670 = vpop.f32.mrf.mxu0
      %5671 = vmatprep.mubr.bf16.mxu0 0
      %5672 = vmatmul.mubr.bf16.gmra.mxu0 %v5441
      %v5673 = vpop.f32.mrf.mxu0
      %v5674 = vadd.f32 %v5462, %v5673
      %v5675 = vpop.f32.mrf.mxu0
      %v5676 = vpop.f32.mrf.mxu0
      %v5677 = vpop.f32.mrf.mxu0
      %5678 = vdwg.mxu0
      %v5679 = vpack.c.bf16 %v5549, %v5546
      %v5680 = vpack.c.bf16 %v5557, %v5554
      %v5681 = vpack.c.bf16 %v5565, %v5562
      %v5682 = vpack.c.bf16 %v5573, %v5570
      %v5683 = vpack.c.bf16 %v5581, %v5578
      %v5684 = vpack.c.bf16 %v5589, %v5586
      %v5685 = vpack.c.bf16 %v5597, %v5594
      %v5686 = vpack.c.bf16 %v5605, %v5602
      %v5687 = vpack.c.bf16 %v5613, %v5610
      %v5688 = vpack.c.bf16 %v5621, %v5618
      %v5689 = vpack.c.bf16 %v5629, %v5626
      %v5690 = vpack.c.bf16 %v5637, %v5634
      %v5691 = vpack.c.bf16 %v5645, %v5642
      %v5692 = vpack.c.bf16 %v5653, %v5650
      %v5693 = vpack.c.bf16 %v5661, %v5658
      %v5694 = vpack.c.bf16 %v5669, %v5666
      %v5695 = vpack.c.bf16 %v5674, %v5674
      %v5696 = vxor.u32 %v5679, 2147516416
      %v5697 = vxor.u32 %v5680, 2147516416
      %v5698 = vxor.u32 %v5681, 2147516416
      %v5699 = vxor.u32 %v5682, 2147516416
      %v5700 = vxor.u32 %v5683, 2147516416
      %v5701 = vxor.u32 %v5684, 2147516416
      %v5702 = vxor.u32 %v5685, 2147516416
      %v5703 = vxor.u32 %v5686, 2147516416
      %v5704 = vxor.u32 %v5687, 2147516416
      %v5705 = vxor.u32 %v5688, 2147516416
      %v5706 = vxor.u32 %v5689, 2147516416
      %v5707 = vxor.u32 %v5690, 2147516416
      %v5708 = vxor.u32 %v5691, 2147516416
      %v5709 = vxor.u32 %v5692, 2147516416
      %v5710 = vxor.u32 %v5693, 2147516416
      %v5711 = vxor.u32 %v5694, 2147516416
      %v5712 = vxor.u32 %v5695, 2147516416
      %v5714 = vmul.bf16 %v5696, 1069105081
      %v5715 = vpow.bf16.pop %v5714
      %v5717 = vmul.bf16 %v5697, 1069105081
      %v5718 = vpow.bf16.pop %v5717
      %v5720 = vmul.bf16 %v5698, 1069105081
      %v5721 = vpow.bf16.pop %v5720
      %v5723 = vmul.bf16 %v5699, 1069105081
      %v5724 = vpow.bf16.pop %v5723
      %v5726 = vmul.bf16 %v5700, 1069105081
      %v5727 = vpow.bf16.pop %v5726
      %v5729 = vmul.bf16 %v5701, 1069105081
      %v5730 = vpow.bf16.pop %v5729
      %v5732 = vmul.bf16 %v5702, 1069105081
      %v5733 = vpow.bf16.pop %v5732
      %v5735 = vmul.bf16 %v5703, 1069105081
      %v5736 = vpow.bf16.pop %v5735
      %v5738 = vmul.bf16 %v5704, 1069105081
      %v5739 = vpow.bf16.pop %v5738
      %v5741 = vmul.bf16 %v5705, 1069105081
      %v5742 = vpow.bf16.pop %v5741
      %v5744 = vmul.bf16 %v5706, 1069105081
      %v5745 = vpow.bf16.pop %v5744
      %v5747 = vmul.bf16 %v5707, 1069105081
      %v5748 = vpow.bf16.pop %v5747
      %v5750 = vmul.bf16 %v5708, 1069105081
      %v5751 = vpow.bf16.pop %v5750
      %v5753 = vmul.bf16 %v5709, 1069105081
      %v5754 = vpow.bf16.pop %v5753
      %v5756 = vmul.bf16 %v5710, 1069105081
      %v5757 = vpow.bf16.pop %v5756
      %v5759 = vmul.bf16 %v5711, 1069105081
      %v5760 = vpow.bf16.pop %v5759
      %v5762 = vmul.bf16 %v5712, 1069105081
      %v5763 = vpow.bf16.pop %v5762
      %v5764 = vadd.bf16 %v5715, 1065369472
      %v5765 = vadd.bf16 %v5718, 1065369472
      %v5766 = vadd.bf16 %v5721, 1065369472
      %v5767 = vadd.bf16 %v5724, 1065369472
      %v5768 = vadd.bf16 %v5727, 1065369472
      %v5769 = vadd.bf16 %v5730, 1065369472
      %v5770 = vadd.bf16 %v5733, 1065369472
      %v5771 = vadd.bf16 %v5736, 1065369472
      %v5772 = vadd.bf16 %v5739, 1065369472
      %v5773 = vadd.bf16 %v5742, 1065369472
      %v5774 = vadd.bf16 %v5745, 1065369472
      %v5775 = vadd.bf16 %v5748, 1065369472
      %v5776 = vadd.bf16 %v5751, 1065369472
      %v5777 = vadd.bf16 %v5754, 1065369472
      %v5778 = vadd.bf16 %v5757, 1065369472
      %v5779 = vadd.bf16 %v5760, 1065369472
      %v5780 = vadd.bf16 %v5763, 1065369472
      %v5781 = vrcp.bf16.pop %v5764
      %v5782 = vmul.bf16 1065369472, %v5781
      %v5783 = vrcp.bf16.pop %v5765
      %v5784 = vmul.bf16 1065369472, %v5783
      %v5785 = vrcp.bf16.pop %v5766
      %v5786 = vmul.bf16 1065369472, %v5785
      %v5787 = vrcp.bf16.pop %v5767
      %v5788 = vmul.bf16 1065369472, %v5787
      %v5789 = vrcp.bf16.pop %v5768
      %v5790 = vmul.bf16 1065369472, %v5789
      %v5791 = vrcp.bf16.pop %v5769
      %v5792 = vmul.bf16 1065369472, %v5791
      %v5793 = vrcp.bf16.pop %v5770
      %v5794 = vmul.bf16 1065369472, %v5793
      %v5795 = vrcp.bf16.pop %v5771
      %v5796 = vmul.bf16 1065369472, %v5795
      %v5797 = vrcp.bf16.pop %v5772
      %v5798 = vmul.bf16 1065369472, %v5797
      %v5799 = vrcp.bf16.pop %v5773
      %v5800 = vmul.bf16 1065369472, %v5799
      %v5801 = vrcp.bf16.pop %v5774
      %v5802 = vmul.bf16 1065369472, %v5801
      %v5803 = vrcp.bf16.pop %v5775
      %v5804 = vmul.bf16 1065369472, %v5803
      %v5805 = vrcp.bf16.pop %v5776
      %v5806 = vmul.bf16 1065369472, %v5805
      %v5807 = vrcp.bf16.pop %v5777
      %v5808 = vmul.bf16 1065369472, %v5807
      %v5809 = vrcp.bf16.pop %v5778
      %v5810 = vmul.bf16 1065369472, %v5809
      %v5811 = vrcp.bf16.pop %v5779
      %v5812 = vmul.bf16 1065369472, %v5811
      %v5813 = vrcp.bf16.pop %v5780
      %v5814 = vmul.bf16 1065369472, %v5813
      %v5815 = vmul.bf16 %v5679, %v5782
      %v5816 = vmul.bf16 %v5680, %v5784
      %v5817 = vmul.bf16 %v5681, %v5786
      %v5818 = vmul.bf16 %v5682, %v5788
      %v5819 = vmul.bf16 %v5683, %v5790
      %v5820 = vmul.bf16 %v5684, %v5792
      %v5821 = vmul.bf16 %v5685, %v5794
      %v5822 = vmul.bf16 %v5686, %v5796
      %v5823 = vmul.bf16 %v5687, %v5798
      %v5824 = vmul.bf16 %v5688, %v5800
      %v5825 = vmul.bf16 %v5689, %v5802
      %v5826 = vmul.bf16 %v5690, %v5804
      %v5827 = vmul.bf16 %v5691, %v5806
      %v5828 = vmul.bf16 %v5692, %v5808
      %v5829 = vmul.bf16 %v5693, %v5810
      %v5830 = vmul.bf16 %v5694, %v5812
      %v5831 = vmul.bf16 %v5695, %v5814
      %v5832 = vld [vmem:[%s1 + $0x100] sm:$0xf]
      %v5833 = vld [vmem:[%s1 + $0x104] sm:$0xf]
      %v5834 = vld [vmem:[%s1 + $0x108] sm:$0xf]
      %v5835 = vld [vmem:[%s1 + $0x10c] sm:$0xf]
      %v5836 = vld [vmem:[%s1 + $0x110] sm:$0xf]
      %v5837 = vld [vmem:[%s1 + $0x114] sm:$0xf]
      %v5838 = vld [vmem:[%s1 + $0x118] sm:$0xf]
      %v5839 = vld [vmem:[%s1 + $0x11c] sm:$0xf]
      %v5840 = vld [vmem:[%s1 + $0x120] sm:$0xf]
      %v5841 = vld [vmem:[%s1 + $0x124] sm:$0xf]
      %v5842 = vld [vmem:[%s1 + $0x128] sm:$0xf]
      %v5843 = vld [vmem:[%s1 + $0x12c] sm:$0xf]
      %v5844 = vld [vmem:[%s1 + $0x130] sm:$0xf]
      %v5845 = vld [vmem:[%s1 + $0x134] sm:$0xf]
      %v5846 = vld [vmem:[%s1 + $0x138] sm:$0xf]
      %v5847 = vld [vmem:[%s1 + $0x13c] sm:$0xf]
      %v5848 = vld [vmem:[%s2 + $0x6] sm:$0x1]
      %v5849 = vlaneseq
      %v5850 = vshrl.u32 %v5849, 7
      %v5851 = vsub.s32 0, %v5850
      %v5852 = vrot.slane %v5848, %v5851
      %v5869 = vunpack.c.l.b16 %v5832
      %v5870 = vunpack.c.l.b16 %v5833
      %v5871 = vunpack.c.l.b16 %v5834
      %v5872 = vunpack.c.l.b16 %v5835
      %v5873 = vunpack.c.l.b16 %v5836
      %v5874 = vunpack.c.l.b16 %v5837
      %v5875 = vunpack.c.l.b16 %v5838
      %v5876 = vunpack.c.l.b16 %v5839
      %v5877 = vunpack.c.l.b16 %v5840
      %v5878 = vunpack.c.l.b16 %v5841
      %v5879 = vunpack.c.l.b16 %v5842
      %v5880 = vunpack.c.l.b16 %v5843
      %v5881 = vunpack.c.l.b16 %v5844
      %v5882 = vunpack.c.l.b16 %v5845
      %v5883 = vunpack.c.l.b16 %v5846
      %v5884 = vunpack.c.l.b16 %v5847
      %v5885 = vpack.c.b16 %v5870, %v5869
      %v5886 = vpack.c.b16 %v5872, %v5871
      %v5887 = vpack.c.b16 %v5874, %v5873
      %v5888 = vpack.c.b16 %v5876, %v5875
      %v5889 = vpack.c.b16 %v5878, %v5877
      %v5890 = vpack.c.b16 %v5880, %v5879
      %v5891 = vpack.c.b16 %v5882, %v5881
      %v5892 = vpack.c.b16 %v5884, %v5883
      %5901 = vmatprep.subr.bf16.mxu0 0
      %5902 = vmatpush1.bf16.msra.mxu0 %v5892
      %5903 = vmatprep.subr.bf16.mxu0 0
      %5904 = vmatpush1.bf16.msra.mxu0 %v5891
      %5905 = vmatprep.subr.bf16.mxu0 0
      %5906 = vmatpush1.bf16.msra.mxu0 %v5890
      %5907 = vmatprep.subr.bf16.mxu0 0
      %5908 = vmatpush1.bf16.msra.mxu0 %v5889
      %5909 = vmatprep.subr.bf16.mxu0 0
      %5910 = vmatpush1.bf16.msra.mxu0 %v5888
      %5911 = vmatprep.subr.bf16.mxu0 0
      %5912 = vmatpush1.bf16.msra.mxu0 %v5887
      %5913 = vmatprep.subr.bf16.mxu0 0
      %5914 = vmatpush1.bf16.msra.mxu0 %v5886
      %5915 = vmatprep.subr.bf16.mxu0 0
      %5916 = vmatpush1.bf16.msra.mxu0 %v5885
      %5917 = vmatprep.subr.bf16.mxu0 0
      %5918 = vmatpush2.bf16.msra.mxu0 0
      %5919 = vmatprep.subr.bf16.mxu0 0
      %5920 = vmatpush2.bf16.msra.mxu0 0
      %5921 = vmatprep.subr.bf16.mxu0 0
      %5922 = vmatpush2.bf16.msra.mxu0 0
      %5923 = vmatprep.subr.bf16.mxu0 0
      %5924 = vmatpush2.bf16.msra.mxu0 0
      %5925 = vmatprep.subr.bf16.mxu0 0
      %5926 = vmatpush2.bf16.msra.mxu0 0
      %5927 = vmatprep.subr.bf16.mxu0 0
      %5928 = vmatpush2.bf16.msra.mxu0 0
      %5929 = vmatprep.subr.bf16.mxu0 0
      %5930 = vmatpush2.bf16.msra.mxu0 0
      %5931 = vmatprep.subr.bf16.mxu0 0
      %5932 = vmatpush2.bf16.msra.mxu0 0
      %5933 = vmatprep.mubr.bf16.mxu0 0
      %5934 = vmatmul.mubr.bf16.gmra.mxu0 %v5815
      %v5935 = vpop.f32.mrf.mxu0
      %v5936 = vadd.f32 %v5852, %v5935
      %v5937 = vpop.f32.mrf.mxu0
      %v5938 = vpop.f32.mrf.mxu0
      %v5939 = vadd.f32 %v5852, %v5938
      %v5940 = vpop.f32.mrf.mxu0
      %5941 = vmatprep.mubr.bf16.mxu0 0
      %5942 = vmatmul.mubr.bf16.gmra.mxu0 %v5816
      %v5943 = vpop.f32.mrf.mxu0
      %v5944 = vadd.f32 %v5852, %v5943
      %v5945 = vpop.f32.mrf.mxu0
      %v5946 = vpop.f32.mrf.mxu0
      %v5947 = vadd.f32 %v5852, %v5946
      %v5948 = vpop.f32.mrf.mxu0
      %5949 = vmatprep.mubr.bf16.mxu0 0
      %5950 = vmatmul.mubr.bf16.gmra.mxu0 %v5817
      %v5951 = vpop.f32.mrf.mxu0
      %v5952 = vadd.f32 %v5852, %v5951
      %v5953 = vpop.f32.mrf.mxu0
      %v5954 = vpop.f32.mrf.mxu0
      %v5955 = vadd.f32 %v5852, %v5954
      %v5956 = vpop.f32.mrf.mxu0
      %5957 = vmatprep.mubr.bf16.mxu0 0
      %5958 = vmatmul.mubr.bf16.gmra.mxu0 %v5818
      %v5959 = vpop.f32.mrf.mxu0
      %v5960 = vadd.f32 %v5852, %v5959
      %v5961 = vpop.f32.mrf.mxu0
      %v5962 = vpop.f32.mrf.mxu0
      %v5963 = vadd.f32 %v5852, %v5962
      %v5964 = vpop.f32.mrf.mxu0
      %5965 = vmatprep.mubr.bf16.mxu0 0
      %5966 = vmatmul.mubr.bf16.gmra.mxu0 %v5819
      %v5967 = vpop.f32.mrf.mxu0
      %v5968 = vadd.f32 %v5852, %v5967
      %v5969 = vpop.f32.mrf.mxu0
      %v5970 = vpop.f32.mrf.mxu0
      %v5971 = vadd.f32 %v5852, %v5970
      %v5972 = vpop.f32.mrf.mxu0
      %5973 = vmatprep.mubr.bf16.mxu0 0
      %5974 = vmatmul.mubr.bf16.gmra.mxu0 %v5820
      %v5975 = vpop.f32.mrf.mxu0
      %v5976 = vadd.f32 %v5852, %v5975
      %v5977 = vpop.f32.mrf.mxu0
      %v5978 = vpop.f32.mrf.mxu0
      %v5979 = vadd.f32 %v5852, %v5978
      %v5980 = vpop.f32.mrf.mxu0
      %5981 = vmatprep.mubr.bf16.mxu0 0
      %5982 = vmatmul.mubr.bf16.gmra.mxu0 %v5821
      %v5983 = vpop.f32.mrf.mxu0
      %v5984 = vadd.f32 %v5852, %v5983
      %v5985 = vpop.f32.mrf.mxu0
      %v5986 = vpop.f32.mrf.mxu0
      %v5987 = vadd.f32 %v5852, %v5986
      %v5988 = vpop.f32.mrf.mxu0
      %5989 = vmatprep.mubr.bf16.mxu0 0
      %5990 = vmatmul.mubr.bf16.gmra.mxu0 %v5822
      %v5991 = vpop.f32.mrf.mxu0
      %v5992 = vadd.f32 %v5852, %v5991
      %v5993 = vpop.f32.mrf.mxu0
      %v5994 = vpop.f32.mrf.mxu0
      %v5995 = vadd.f32 %v5852, %v5994
      %v5996 = vpop.f32.mrf.mxu0
      %5997 = vmatprep.mubr.bf16.mxu0 0
      %5998 = vmatmul.mubr.bf16.gmra.mxu0 %v5823
      %v5999 = vpop.f32.mrf.mxu0
      %v6000 = vadd.f32 %v5852, %v5999
      %v6001 = vpop.f32.mrf.mxu0
      %v6002 = vpop.f32.mrf.mxu0
      %v6003 = vadd.f32 %v5852, %v6002
      %v6004 = vpop.f32.mrf.mxu0
      %6005 = vmatprep.mubr.bf16.mxu0 0
      %6006 = vmatmul.mubr.bf16.gmra.mxu0 %v5824
      %v6007 = vpop.f32.mrf.mxu0
      %v6008 = vadd.f32 %v5852, %v6007
      %v6009 = vpop.f32.mrf.mxu0
      %v6010 = vpop.f32.mrf.mxu0
      %v6011 = vadd.f32 %v5852, %v6010
      %v6012 = vpop.f32.mrf.mxu0
      %6013 = vmatprep.mubr.bf16.mxu0 0
      %6014 = vmatmul.mubr.bf16.gmra.mxu0 %v5825
      %v6015 = vpop.f32.mrf.mxu0
      %v6016 = vadd.f32 %v5852, %v6015
      %v6017 = vpop.f32.mrf.mxu0
      %v6018 = vpop.f32.mrf.mxu0
      %v6019 = vadd.f32 %v5852, %v6018
      %v6020 = vpop.f32.mrf.mxu0
      %6021 = vmatprep.mubr.bf16.mxu0 0
      %6022 = vmatmul.mubr.bf16.gmra.mxu0 %v5826
      %v6023 = vpop.f32.mrf.mxu0
      %v6024 = vadd.f32 %v5852, %v6023
      %v6025 = vpop.f32.mrf.mxu0
      %v6026 = vpop.f32.mrf.mxu0
      %v6027 = vadd.f32 %v5852, %v6026
      %v6028 = vpop.f32.mrf.mxu0
      %6029 = vmatprep.mubr.bf16.mxu0 0
      %6030 = vmatmul.mubr.bf16.gmra.mxu0 %v5827
      %v6031 = vpop.f32.mrf.mxu0
      %v6032 = vadd.f32 %v5852, %v6031
      %v6033 = vpop.f32.mrf.mxu0
      %v6034 = vpop.f32.mrf.mxu0
      %v6035 = vadd.f32 %v5852, %v6034
      %v6036 = vpop.f32.mrf.mxu0
      %6037 = vmatprep.mubr.bf16.mxu0 0
      %6038 = vmatmul.mubr.bf16.gmra.mxu0 %v5828
      %v6039 = vpop.f32.mrf.mxu0
      %v6040 = vadd.f32 %v5852, %v6039
      %v6041 = vpop.f32.mrf.mxu0
      %v6042 = vpop.f32.mrf.mxu0
      %v6043 = vadd.f32 %v5852, %v6042
      %v6044 = vpop.f32.mrf.mxu0
      %6045 = vmatprep.mubr.bf16.mxu0 0
      %6046 = vmatmul.mubr.bf16.gmra.mxu0 %v5829
      %v6047 = vpop.f32.mrf.mxu0
      %v6048 = vadd.f32 %v5852, %v6047
      %v6049 = vpop.f32.mrf.mxu0
      %v6050 = vpop.f32.mrf.mxu0
      %v6051 = vadd.f32 %v5852, %v6050
      %v6052 = vpop.f32.mrf.mxu0
      %6053 = vmatprep.mubr.bf16.mxu0 0
      %6054 = vmatmul.mubr.bf16.gmra.mxu0 %v5830
      %v6055 = vpop.f32.mrf.mxu0
      %v6056 = vadd.f32 %v5852, %v6055
      %v6057 = vpop.f32.mrf.mxu0
      %v6058 = vpop.f32.mrf.mxu0
      %v6059 = vadd.f32 %v5852, %v6058
      %v6060 = vpop.f32.mrf.mxu0
      %6061 = vmatprep.mubr.bf16.mxu0 0
      %6062 = vmatmul.mubr.bf16.gmra.mxu0 %v5831
      %v6063 = vpop.f32.mrf.mxu0
      %v6064 = vadd.f32 %v5852, %v6063
      %v6065 = vpop.f32.mrf.mxu0
      %v6066 = vpop.f32.mrf.mxu0
      %v6067 = vpop.f32.mrf.mxu0
      %6068 = vdwg.mxu0
      %6069 = vst [vmem:[%s172] sm:$0xff] %v5936
      %6070 = vst [vmem:[%s172 + $0x8] sm:$0xff] %v5939
      %6071 = vst [vmem:[%s172 + $0x10] sm:$0xff] %v5944
      %6072 = vst [vmem:[%s172 + $0x18] sm:$0xff] %v5947
      %6073 = vst [vmem:[%s172 + $0x20] sm:$0xff] %v5952
      %6074 = vst [vmem:[%s172 + $0x28] sm:$0xff] %v5955
      %6075 = vst [vmem:[%s172 + $0x30] sm:$0xff] %v5960
      %6076 = vst [vmem:[%s172 + $0x38] sm:$0xff] %v5963
      %6077 = vst [vmem:[%s172 + $0x40] sm:$0xff] %v5968
      %6078 = vst [vmem:[%s172 + $0x48] sm:$0xff] %v5971
      %6079 = vst [vmem:[%s172 + $0x50] sm:$0xff] %v5976
      %6080 = vst [vmem:[%s172 + $0x58] sm:$0xff] %v5979
      %6081 = vst [vmem:[%s172 + $0x60] sm:$0xff] %v5984
      %6082 = vst [vmem:[%s172 + $0x68] sm:$0xff] %v5987
      %6083 = vst [vmem:[%s172 + $0x70] sm:$0xff] %v5992
      %6084 = vst [vmem:[%s172 + $0x78] sm:$0xff] %v5995
      %6085 = vst [vmem:[%s172 + $0x80] sm:$0xff] %v6000
      %6086 = vst [vmem:[%s172 + $0x88] sm:$0xff] %v6003
      %6087 = vst [vmem:[%s172 + $0x90] sm:$0xff] %v6008
      %6088 = vst [vmem:[%s172 + $0x98] sm:$0xff] %v6011
      %6089 = vst [vmem:[%s172 + $0xa0] sm:$0xff] %v6016
      %6090 = vst [vmem:[%s172 + $0xa8] sm:$0xff] %v6019
      %6091 = vst [vmem:[%s172 + $0xb0] sm:$0xff] %v6024
      %6092 = vst [vmem:[%s172 + $0xb8] sm:$0xff] %v6027
      %6093 = vst [vmem:[%s172 + $0xc0] sm:$0xff] %v6032
      %6094 = vst [vmem:[%s172 + $0xc8] sm:$0xff] %v6035
      %6095 = vst [vmem:[%s172 + $0xd0] sm:$0xff] %v6040
      %6096 = vst [vmem:[%s172 + $0xd8] sm:$0xff] %v6043
      %6097 = vst [vmem:[%s172 + $0xe0] sm:$0xff] %v6048
      %6098 = vst [vmem:[%s172 + $0xe8] sm:$0xff] %v6051
      %6099 = vst [vmem:[%s172 + $0xf0] sm:$0xff] %v6056
      %6100 = vst [vmem:[%s172 + $0xf8] sm:$0xff] %v6059
      %6101 = vst [vmem:[%s172 + $0x100] sm:$0xff] %v6064
      %s6102 = smul.u32 33, %s14
      %p6103 = scmp.lt.s32.totalorder %s6102, 65
      %s6104 = scalar_select %p6103, %s6102, 65
      %s6105 = smul.addr %s6104, 8
      %s6106 = scalar_lea.vmem %s3, %s6105
      // Predicated region
      $region33: #{vector_field_forward.1} parent=31 // pred_check
        %p6107 = pneg %p100
      $region34: #{vector_field_forward.1} parent=31 // pred_check_branch
        %6109 = sbr.rel (%p6107) target = $region36
      $region35: #{vector_field_forward.1} parent=31 // pred_region
        %s6110 = smul.u32 33, %s14
      $region36: #{vector_field_forward.1} parent=31 // pred_fallthru
        _
    $region32: #{vector_field_forward.1} parent=5 // pred_fallthru
      _
    %p6111 = scmp.le.s32.totalorder 2, %s9
    // Predicated region
    $region37: #{vector_field_forward.1} parent=5 // pred_check
      %p6112 = pneg %p6111
    $region38: #{vector_field_forward.1} parent=5 // pred_check_branch
      %6114 = sbr.rel (%p6112) target = $region40
    $region39: #{vector_field_forward.1} parent=5 // pred_region
      %s6115 = ssub.s32 %s9, 2
      // Predicated region
      $region41: #{vector_field_forward.1} parent=39 // pred_check
        %p6116 = pneg %p106
      $region42: #{vector_field_forward.1} parent=39 // pred_check_branch
        %6118 = sbr.rel (%p6116) target = $region44
      $region43: #{vector_field_forward.1} parent=39 // pred_region
        %s6119 = smul.u32 33, %s15
        %p6120 = scmp.lt.s32.totalorder %s6119, 65
        %s6121 = scalar_select %p6120, %s6119, 65
        %s6122 = smul.addr %s6121, 8
        %s6123 = scalar_lea.vmem %s3, %s6122
      $region44: #{vector_field_forward.1} parent=39 // pred_fallthru
        _
    $region40: #{vector_field_forward.1} parent=5 // pred_fallthru
      _
  $region6: #{vector_field_forward.1} parent=0 // loop_footer
    %s13 = sadd.s32 1, %s9
  $region7: #{vector_field_forward.1} parent=0 // loop_footer_branch
    %8 = sbr.rel target = $region3
  $region8: #{vector_field_forward.1} parent=0 // loop_exit
    _

</llo_original>
